<compile_context>
chip_gen: v6e
topology: v6e:2x2x1
jax: 0.10.0
libtpu: 0.0.40
codegen_flags: <defaults>
</compile_context>

<pallas_src>
import functools

import jax
import jax.numpy as jnp
from jax.experimental import pallas as pl
from jax.experimental.pallas import tpu as pltpu

_LANE = 128
_SUBLANE = 8

_tile_map = lambda i: (i, 0)     # batch-tiled blocks
_const_map = lambda i: (0, 0)    # resident (weight) blocks


def _round_up(n, m):
    return ((n + m - 1) // m) * m


def _pick_tile_b(B, max_tile=256):
    """Largest 16-aligned (fallback 8-aligned) divisor of B <= max_tile, preferring >=2 grid steps (v7x)."""
    for align in (16, 8):
        cands = [t for t in range(align, min(B, max_tile) + 1, align) if B % t == 0]
        if not cands:
            continue
        multi = [t for t in cands if B // t >= 2]
        return max(multi) if multi else max(cands)
    raise ValueError("batch size must be a multiple of 8")


def _bf16_vpu_available():
    """True on chips with a bf16-native VPU (v6e, v7x); False on v5e and older."""
    try:
        kind = jax.devices()[0].device_kind.lower()
    except Exception:
        return False
    if "tpu" not in kind:
        return False
    for old in ("v2", "v3", "v4", "v5"):
        if old in kind:
            return False
    return True


def _resident_weight_spec(shape, single_buffer):
    """BlockSpec for a VMEM-resident parameter; request single-buffering when supported."""
    if single_buffer and hasattr(pl, "Buffered"):
        try:
            return pl.BlockSpec(shape, _const_map, pipeline_mode=pl.Buffered(1))
        except Exception:
            pass
    return pl.BlockSpec(shape, _const_map)


def _vae_kernel(x_ref, eps_ref, *refs):
    """One batch tile: encoder -> fused heads -> reparameterization -> decoder -> tile ELBO."""
    param_refs = refs[:-4]
    loss_ref, recon_ref, mean_ref, logvar_ref = refs[-4:]

    enc = param_refs[:8]                 # 4 x (W, b)   ReLU trunk
    head_w, head_b = param_refs[8:10]    # fused (W_mean | W_logvar), (b_mean | b_logvar)
    dec = param_refs[10:20]              # 5 x (W, b)

    x = x_ref[...]                       # f32 [TB, Dp]
    eps = eps_ref[...]                   # f32 [TB, Lp]
    Lp = eps.shape[-1]

    def dense(h, w_ref, b_ref, relu):
        # bf16 operands into the MXU, f32 accumulation; epilogue runs in the bias dtype
        # (bf16 on v6e/v7x trunk layers, f32 for heads / final layer / v5e).
        b = b_ref[...]
        acc = jnp.dot(h.astype(jnp.bfloat16), w_ref[...],
                      preferred_element_type=jnp.float32)
        out = acc.astype(b.dtype) + b
        return jnp.maximum(out, 0.0) if relu else out

    # ---- encoder trunk: 4 x (Linear + ReLU) ----
    h = x
    for i in range(4):
        h = dense(h, enc[2 * i], enc[2 * i + 1], relu=True)

    # ---- fused heads: one [Hp, 2*Lp] projection; lane-group-aligned slices ----
    ml = dense(h, head_w, head_b, relu=False)          # f32 [TB, 2*Lp]
    mean = ml[:, :Lp]
    log_var = ml[:, Lp:]

    # ---- reparameterization ----
    std = jnp.exp(0.5 * log_var)
    z = mean + eps * std

    # ---- decoder: 4 x (Linear + ReLU) then Linear ----
    d = z
    for i in range(5):
        d = dense(d, dec[2 * i], dec[2 * i + 1], relu=(i < 4))
    recon = d                                          # f32 [TB, Dp]

    # ---- per-tile ELBO (zero-padded feature columns contribute exactly 0) ----
    diff = recon - x
    row_recon = jnp.sum(diff * diff, axis=-1, keepdims=True)              # [TB, 1]
    var = std * std                                                       # reuse exp
    row_kld = -0.5 * jnp.sum(1.0 + log_var - mean * mean - var,
                             axis=-1, keepdims=True)                      # [TB, 1]
    tile_elbo = jnp.sum(row_recon + row_kld, axis=0, keepdims=True)       # [1, 1]

    loss_ref[...] = jnp.broadcast_to(tile_elbo, loss_ref.shape)           # (8, 128) broadcast
    recon_ref[...] = recon
    mean_ref[...] = mean
    logvar_ref[...] = log_var


@functools.partial(jax.jit, static_argnames=("latent_dim", "tile_b", "bf16_epilogue",
                                             "single_buffer_weights"))
def vae_forward(x, eps, enc_params, dec_params, latent_dim,
                tile_b=None, bf16_epilogue=None, single_buffer_weights=True):
    """Returns (elbo_loss [scalar], recon_x, mean, log_var).

    Weights are [in_features, out_features] (x @ W + b == PyTorch's x @ W.T + b).
    Requires batch % tile_b == 0 and tile_b % 8 == 0 (multiples of 16 preferred).
    """
    B, D = x.shape
    H = enc_params[0][0].shape[1]

    if tile_b is None:
        tile_b = _pick_tile_b(B)
    assert B % tile_b == 0 and tile_b % _SUBLANE == 0
    if bf16_epilogue is None:
        bf16_epilogue = _bf16_vpu_available()
    act_dtype = jnp.bfloat16 if bf16_epilogue else jnp.float32

    Dp = _round_up(D, _LANE)
    Hp = _round_up(H, _LANE)
    Lp = _round_up(latent_dim, _LANE)
    n_tiles = B // tile_b

    def pad_w(w, rp, cp):
        # zero-pad + bf16 once (halves weight bytes; MXU-native dtype)
        return jnp.pad(w, ((0, rp - w.shape[0]), (0, cp - w.shape[1]))).astype(jnp.bfloat16)

    def pad_b(b, cp, dtype):
        return jnp.pad(b, ((0, 0), (0, cp - b.shape[1]))).astype(dtype)

    flat = []
    # encoder trunk (bf16 epilogue where available)
    dims_enc = [(Dp, Hp)] + [(Hp, Hp)] * 3
    for (w, b), (rp, cp) in zip(enc_params[:4], dims_enc):
        flat += [pad_w(w, rp, cp), pad_b(b, cp, act_dtype)]
    # fused, lane-aligned heads: [W_mean_pad | W_logvar_pad] -> (Hp, 2*Lp); f32 epilogue
    w_head, b_head = enc_params[4]
    w_head_f = jnp.concatenate(
        [jnp.pad(w_head[:, :latent_dim], ((0, Hp - H), (0, Lp - latent_dim))),
         jnp.pad(w_head[:, latent_dim:], ((0, Hp - H), (0, Lp - latent_dim)))],
        axis=1).astype(jnp.bfloat16)
    b_head_f = jnp.concatenate(
        [jnp.pad(b_head[:, :latent_dim], ((0, 0), (0, Lp - latent_dim))),
         jnp.pad(b_head[:, latent_dim:], ((0, 0), (0, Lp - latent_dim)))],
        axis=1).astype(jnp.float32)
    flat += [w_head_f, b_head_f]
    # decoder: 4 ReLU layers (bf16 epilogue) + final linear (f32, feeds the loss)
    dims_dec = [(Lp, Hp)] + [(Hp, Hp)] * 3 + [(Hp, Dp)]
    for i, ((w, b), (rp, cp)) in enumerate(zip(dec_params, dims_dec)):
        flat += [pad_w(w, rp, cp), pad_b(b, cp, act_dtype if i < 4 else jnp.float32)]

    xp = jnp.pad(x.astype(jnp.float32), ((0, 0), (0, Dp - D)))
    epsp = jnp.pad(eps.astype(jnp.float32), ((0, 0), (0, Lp - latent_dim)))

    grid = (n_tiles,)
    in_specs = ([pl.BlockSpec((tile_b, Dp), _tile_map),
                 pl.BlockSpec((tile_b, Lp), _tile_map)]
                + [_resident_weight_spec(p.shape, single_buffer_weights) for p in flat])

    out_shape = (
        jax.ShapeDtypeStruct((n_tiles * _SUBLANE, _LANE), jnp.float32),  # per-tile ELBO
        jax.ShapeDtypeStruct((B, Dp), jnp.float32),                      # recon_x (padded)
        jax.ShapeDtypeStruct((B, Lp), jnp.float32),                      # mean    (padded)
        jax.ShapeDtypeStruct((B, Lp), jnp.float32),                      # log_var (padded)
    )
    out_specs = (
        pl.BlockSpec((_SUBLANE, _LANE), _tile_map),
        pl.BlockSpec((tile_b, Dp), _tile_map),
        pl.BlockSpec((tile_b, Lp), _tile_map),
        pl.BlockSpec((tile_b, Lp), _tile_map),
    )

    # advisory cost estimate so XLA schedules surrounding ops well
    flops = 2 * B * (Dp * Hp + 3 * Hp * Hp + Hp * (2 * Lp)       # encoder + fused head
                     + Lp * Hp + 3 * Hp * Hp + Hp * Dp)           # decoder
    in_bytes = 4 * (xp.size + epsp.size) + sum(int(p.size) * p.dtype.itemsize for p in flat)
    out_bytes = 4 * (n_tiles * _SUBLANE * _LANE + B * Dp + 2 * B * Lp)
    cost = pl.CostEstimate(flops=flops, transcendentals=B * Lp,
                           bytes_accessed=in_bytes + out_bytes)

    loss_tiles, recon_p, mean_p, logvar_p = pl.pallas_call(
        _vae_kernel,
        grid=grid,
        in_specs=in_specs,
        out_specs=out_specs,
        out_shape=out_shape,
        compiler_params=pltpu.CompilerParams(
            dimension_semantics=("parallel",),        # v7x: split batch tiles across both TCs
            vmem_limit_bytes=32 * 1024 * 1024,        # safe on v5e/v6e/v7x; usage << limit
        ),
        cost_estimate=cost,
    )(xp, epsp, *flat)

    elbo = jnp.sum(loss_tiles.reshape(n_tiles, _SUBLANE, _LANE)[:, 0, 0])
    return (elbo,
            recon_p[:, :D],
            mean_p[:, :latent_dim],
            logvar_p[:, :latent_dim])


def init_params(key, input_dim, latent_dim, hidden_dim):
    """Deterministic parameter init. Weights stored as [in, out]."""
    enc_dims = [(input_dim, hidden_dim)] + [(hidden_dim, hidden_dim)] * 3 + \
               [(hidden_dim, latent_dim * 2)]
    dec_dims = [(latent_dim, hidden_dim)] + [(hidden_dim, hidden_dim)] * 3 + \
               [(hidden_dim, input_dim)]

    def make_layers(key, dims):
        layers = []
        for (fan_in, fan_out) in dims:
            key, kw, kb = jax.random.split(key, 3)
            bound = 1.0 / jnp.sqrt(fan_in)
            w = jax.random.uniform(kw, (fan_in, fan_out), jnp.float32, -bound, bound)
            b = jax.random.uniform(kb, (1, fan_out), jnp.float32, -bound, bound)
            layers.append((w, b))
        return key, layers

    key, enc = make_layers(key, enc_dims)
    key, dec = make_layers(key, dec_dims)
    return enc, dec


if __name__ == "__main__":
    input_dim, latent_dim, hidden_dim = 16, 8, 32
    batch = 32   # auto tile_b -> 16, grid=(2,)

    root = jax.random.PRNGKey(0)
    k_param, k_x, k_eps = jax.random.split(root, 3)

    enc_params, dec_params = init_params(k_param, input_dim, latent_dim, hidden_dim)
    x = jax.random.normal(k_x, (batch, input_dim), jnp.float32)
    eps = jax.random.normal(k_eps, (batch, latent_dim), jnp.float32)  # torch.randn_like(std)

    try:
        out = vae_forward(x, eps, enc_params, dec_params,
                          latent_dim=latent_dim, single_buffer_weights=True)
    except Exception:
        # Fallback if this JAX build rejects pl.Buffered(1) on resident weights.
        out = vae_forward(x, eps, enc_params, dec_params,
                          latent_dim=latent_dim, single_buffer_weights=False)
    elbo, recon_x, mean, log_var = out
    jax.block_until_ready(out)

    # ---- reference with the same bf16-operand / f32-accumulate + epilogue-dtype policy ----
    act_dt = jnp.bfloat16 if _bf16_vpu_available() else jnp.float32

    def ref_dense(h, w, b, relu, out_dt):
        acc = jnp.dot(h.astype(jnp.bfloat16), w.astype(jnp.bfloat16),
                      preferred_element_type=jnp.float32)
        o = acc.astype(out_dt) + b.astype(out_dt)
        return jnp.maximum(o, 0.0) if relu else o

    h_r = x
    for (w, b) in enc_params[:4]:
        h_r = ref_dense(h_r, w, b, True, act_dt)
    ml_r = ref_dense(h_r, enc_params[4][0], enc_params[4][1], False, jnp.float32)
    mean_r, logvar_r = ml_r[:, :latent_dim], ml_r[:, latent_dim:]
    z_r = mean_r + eps * jnp.exp(0.5 * logvar_r)
    d_r = z_r
    for i, (w, b) in enumerate(dec_params):
        d_r = ref_dense(d_r, w, b, i < 4, act_dt if i < 4 else jnp.float32)
    recon_r = d_r
    elbo_r = jnp.sum((recon_r - x) ** 2) + (
        -0.5 * jnp.sum(1.0 + logvar_r - mean_r ** 2 - jnp.exp(logvar_r)))

    assert jnp.allclose(mean, mean_r, atol=1e-2, rtol=1e-2)
    assert jnp.allclose(log_var, logvar_r, atol=1e-2, rtol=1e-2)
    assert jnp.allclose(recon_x, recon_r, atol=1e-2, rtol=1e-2)
    assert jnp.allclose(elbo, elbo_r, atol=5e-1, rtol=2e-2)

    print("KERNEL_OK")
</pallas_src>

<mosaic_0001>
module attributes {stable_mosaic.version = 11 : i64} {
  func.func @_vae_kernel(%arg0: i32, %arg1: memref<16x128xf32, #tpu.memory_space<vmem>>, %arg2: memref<16x128xf32, #tpu.memory_space<vmem>>, %arg3: memref<128x128xbf16, #tpu.memory_space<vmem>>, %arg4: memref<1x128xf32, #tpu.memory_space<vmem>>, %arg5: memref<128x128xbf16, #tpu.memory_space<vmem>>, %arg6: memref<1x128xf32, #tpu.memory_space<vmem>>, %arg7: memref<128x128xbf16, #tpu.memory_space<vmem>>, %arg8: memref<1x128xf32, #tpu.memory_space<vmem>>, %arg9: memref<128x128xbf16, #tpu.memory_space<vmem>>, %arg10: memref<1x128xf32, #tpu.memory_space<vmem>>, %arg11: memref<128x256xbf16, #tpu.memory_space<vmem>>, %arg12: memref<1x256xf32, #tpu.memory_space<vmem>>, %arg13: memref<128x128xbf16, #tpu.memory_space<vmem>>, %arg14: memref<1x128xf32, #tpu.memory_space<vmem>>, %arg15: memref<128x128xbf16, #tpu.memory_space<vmem>>, %arg16: memref<1x128xf32, #tpu.memory_space<vmem>>, %arg17: memref<128x128xbf16, #tpu.memory_space<vmem>>, %arg18: memref<1x128xf32, #tpu.memory_space<vmem>>, %arg19: memref<128x128xbf16, #tpu.memory_space<vmem>>, %arg20: memref<1x128xf32, #tpu.memory_space<vmem>>, %arg21: memref<128x128xbf16, #tpu.memory_space<vmem>>, %arg22: memref<1x128xf32, #tpu.memory_space<vmem>>, %arg23: memref<8x128xf32, #tpu.memory_space<vmem>>, %arg24: memref<16x128xf32, #tpu.memory_space<vmem>>, %arg25: memref<16x128xf32, #tpu.memory_space<vmem>>, %arg26: memref<16x128xf32, #tpu.memory_space<vmem>>) attributes {dimension_semantics = [#tpu.dimension_semantics<parallel>], iteration_bounds = array<i64: 2>, scalar_prefetch = 0 : i64, scratch_operands = 0 : i64, tpu.core_type = #tpu.core_type<tc>, window_params = [{transform_indices = @transform_0, window_bounds = array<i64: 16, 128>}, {transform_indices = @transform_1, window_bounds = array<i64: 16, 128>}, {pipeline_mode = #tpu.pipeline_mode<synchronous>, transform_indices = @transform_2, window_bounds = array<i64: 128, 128>}, {pipeline_mode = #tpu.pipeline_mode<synchronous>, transform_indices = @transform_3, window_bounds = array<i64: 1, 128>}, {pipeline_mode = #tpu.pipeline_mode<synchronous>, transform_indices = @transform_4, window_bounds = array<i64: 128, 128>}, {pipeline_mode = #tpu.pipeline_mode<synchronous>, transform_indices = @transform_5, window_bounds = array<i64: 1, 128>}, {pipeline_mode = #tpu.pipeline_mode<synchronous>, transform_indices = @transform_6, window_bounds = array<i64: 128, 128>}, {pipeline_mode = #tpu.pipeline_mode<synchronous>, transform_indices = @transform_7, window_bounds = array<i64: 1, 128>}, {pipeline_mode = #tpu.pipeline_mode<synchronous>, transform_indices = @transform_8, window_bounds = array<i64: 128, 128>}, {pipeline_mode = #tpu.pipeline_mode<synchronous>, transform_indices = @transform_9, window_bounds = array<i64: 1, 128>}, {pipeline_mode = #tpu.pipeline_mode<synchronous>, transform_indices = @transform_10, window_bounds = array<i64: 128, 256>}, {pipeline_mode = #tpu.pipeline_mode<synchronous>, transform_indices = @transform_11, window_bounds = array<i64: 1, 256>}, {pipeline_mode = #tpu.pipeline_mode<synchronous>, transform_indices = @transform_12, window_bounds = array<i64: 128, 128>}, {pipeline_mode = #tpu.pipeline_mode<synchronous>, transform_indices = @transform_13, window_bounds = array<i64: 1, 128>}, {pipeline_mode = #tpu.pipeline_mode<synchronous>, transform_indices = @transform_14, window_bounds = array<i64: 128, 128>}, {pipeline_mode = #tpu.pipeline_mode<synchronous>, transform_indices = @transform_15, window_bounds = array<i64: 1, 128>}, {pipeline_mode = #tpu.pipeline_mode<synchronous>, transform_indices = @transform_16, window_bounds = array<i64: 128, 128>}, {pipeline_mode = #tpu.pipeline_mode<synchronous>, transform_indices = @transform_17, window_bounds = array<i64: 1, 128>}, {pipeline_mode = #tpu.pipeline_mode<synchronous>, transform_indices = @transform_18, window_bounds = array<i64: 128, 128>}, {pipeline_mode = #tpu.pipeline_mode<synchronous>, transform_indices = @transform_19, window_bounds = array<i64: 1, 128>}, {pipeline_mode = #tpu.pipeline_mode<synchronous>, transform_indices = @transform_20, window_bounds = array<i64: 128, 128>}, {pipeline_mode = #tpu.pipeline_mode<synchronous>, transform_indices = @transform_21, window_bounds = array<i64: 1, 128>}, {transform_indices = @transform_22, window_bounds = array<i64: 8, 128>}, {transform_indices = @transform_23, window_bounds = array<i64: 16, 128>}, {transform_indices = @transform_24, window_bounds = array<i64: 16, 128>}, {transform_indices = @transform_25, window_bounds = array<i64: 16, 128>}]} {
    %c0 = arith.constant 0 : index
    %c0_0 = arith.constant 0 : index
    %0 = vector.load %arg1[%c0, %c0_0] : memref<16x128xf32, #tpu.memory_space<vmem>>, vector<16x128xf32>
    %c0_1 = arith.constant 0 : index
    %c0_2 = arith.constant 0 : index
    %1 = vector.load %arg2[%c0_1, %c0_2] : memref<16x128xf32, #tpu.memory_space<vmem>>, vector<16x128xf32>
    %c0_3 = arith.constant 0 : index
    %c0_4 = arith.constant 0 : index
    %2 = vector.load %arg4[%c0_3, %c0_4] : memref<1x128xf32, #tpu.memory_space<vmem>>, vector<1x128xf32>
    %3 = arith.truncf %0 : vector<16x128xf32> to vector<16x128xbf16>
    %c0_5 = arith.constant 0 : index
    %c0_6 = arith.constant 0 : index
    %4 = vector.load %arg3[%c0_5, %c0_6] : memref<128x128xbf16, #tpu.memory_space<vmem>>, vector<128x128xbf16>
    %cst = arith.constant dense<0.000000e+00> : vector<16x128xf32>
    %5 = tpu.matmul %3, %4, %cst {dimension_numbers = #tpu.dot_dimension_numbers<[1], [0], [0], [1], [0, 0, 1, 1], [], []>} : vector<16x128xbf16>, vector<128x128xbf16>, vector<16x128xf32> -> vector<16x128xf32>
    %6 = vector.broadcast %2 : vector<1x128xf32> to vector<16x128xf32>
    %7 = arith.addf %5, %6 : vector<16x128xf32>
    %cst_7 = arith.constant 0.000000e+00 : f32
    %8 = vector.broadcast %cst_7 : f32 to vector<16x128xf32>
    %9 = arith.maximumf %7, %8 : vector<16x128xf32>
    %c0_8 = arith.constant 0 : index
    %c0_9 = arith.constant 0 : index
    %10 = vector.load %arg6[%c0_8, %c0_9] : memref<1x128xf32, #tpu.memory_space<vmem>>, vector<1x128xf32>
    %11 = arith.truncf %9 : vector<16x128xf32> to vector<16x128xbf16>
    %c0_10 = arith.constant 0 : index
    %c0_11 = arith.constant 0 : index
    %12 = vector.load %arg5[%c0_10, %c0_11] : memref<128x128xbf16, #tpu.memory_space<vmem>>, vector<128x128xbf16>
    %cst_12 = arith.constant dense<0.000000e+00> : vector<16x128xf32>
    %13 = tpu.matmul %11, %12, %cst_12 {dimension_numbers = #tpu.dot_dimension_numbers<[1], [0], [0], [1], [0, 0, 1, 1], [], []>} : vector<16x128xbf16>, vector<128x128xbf16>, vector<16x128xf32> -> vector<16x128xf32>
    %14 = vector.broadcast %10 : vector<1x128xf32> to vector<16x128xf32>
    %15 = arith.addf %13, %14 : vector<16x128xf32>
    %cst_13 = arith.constant 0.000000e+00 : f32
    %16 = vector.broadcast %cst_13 : f32 to vector<16x128xf32>
    %17 = arith.maximumf %15, %16 : vector<16x128xf32>
    %c0_14 = arith.constant 0 : index
    %c0_15 = arith.constant 0 : index
    %18 = vector.load %arg8[%c0_14, %c0_15] : memref<1x128xf32, #tpu.memory_space<vmem>>, vector<1x128xf32>
    %19 = arith.truncf %17 : vector<16x128xf32> to vector<16x128xbf16>
    %c0_16 = arith.constant 0 : index
    %c0_17 = arith.constant 0 : index
    %20 = vector.load %arg7[%c0_16, %c0_17] : memref<128x128xbf16, #tpu.memory_space<vmem>>, vector<128x128xbf16>
    %cst_18 = arith.constant dense<0.000000e+00> : vector<16x128xf32>
    %21 = tpu.matmul %19, %20, %cst_18 {dimension_numbers = #tpu.dot_dimension_numbers<[1], [0], [0], [1], [0, 0, 1, 1], [], []>} : vector<16x128xbf16>, vector<128x128xbf16>, vector<16x128xf32> -> vector<16x128xf32>
    %22 = vector.broadcast %18 : vector<1x128xf32> to vector<16x128xf32>
    %23 = arith.addf %21, %22 : vector<16x128xf32>
    %cst_19 = arith.constant 0.000000e+00 : f32
    %24 = vector.broadcast %cst_19 : f32 to vector<16x128xf32>
    %25 = arith.maximumf %23, %24 : vector<16x128xf32>
    %c0_20 = arith.constant 0 : index
    %c0_21 = arith.constant 0 : index
    %26 = vector.load %arg10[%c0_20, %c0_21] : memref<1x128xf32, #tpu.memory_space<vmem>>, vector<1x128xf32>
    %27 = arith.truncf %25 : vector<16x128xf32> to vector<16x128xbf16>
    %c0_22 = arith.constant 0 : index
    %c0_23 = arith.constant 0 : index
    %28 = vector.load %arg9[%c0_22, %c0_23] : memref<128x128xbf16, #tpu.memory_space<vmem>>, vector<128x128xbf16>
    %cst_24 = arith.constant dense<0.000000e+00> : vector<16x128xf32>
    %29 = tpu.matmul %27, %28, %cst_24 {dimension_numbers = #tpu.dot_dimension_numbers<[1], [0], [0], [1], [0, 0, 1, 1], [], []>} : vector<16x128xbf16>, vector<128x128xbf16>, vector<16x128xf32> -> vector<16x128xf32>
    %30 = vector.broadcast %26 : vector<1x128xf32> to vector<16x128xf32>
    %31 = arith.addf %29, %30 : vector<16x128xf32>
    %cst_25 = arith.constant 0.000000e+00 : f32
    %32 = vector.broadcast %cst_25 : f32 to vector<16x128xf32>
    %33 = arith.maximumf %31, %32 : vector<16x128xf32>
    %c0_26 = arith.constant 0 : index
    %c0_27 = arith.constant 0 : index
    %34 = vector.load %arg12[%c0_26, %c0_27] : memref<1x256xf32, #tpu.memory_space<vmem>>, vector<1x256xf32>
    %35 = arith.truncf %33 : vector<16x128xf32> to vector<16x128xbf16>
    %c0_28 = arith.constant 0 : index
    %c0_29 = arith.constant 0 : index
    %36 = vector.load %arg11[%c0_28, %c0_29] : memref<128x256xbf16, #tpu.memory_space<vmem>>, vector<128x256xbf16>
    %cst_30 = arith.constant dense<0.000000e+00> : vector<16x256xf32>
    %37 = tpu.matmul %35, %36, %cst_30 {dimension_numbers = #tpu.dot_dimension_numbers<[1], [0], [0], [1], [0, 0, 1, 1], [], []>} : vector<16x128xbf16>, vector<128x256xbf16>, vector<16x256xf32> -> vector<16x256xf32>
    %38 = vector.broadcast %34 : vector<1x256xf32> to vector<16x256xf32>
    %39 = arith.addf %37, %38 : vector<16x256xf32>
    %40 = vector.extract_strided_slice %39 {offsets = [0, 0], sizes = [16, 128], strides = [1, 1]} : vector<16x256xf32> to vector<16x128xf32>
    %41 = vector.extract_strided_slice %39 {offsets = [0, 128], sizes = [16, 128], strides = [1, 1]} : vector<16x256xf32> to vector<16x128xf32>
    %cst_31 = arith.constant 5.000000e-01 : f32
    %42 = vector.broadcast %cst_31 : f32 to vector<16x128xf32>
    %43 = arith.mulf %42, %41 : vector<16x128xf32>
    %44 = math.exp %43 : vector<16x128xf32>
    %45 = arith.mulf %1, %44 : vector<16x128xf32>
    %46 = arith.addf %40, %45 : vector<16x128xf32>
    %c0_32 = arith.constant 0 : index
    %c0_33 = arith.constant 0 : index
    %47 = vector.load %arg14[%c0_32, %c0_33] : memref<1x128xf32, #tpu.memory_space<vmem>>, vector<1x128xf32>
    %48 = arith.truncf %46 : vector<16x128xf32> to vector<16x128xbf16>
    %c0_34 = arith.constant 0 : index
    %c0_35 = arith.constant 0 : index
    %49 = vector.load %arg13[%c0_34, %c0_35] : memref<128x128xbf16, #tpu.memory_space<vmem>>, vector<128x128xbf16>
    %cst_36 = arith.constant dense<0.000000e+00> : vector<16x128xf32>
    %50 = tpu.matmul %48, %49, %cst_36 {dimension_numbers = #tpu.dot_dimension_numbers<[1], [0], [0], [1], [0, 0, 1, 1], [], []>} : vector<16x128xbf16>, vector<128x128xbf16>, vector<16x128xf32> -> vector<16x128xf32>
    %51 = vector.broadcast %47 : vector<1x128xf32> to vector<16x128xf32>
    %52 = arith.addf %50, %51 : vector<16x128xf32>
    %cst_37 = arith.constant 0.000000e+00 : f32
    %53 = vector.broadcast %cst_37 : f32 to vector<16x128xf32>
    %54 = arith.maximumf %52, %53 : vector<16x128xf32>
    %c0_38 = arith.constant 0 : index
    %c0_39 = arith.constant 0 : index
    %55 = vector.load %arg16[%c0_38, %c0_39] : memref<1x128xf32, #tpu.memory_space<vmem>>, vector<1x128xf32>
    %56 = arith.truncf %54 : vector<16x128xf32> to vector<16x128xbf16>
    %c0_40 = arith.constant 0 : index
    %c0_41 = arith.constant 0 : index
    %57 = vector.load %arg15[%c0_40, %c0_41] : memref<128x128xbf16, #tpu.memory_space<vmem>>, vector<128x128xbf16>
    %cst_42 = arith.constant dense<0.000000e+00> : vector<16x128xf32>
    %58 = tpu.matmul %56, %57, %cst_42 {dimension_numbers = #tpu.dot_dimension_numbers<[1], [0], [0], [1], [0, 0, 1, 1], [], []>} : vector<16x128xbf16>, vector<128x128xbf16>, vector<16x128xf32> -> vector<16x128xf32>
    %59 = vector.broadcast %55 : vector<1x128xf32> to vector<16x128xf32>
    %60 = arith.addf %58, %59 : vector<16x128xf32>
    %cst_43 = arith.constant 0.000000e+00 : f32
    %61 = vector.broadcast %cst_43 : f32 to vector<16x128xf32>
    %62 = arith.maximumf %60, %61 : vector<16x128xf32>
    %c0_44 = arith.constant 0 : index
    %c0_45 = arith.constant 0 : index
    %63 = vector.load %arg18[%c0_44, %c0_45] : memref<1x128xf32, #tpu.memory_space<vmem>>, vector<1x128xf32>
    %64 = arith.truncf %62 : vector<16x128xf32> to vector<16x128xbf16>
    %c0_46 = arith.constant 0 : index
    %c0_47 = arith.constant 0 : index
    %65 = vector.load %arg17[%c0_46, %c0_47] : memref<128x128xbf16, #tpu.memory_space<vmem>>, vector<128x128xbf16>
    %cst_48 = arith.constant dense<0.000000e+00> : vector<16x128xf32>
    %66 = tpu.matmul %64, %65, %cst_48 {dimension_numbers = #tpu.dot_dimension_numbers<[1], [0], [0], [1], [0, 0, 1, 1], [], []>} : vector<16x128xbf16>, vector<128x128xbf16>, vector<16x128xf32> -> vector<16x128xf32>
    %67 = vector.broadcast %63 : vector<1x128xf32> to vector<16x128xf32>
    %68 = arith.addf %66, %67 : vector<16x128xf32>
    %cst_49 = arith.constant 0.000000e+00 : f32
    %69 = vector.broadcast %cst_49 : f32 to vector<16x128xf32>
    %70 = arith.maximumf %68, %69 : vector<16x128xf32>
    %c0_50 = arith.constant 0 : index
    %c0_51 = arith.constant 0 : index
    %71 = vector.load %arg20[%c0_50, %c0_51] : memref<1x128xf32, #tpu.memory_space<vmem>>, vector<1x128xf32>
    %72 = arith.truncf %70 : vector<16x128xf32> to vector<16x128xbf16>
    %c0_52 = arith.constant 0 : index
    %c0_53 = arith.constant 0 : index
    %73 = vector.load %arg19[%c0_52, %c0_53] : memref<128x128xbf16, #tpu.memory_space<vmem>>, vector<128x128xbf16>
    %cst_54 = arith.constant dense<0.000000e+00> : vector<16x128xf32>
    %74 = tpu.matmul %72, %73, %cst_54 {dimension_numbers = #tpu.dot_dimension_numbers<[1], [0], [0], [1], [0, 0, 1, 1], [], []>} : vector<16x128xbf16>, vector<128x128xbf16>, vector<16x128xf32> -> vector<16x128xf32>
    %75 = vector.broadcast %71 : vector<1x128xf32> to vector<16x128xf32>
    %76 = arith.addf %74, %75 : vector<16x128xf32>
    %cst_55 = arith.constant 0.000000e+00 : f32
    %77 = vector.broadcast %cst_55 : f32 to vector<16x128xf32>
    %78 = arith.maximumf %76, %77 : vector<16x128xf32>
    %c0_56 = arith.constant 0 : index
    %c0_57 = arith.constant 0 : index
    %79 = vector.load %arg22[%c0_56, %c0_57] : memref<1x128xf32, #tpu.memory_space<vmem>>, vector<1x128xf32>
    %80 = arith.truncf %78 : vector<16x128xf32> to vector<16x128xbf16>
    %c0_58 = arith.constant 0 : index
    %c0_59 = arith.constant 0 : index
    %81 = vector.load %arg21[%c0_58, %c0_59] : memref<128x128xbf16, #tpu.memory_space<vmem>>, vector<128x128xbf16>
    %cst_60 = arith.constant dense<0.000000e+00> : vector<16x128xf32>
    %82 = tpu.matmul %80, %81, %cst_60 {dimension_numbers = #tpu.dot_dimension_numbers<[1], [0], [0], [1], [0, 0, 1, 1], [], []>} : vector<16x128xbf16>, vector<128x128xbf16>, vector<16x128xf32> -> vector<16x128xf32>
    %83 = vector.broadcast %79 : vector<1x128xf32> to vector<16x128xf32>
    %84 = arith.addf %82, %83 : vector<16x128xf32>
    %85 = arith.subf %84, %0 : vector<16x128xf32>
    %86 = arith.mulf %85, %85 : vector<16x128xf32>
    %cst_61 = arith.constant dense<0.000000e+00> : vector<16xf32>
    %87 = vector.multi_reduction <add>, %86, %cst_61 [1] : vector<16x128xf32> to vector<16xf32>
    %88 = vector.shape_cast %87 : vector<16xf32> to vector<16x1xf32>
    %89 = arith.mulf %44, %44 : vector<16x128xf32>
    %cst_62 = arith.constant 1.000000e+00 : f32
    %90 = vector.broadcast %cst_62 : f32 to vector<16x128xf32>
    %91 = arith.addf %90, %41 : vector<16x128xf32>
    %92 = arith.mulf %40, %40 : vector<16x128xf32>
    %93 = arith.subf %91, %92 : vector<16x128xf32>
    %94 = arith.subf %93, %89 : vector<16x128xf32>
    %cst_63 = arith.constant dense<0.000000e+00> : vector<16xf32>
    %95 = vector.multi_reduction <add>, %94, %cst_63 [1] : vector<16x128xf32> to vector<16xf32>
    %96 = vector.shape_cast %95 : vector<16xf32> to vector<16x1xf32>
    %cst_64 = arith.constant -5.000000e-01 : f32
    %97 = vector.broadcast %cst_64 : f32 to vector<16x1xf32>
    %98 = arith.mulf %97, %96 : vector<16x1xf32>
    %99 = arith.addf %88, %98 : vector<16x1xf32>
    %cst_65 = arith.constant dense<0.000000e+00> : vector<1xf32>
    %100 = vector.multi_reduction <add>, %99, %cst_65 [0] : vector<16x1xf32> to vector<1xf32>
    %101 = vector.shape_cast %100 : vector<1xf32> to vector<1x1xf32>
    %102 = vector.shape_cast %101 : vector<1x1xf32> to vector<1x1xf32>
    %103 = vector.broadcast %102 : vector<1x1xf32> to vector<8x128xf32>
    %c0_66 = arith.constant 0 : index
    %c0_67 = arith.constant 0 : index
    %104 = vector.load %arg23[%c0_66, %c0_67] : memref<8x128xf32, #tpu.memory_space<vmem>>, vector<8x128xf32>
    tpu.vector_store %arg23[%c0_66, %c0_67], %103 {strides = array<i32>} : memref<8x128xf32, #tpu.memory_space<vmem>>, vector<8x128xf32>,
    %c0_68 = arith.constant 0 : index
    %c0_69 = arith.constant 0 : index
    %105 = vector.load %arg24[%c0_68, %c0_69] : memref<16x128xf32, #tpu.memory_space<vmem>>, vector<16x128xf32>
    tpu.vector_store %arg24[%c0_68, %c0_69], %84 {strides = array<i32>} : memref<16x128xf32, #tpu.memory_space<vmem>>, vector<16x128xf32>,
    %c0_70 = arith.constant 0 : index
    %c0_71 = arith.constant 0 : index
    %106 = vector.load %arg25[%c0_70, %c0_71] : memref<16x128xf32, #tpu.memory_space<vmem>>, vector<16x128xf32>
    tpu.vector_store %arg25[%c0_70, %c0_71], %40 {strides = array<i32>} : memref<16x128xf32, #tpu.memory_space<vmem>>, vector<16x128xf32>,
    %c0_72 = arith.constant 0 : index
    %c0_73 = arith.constant 0 : index
    %107 = vector.load %arg26[%c0_72, %c0_73] : memref<16x128xf32, #tpu.memory_space<vmem>>, vector<16x128xf32>
    tpu.vector_store %arg26[%c0_72, %c0_73], %41 {strides = array<i32>} : memref<16x128xf32, #tpu.memory_space<vmem>>, vector<16x128xf32>,
    return
  }
  func.func @transform_0(%arg0: i32) -> (i32, i32) {
    %c0_i32 = arith.constant 0 : i32
    %c0_i32_0 = arith.constant 0 : i32
    return %arg0, %c0_i32 : i32, i32
  }
  func.func @transform_1(%arg0: i32) -> (i32, i32) {
    %c0_i32 = arith.constant 0 : i32
    %c0_i32_0 = arith.constant 0 : i32
    return %arg0, %c0_i32 : i32, i32
  }
  func.func @transform_2(%arg0: i32) -> (i32, i32) {
    %c0_i32 = arith.constant 0 : i32
    %c0_i32_0 = arith.constant 0 : i32
    %c0_i32_1 = arith.constant 0 : i32
    return %c0_i32, %c0_i32_0 : i32, i32
  }
  func.func @transform_3(%arg0: i32) -> (i32, i32) {
    %c0_i32 = arith.constant 0 : i32
    %c0_i32_0 = arith.constant 0 : i32
    %c0_i32_1 = arith.constant 0 : i32
    return %c0_i32, %c0_i32_0 : i32, i32
  }
  func.func @transform_4(%arg0: i32) -> (i32, i32) {
    %c0_i32 = arith.constant 0 : i32
    %c0_i32_0 = arith.constant 0 : i32
    %c0_i32_1 = arith.constant 0 : i32
    return %c0_i32, %c0_i32_0 : i32, i32
  }
  func.func @transform_5(%arg0: i32) -> (i32, i32) {
    %c0_i32 = arith.constant 0 : i32
    %c0_i32_0 = arith.constant 0 : i32
    %c0_i32_1 = arith.constant 0 : i32
    return %c0_i32, %c0_i32_0 : i32, i32
  }
  func.func @transform_6(%arg0: i32) -> (i32, i32) {
    %c0_i32 = arith.constant 0 : i32
    %c0_i32_0 = arith.constant 0 : i32
    %c0_i32_1 = arith.constant 0 : i32
    return %c0_i32, %c0_i32_0 : i32, i32
  }
  func.func @transform_7(%arg0: i32) -> (i32, i32) {
    %c0_i32 = arith.constant 0 : i32
    %c0_i32_0 = arith.constant 0 : i32
    %c0_i32_1 = arith.constant 0 : i32
    return %c0_i32, %c0_i32_0 : i32, i32
  }
  func.func @transform_8(%arg0: i32) -> (i32, i32) {
    %c0_i32 = arith.constant 0 : i32
    %c0_i32_0 = arith.constant 0 : i32
    %c0_i32_1 = arith.constant 0 : i32
    return %c0_i32, %c0_i32_0 : i32, i32
  }
  func.func @transform_9(%arg0: i32) -> (i32, i32) {
    %c0_i32 = arith.constant 0 : i32
    %c0_i32_0 = arith.constant 0 : i32
    %c0_i32_1 = arith.constant 0 : i32
    return %c0_i32, %c0_i32_0 : i32, i32
  }
  func.func @transform_10(%arg0: i32) -> (i32, i32) {
    %c0_i32 = arith.constant 0 : i32
    %c0_i32_0 = arith.constant 0 : i32
    %c0_i32_1 = arith.constant 0 : i32
    return %c0_i32, %c0_i32_0 : i32, i32
  }
  func.func @transform_11(%arg0: i32) -> (i32, i32) {
    %c0_i32 = arith.constant 0 : i32
    %c0_i32_0 = arith.constant 0 : i32
    %c0_i32_1 = arith.constant 0 : i32
    return %c0_i32, %c0_i32_0 : i32, i32
  }
  func.func @transform_12(%arg0: i32) -> (i32, i32) {
    %c0_i32 = arith.constant 0 : i32
    %c0_i32_0 = arith.constant 0 : i32
    %c0_i32_1 = arith.constant 0 : i32
    return %c0_i32, %c0_i32_0 : i32, i32
  }
  func.func @transform_13(%arg0: i32) -> (i32, i32) {
    %c0_i32 = arith.constant 0 : i32
    %c0_i32_0 = arith.constant 0 : i32
    %c0_i32_1 = arith.constant 0 : i32
    return %c0_i32, %c0_i32_0 : i32, i32
  }
  func.func @transform_14(%arg0: i32) -> (i32, i32) {
    %c0_i32 = arith.constant 0 : i32
    %c0_i32_0 = arith.constant 0 : i32
    %c0_i32_1 = arith.constant 0 : i32
    return %c0_i32, %c0_i32_0 : i32, i32
  }
  func.func @transform_15(%arg0: i32) -> (i32, i32) {
    %c0_i32 = arith.constant 0 : i32
    %c0_i32_0 = arith.constant 0 : i32
    %c0_i32_1 = arith.constant 0 : i32
    return %c0_i32, %c0_i32_0 : i32, i32
  }
  func.func @transform_16(%arg0: i32) -> (i32, i32) {
    %c0_i32 = arith.constant 0 : i32
    %c0_i32_0 = arith.constant 0 : i32
    %c0_i32_1 = arith.constant 0 : i32
    return %c0_i32, %c0_i32_0 : i32, i32
  }
  func.func @transform_17(%arg0: i32) -> (i32, i32) {
    %c0_i32 = arith.constant 0 : i32
    %c0_i32_0 = arith.constant 0 : i32
    %c0_i32_1 = arith.constant 0 : i32
    return %c0_i32, %c0_i32_0 : i32, i32
  }
  func.func @transform_18(%arg0: i32) -> (i32, i32) {
    %c0_i32 = arith.constant 0 : i32
    %c0_i32_0 = arith.constant 0 : i32
    %c0_i32_1 = arith.constant 0 : i32
    return %c0_i32, %c0_i32_0 : i32, i32
  }
  func.func @transform_19(%arg0: i32) -> (i32, i32) {
    %c0_i32 = arith.constant 0 : i32
    %c0_i32_0 = arith.constant 0 : i32
    %c0_i32_1 = arith.constant 0 : i32
    return %c0_i32, %c0_i32_0 : i32, i32
  }
  func.func @transform_20(%arg0: i32) -> (i32, i32) {
    %c0_i32 = arith.constant 0 : i32
    %c0_i32_0 = arith.constant 0 : i32
    %c0_i32_1 = arith.constant 0 : i32
    return %c0_i32, %c0_i32_0 : i32, i32
  }
  func.func @transform_21(%arg0: i32) -> (i32, i32) {
    %c0_i32 = arith.constant 0 : i32
    %c0_i32_0 = arith.constant 0 : i32
    %c0_i32_1 = arith.constant 0 : i32
    return %c0_i32, %c0_i32_0 : i32, i32
  }
  func.func @transform_22(%arg0: i32) -> (i32, i32) {
    %c0_i32 = arith.constant 0 : i32
    %c0_i32_0 = arith.constant 0 : i32
    return %arg0, %c0_i32 : i32, i32
  }
  func.func @transform_23(%arg0: i32) -> (i32, i32) {
    %c0_i32 = arith.constant 0 : i32
    %c0_i32_0 = arith.constant 0 : i32
    return %arg0, %c0_i32 : i32, i32
  }
  func.func @transform_24(%arg0: i32) -> (i32, i32) {
    %c0_i32 = arith.constant 0 : i32
    %c0_i32_0 = arith.constant 0 : i32
    return %arg0, %c0_i32 : i32, i32
  }
  func.func @transform_25(%arg0: i32) -> (i32, i32) {
    %c0_i32 = arith.constant 0 : i32
    %c0_i32_0 = arith.constant 0 : i32
    return %arg0, %c0_i32 : i32, i32
  }
}

module attributes {stable_mosaic.version = 11 : i64} {
  func.func @_vae_kernel(%arg0: i32, %arg1: memref<16x128xf32, #tpu.memory_space<vmem>>, %arg2: memref<16x128xf32, #tpu.memory_space<vmem>>, %arg3: memref<128x128xbf16, #tpu.memory_space<vmem>>, %arg4: memref<1x128xf32, #tpu.memory_space<vmem>>, %arg5: memref<128x128xbf16, #tpu.memory_space<vmem>>, %arg6: memref<1x128xf32, #tpu.memory_space<vmem>>, %arg7: memref<128x128xbf16, #tpu.memory_space<vmem>>, %arg8: memref<1x128xf32, #tpu.memory_space<vmem>>, %arg9: memref<128x128xbf16, #tpu.memory_space<vmem>>, %arg10: memref<1x128xf32, #tpu.memory_space<vmem>>, %arg11: memref<128x256xbf16, #tpu.memory_space<vmem>>, %arg12: memref<1x256xf32, #tpu.memory_space<vmem>>, %arg13: memref<128x128xbf16, #tpu.memory_space<vmem>>, %arg14: memref<1x128xf32, #tpu.memory_space<vmem>>, %arg15: memref<128x128xbf16, #tpu.memory_space<vmem>>, %arg16: memref<1x128xf32, #tpu.memory_space<vmem>>, %arg17: memref<128x128xbf16, #tpu.memory_space<vmem>>, %arg18: memref<1x128xf32, #tpu.memory_space<vmem>>, %arg19: memref<128x128xbf16, #tpu.memory_space<vmem>>, %arg20: memref<1x128xf32, #tpu.memory_space<vmem>>, %arg21: memref<128x128xbf16, #tpu.memory_space<vmem>>, %arg22: memref<1x128xf32, #tpu.memory_space<vmem>>, %arg23: memref<8x128xf32, #tpu.memory_space<vmem>>, %arg24: memref<16x128xf32, #tpu.memory_space<vmem>>, %arg25: memref<16x128xf32, #tpu.memory_space<vmem>>, %arg26: memref<16x128xf32, #tpu.memory_space<vmem>>) attributes {dimension_semantics = [#tpu.dimension_semantics<parallel>], iteration_bounds = array<i64: 2>, scalar_prefetch = 0 : i64, scratch_operands = 0 : i64, tpu.core_type = #tpu.core_type<tc>, window_params = [{transform_indices = @transform_0, window_bounds = array<i64: 16, 128>}, {transform_indices = @transform_1, window_bounds = array<i64: 16, 128>}, {pipeline_mode = #tpu.pipeline_mode<synchronous>, transform_indices = @transform_2, window_bounds = array<i64: 128, 128>}, {pipeline_mode = #tpu.pipeline_mode<synchronous>, transform_indices = @transform_3, window_bounds = array<i64: 1, 128>}, {pipeline_mode = #tpu.pipeline_mode<synchronous>, transform_indices = @transform_4, window_bounds = array<i64: 128, 128>}, {pipeline_mode = #tpu.pipeline_mode<synchronous>, transform_indices = @transform_5, window_bounds = array<i64: 1, 128>}, {pipeline_mode = #tpu.pipeline_mode<synchronous>, transform_indices = @transform_6, window_bounds = array<i64: 128, 128>}, {pipeline_mode = #tpu.pipeline_mode<synchronous>, transform_indices = @transform_7, window_bounds = array<i64: 1, 128>}, {pipeline_mode = #tpu.pipeline_mode<synchronous>, transform_indices = @transform_8, window_bounds = array<i64: 128, 128>}, {pipeline_mode = #tpu.pipeline_mode<synchronous>, transform_indices = @transform_9, window_bounds = array<i64: 1, 128>}, {pipeline_mode = #tpu.pipeline_mode<synchronous>, transform_indices = @transform_10, window_bounds = array<i64: 128, 256>}, {pipeline_mode = #tpu.pipeline_mode<synchronous>, transform_indices = @transform_11, window_bounds = array<i64: 1, 256>}, {pipeline_mode = #tpu.pipeline_mode<synchronous>, transform_indices = @transform_12, window_bounds = array<i64: 128, 128>}, {pipeline_mode = #tpu.pipeline_mode<synchronous>, transform_indices = @transform_13, window_bounds = array<i64: 1, 128>}, {pipeline_mode = #tpu.pipeline_mode<synchronous>, transform_indices = @transform_14, window_bounds = array<i64: 128, 128>}, {pipeline_mode = #tpu.pipeline_mode<synchronous>, transform_indices = @transform_15, window_bounds = array<i64: 1, 128>}, {pipeline_mode = #tpu.pipeline_mode<synchronous>, transform_indices = @transform_16, window_bounds = array<i64: 128, 128>}, {pipeline_mode = #tpu.pipeline_mode<synchronous>, transform_indices = @transform_17, window_bounds = array<i64: 1, 128>}, {pipeline_mode = #tpu.pipeline_mode<synchronous>, transform_indices = @transform_18, window_bounds = array<i64: 128, 128>}, {pipeline_mode = #tpu.pipeline_mode<synchronous>, transform_indices = @transform_19, window_bounds = array<i64: 1, 128>}, {pipeline_mode = #tpu.pipeline_mode<synchronous>, transform_indices = @transform_20, window_bounds = array<i64: 128, 128>}, {pipeline_mode = #tpu.pipeline_mode<synchronous>, transform_indices = @transform_21, window_bounds = array<i64: 1, 128>}, {transform_indices = @transform_22, window_bounds = array<i64: 8, 128>}, {transform_indices = @transform_23, window_bounds = array<i64: 16, 128>}, {transform_indices = @transform_24, window_bounds = array<i64: 16, 128>}, {transform_indices = @transform_25, window_bounds = array<i64: 16, 128>}]} {
    %c0 = arith.constant 0 : index
    %c0_0 = arith.constant 0 : index
    %0 = vector.load %arg1[%c0, %c0_0] : memref<16x128xf32, #tpu.memory_space<vmem>>, vector<16x128xf32>
    %c0_1 = arith.constant 0 : index
    %c0_2 = arith.constant 0 : index
    %1 = vector.load %arg2[%c0_1, %c0_2] : memref<16x128xf32, #tpu.memory_space<vmem>>, vector<16x128xf32>
    %c0_3 = arith.constant 0 : index
    %c0_4 = arith.constant 0 : index
    %2 = vector.load %arg4[%c0_3, %c0_4] : memref<1x128xf32, #tpu.memory_space<vmem>>, vector<1x128xf32>
    %3 = arith.truncf %0 : vector<16x128xf32> to vector<16x128xbf16>
    %c0_5 = arith.constant 0 : index
    %c0_6 = arith.constant 0 : index
    %4 = vector.load %arg3[%c0_5, %c0_6] : memref<128x128xbf16, #tpu.memory_space<vmem>>, vector<128x128xbf16>
    %cst = arith.constant dense<0.000000e+00> : vector<16x128xf32>
    %5 = tpu.matmul %3, %4, %cst {dimension_numbers = #tpu.dot_dimension_numbers<[1], [0], [0], [1], [0, 0, 1, 1], [], []>} : vector<16x128xbf16>, vector<128x128xbf16>, vector<16x128xf32> -> vector<16x128xf32>
    %6 = vector.broadcast %2 : vector<1x128xf32> to vector<16x128xf32>
    %7 = arith.addf %5, %6 : vector<16x128xf32>
    %cst_7 = arith.constant 0.000000e+00 : f32
    %8 = vector.broadcast %cst_7 : f32 to vector<16x128xf32>
    %9 = arith.maximumf %7, %8 : vector<16x128xf32>
    %c0_8 = arith.constant 0 : index
    %c0_9 = arith.constant 0 : index
    %10 = vector.load %arg6[%c0_8, %c0_9] : memref<1x128xf32, #tpu.memory_space<vmem>>, vector<1x128xf32>
    %11 = arith.truncf %9 : vector<16x128xf32> to vector<16x128xbf16>
    %c0_10 = arith.constant 0 : index
    %c0_11 = arith.constant 0 : index
    %12 = vector.load %arg5[%c0_10, %c0_11] : memref<128x128xbf16, #tpu.memory_space<vmem>>, vector<128x128xbf16>
    %cst_12 = arith.constant dense<0.000000e+00> : vector<16x128xf32>
    %13 = tpu.matmul %11, %12, %cst_12 {dimension_numbers = #tpu.dot_dimension_numbers<[1], [0], [0], [1], [0, 0, 1, 1], [], []>} : vector<16x128xbf16>, vector<128x128xbf16>, vector<16x128xf32> -> vector<16x128xf32>
    %14 = vector.broadcast %10 : vector<1x128xf32> to vector<16x128xf32>
    %15 = arith.addf %13, %14 : vector<16x128xf32>
    %cst_13 = arith.constant 0.000000e+00 : f32
    %16 = vector.broadcast %cst_13 : f32 to vector<16x128xf32>
    %17 = arith.maximumf %15, %16 : vector<16x128xf32>
    %c0_14 = arith.constant 0 : index
    %c0_15 = arith.constant 0 : index
    %18 = vector.load %arg8[%c0_14, %c0_15] : memref<1x128xf32, #tpu.memory_space<vmem>>, vector<1x128xf32>
    %19 = arith.truncf %17 : vector<16x128xf32> to vector<16x128xbf16>
    %c0_16 = arith.constant 0 : index
    %c0_17 = arith.constant 0 : index
    %20 = vector.load %arg7[%c0_16, %c0_17] : memref<128x128xbf16, #tpu.memory_space<vmem>>, vector<128x128xbf16>
    %cst_18 = arith.constant dense<0.000000e+00> : vector<16x128xf32>
    %21 = tpu.matmul %19, %20, %cst_18 {dimension_numbers = #tpu.dot_dimension_numbers<[1], [0], [0], [1], [0, 0, 1, 1], [], []>} : vector<16x128xbf16>, vector<128x128xbf16>, vector<16x128xf32> -> vector<16x128xf32>
    %22 = vector.broadcast %18 : vector<1x128xf32> to vector<16x128xf32>
    %23 = arith.addf %21, %22 : vector<16x128xf32>
    %cst_19 = arith.constant 0.000000e+00 : f32
    %24 = vector.broadcast %cst_19 : f32 to vector<16x128xf32>
    %25 = arith.maximumf %23, %24 : vector<16x128xf32>
    %c0_20 = arith.constant 0 : index
    %c0_21 = arith.constant 0 : index
    %26 = vector.load %arg10[%c0_20, %c0_21] : memref<1x128xf32, #tpu.memory_space<vmem>>, vector<1x128xf32>
    %27 = arith.truncf %25 : vector<16x128xf32> to vector<16x128xbf16>
    %c0_22 = arith.constant 0 : index
    %c0_23 = arith.constant 0 : index
    %28 = vector.load %arg9[%c0_22, %c0_23] : memref<128x128xbf16, #tpu.memory_space<vmem>>, vector<128x128xbf16>
    %cst_24 = arith.constant dense<0.000000e+00> : vector<16x128xf32>
    %29 = tpu.matmul %27, %28, %cst_24 {dimension_numbers = #tpu.dot_dimension_numbers<[1], [0], [0], [1], [0, 0, 1, 1], [], []>} : vector<16x128xbf16>, vector<128x128xbf16>, vector<16x128xf32> -> vector<16x128xf32>
    %30 = vector.broadcast %26 : vector<1x128xf32> to vector<16x128xf32>
    %31 = arith.addf %29, %30 : vector<16x128xf32>
    %cst_25 = arith.constant 0.000000e+00 : f32
    %32 = vector.broadcast %cst_25 : f32 to vector<16x128xf32>
    %33 = arith.maximumf %31, %32 : vector<16x128xf32>
    %c0_26 = arith.constant 0 : index
    %c0_27 = arith.constant 0 : index
    %34 = vector.load %arg12[%c0_26, %c0_27] : memref<1x256xf32, #tpu.memory_space<vmem>>, vector<1x256xf32>
    %35 = arith.truncf %33 : vector<16x128xf32> to vector<16x128xbf16>
    %c0_28 = arith.constant 0 : index
    %c0_29 = arith.constant 0 : index
    %36 = vector.load %arg11[%c0_28, %c0_29] : memref<128x256xbf16, #tpu.memory_space<vmem>>, vector<128x256xbf16>
    %cst_30 = arith.constant dense<0.000000e+00> : vector<16x256xf32>
    %37 = tpu.matmul %35, %36, %cst_30 {dimension_numbers = #tpu.dot_dimension_numbers<[1], [0], [0], [1], [0, 0, 1, 1], [], []>} : vector<16x128xbf16>, vector<128x256xbf16>, vector<16x256xf32> -> vector<16x256xf32>
    %38 = vector.broadcast %34 : vector<1x256xf32> to vector<16x256xf32>
    %39 = arith.addf %37, %38 : vector<16x256xf32>
    %40 = vector.extract_strided_slice %39 {offsets = [0, 0], sizes = [16, 128], strides = [1, 1]} : vector<16x256xf32> to vector<16x128xf32>
    %41 = vector.extract_strided_slice %39 {offsets = [0, 128], sizes = [16, 128], strides = [1, 1]} : vector<16x256xf32> to vector<16x128xf32>
    %cst_31 = arith.constant 5.000000e-01 : f32
    %42 = vector.broadcast %cst_31 : f32 to vector<16x128xf32>
    %43 = arith.mulf %42, %41 : vector<16x128xf32>
    %44 = math.exp %43 : vector<16x128xf32>
    %45 = arith.mulf %1, %44 : vector<16x128xf32>
    %46 = arith.addf %40, %45 : vector<16x128xf32>
    %c0_32 = arith.constant 0 : index
    %c0_33 = arith.constant 0 : index
    %47 = vector.load %arg14[%c0_32, %c0_33] : memref<1x128xf32, #tpu.memory_space<vmem>>, vector<1x128xf32>
    %48 = arith.truncf %46 : vector<16x128xf32> to vector<16x128xbf16>
    %c0_34 = arith.constant 0 : index
    %c0_35 = arith.constant 0 : index
    %49 = vector.load %arg13[%c0_34, %c0_35] : memref<128x128xbf16, #tpu.memory_space<vmem>>, vector<128x128xbf16>
    %cst_36 = arith.constant dense<0.000000e+00> : vector<16x128xf32>
    %50 = tpu.matmul %48, %49, %cst_36 {dimension_numbers = #tpu.dot_dimension_numbers<[1], [0], [0], [1], [0, 0, 1, 1], [], []>} : vector<16x128xbf16>, vector<128x128xbf16>, vector<16x128xf32> -> vector<16x128xf32>
    %51 = vector.broadcast %47 : vector<1x128xf32> to vector<16x128xf32>
    %52 = arith.addf %50, %51 : vector<16x128xf32>
    %cst_37 = arith.constant 0.000000e+00 : f32
    %53 = vector.broadcast %cst_37 : f32 to vector<16x128xf32>
    %54 = arith.maximumf %52, %53 : vector<16x128xf32>
    %c0_38 = arith.constant 0 : index
    %c0_39 = arith.constant 0 : index
    %55 = vector.load %arg16[%c0_38, %c0_39] : memref<1x128xf32, #tpu.memory_space<vmem>>, vector<1x128xf32>
    %56 = arith.truncf %54 : vector<16x128xf32> to vector<16x128xbf16>
    %c0_40 = arith.constant 0 : index
    %c0_41 = arith.constant 0 : index
    %57 = vector.load %arg15[%c0_40, %c0_41] : memref<128x128xbf16, #tpu.memory_space<vmem>>, vector<128x128xbf16>
    %cst_42 = arith.constant dense<0.000000e+00> : vector<16x128xf32>
    %58 = tpu.matmul %56, %57, %cst_42 {dimension_numbers = #tpu.dot_dimension_numbers<[1], [0], [0], [1], [0, 0, 1, 1], [], []>} : vector<16x128xbf16>, vector<128x128xbf16>, vector<16x128xf32> -> vector<16x128xf32>
    %59 = vector.broadcast %55 : vector<1x128xf32> to vector<16x128xf32>
    %60 = arith.addf %58, %59 : vector<16x128xf32>
    %cst_43 = arith.constant 0.000000e+00 : f32
    %61 = vector.broadcast %cst_43 : f32 to vector<16x128xf32>
    %62 = arith.maximumf %60, %61 : vector<16x128xf32>
    %c0_44 = arith.constant 0 : index
    %c0_45 = arith.constant 0 : index
    %63 = vector.load %arg18[%c0_44, %c0_45] : memref<1x128xf32, #tpu.memory_space<vmem>>, vector<1x128xf32>
    %64 = arith.truncf %62 : vector<16x128xf32> to vector<16x128xbf16>
    %c0_46 = arith.constant 0 : index
    %c0_47 = arith.constant 0 : index
    %65 = vector.load %arg17[%c0_46, %c0_47] : memref<128x128xbf16, #tpu.memory_space<vmem>>, vector<128x128xbf16>
    %cst_48 = arith.constant dense<0.000000e+00> : vector<16x128xf32>
    %66 = tpu.matmul %64, %65, %cst_48 {dimension_numbers = #tpu.dot_dimension_numbers<[1], [0], [0], [1], [0, 0, 1, 1], [], []>} : vector<16x128xbf16>, vector<128x128xbf16>, vector<16x128xf32> -> vector<16x128xf32>
    %67 = vector.broadcast %63 : vector<1x128xf32> to vector<16x128xf32>
    %68 = arith.addf %66, %67 : vector<16x128xf32>
    %cst_49 = arith.constant 0.000000e+00 : f32
    %69 = vector.broadcast %cst_49 : f32 to vector<16x128xf32>
    %70 = arith.maximumf %68, %69 : vector<16x128xf32>
    %c0_50 = arith.constant 0 : index
    %c0_51 = arith.constant 0 : index
    %71 = vector.load %arg20[%c0_50, %c0_51] : memref<1x128xf32, #tpu.memory_space<vmem>>, vector<1x128xf32>
    %72 = arith.truncf %70 : vector<16x128xf32> to vector<16x128xbf16>
    %c0_52 = arith.constant 0 : index
    %c0_53 = arith.constant 0 : index
    %73 = vector.load %arg19[%c0_52, %c0_53] : memref<128x128xbf16, #tpu.memory_space<vmem>>, vector<128x128xbf16>
    %cst_54 = arith.constant dense<0.000000e+00> : vector<16x128xf32>
    %74 = tpu.matmul %72, %73, %cst_54 {dimension_numbers = #tpu.dot_dimension_numbers<[1], [0], [0], [1], [0, 0, 1, 1], [], []>} : vector<16x128xbf16>, vector<128x128xbf16>, vector<16x128xf32> -> vector<16x128xf32>
    %75 = vector.broadcast %71 : vector<1x128xf32> to vector<16x128xf32>
    %76 = arith.addf %74, %75 : vector<16x128xf32>
    %cst_55 = arith.constant 0.000000e+00 : f32
    %77 = vector.broadcast %cst_55 : f32 to vector<16x128xf32>
    %78 = arith.maximumf %76, %77 : vector<16x128xf32>
    %c0_56 = arith.constant 0 : index
    %c0_57 = arith.constant 0 : index
    %79 = vector.load %arg22[%c0_56, %c0_57] : memref<1x128xf32, #tpu.memory_space<vmem>>, vector<1x128xf32>
    %80 = arith.truncf %78 : vector<16x128xf32> to vector<16x128xbf16>
    %c0_58 = arith.constant 0 : index
    %c0_59 = arith.constant 0 : index
    %81 = vector.load %arg21[%c0_58, %c0_59] : memref<128x128xbf16, #tpu.memory_space<vmem>>, vector<128x128xbf16>
    %cst_60 = arith.constant dense<0.000000e+00> : vector<16x128xf32>
    %82 = tpu.matmul %80, %81, %cst_60 {dimension_numbers = #tpu.dot_dimension_numbers<[1], [0], [0], [1], [0, 0, 1, 1], [], []>} : vector<16x128xbf16>, vector<128x128xbf16>, vector<16x128xf32> -> vector<16x128xf32>
    %83 = vector.broadcast %79 : vector<1x128xf32> to vector<16x128xf32>
    %84 = arith.addf %82, %83 : vector<16x128xf32>
    %85 = arith.subf %84, %0 : vector<16x128xf32>
    %86 = arith.mulf %85, %85 : vector<16x128xf32>
    %cst_61 = arith.constant dense<0.000000e+00> : vector<16xf32>
    %87 = vector.multi_reduction <add>, %86, %cst_61 [1] : vector<16x128xf32> to vector<16xf32>
    %88 = vector.shape_cast %87 : vector<16xf32> to vector<16x1xf32>
    %89 = arith.mulf %44, %44 : vector<16x128xf32>
    %cst_62 = arith.constant 1.000000e+00 : f32
    %90 = vector.broadcast %cst_62 : f32 to vector<16x128xf32>
    %91 = arith.addf %90, %41 : vector<16x128xf32>
    %92 = arith.mulf %40, %40 : vector<16x128xf32>
    %93 = arith.subf %91, %92 : vector<16x128xf32>
    %94 = arith.subf %93, %89 : vector<16x128xf32>
    %cst_63 = arith.constant dense<0.000000e+00> : vector<16xf32>
    %95 = vector.multi_reduction <add>, %94, %cst_63 [1] : vector<16x128xf32> to vector<16xf32>
    %96 = vector.shape_cast %95 : vector<16xf32> to vector<16x1xf32>
    %cst_64 = arith.constant -5.000000e-01 : f32
    %97 = vector.broadcast %cst_64 : f32 to vector<16x1xf32>
    %98 = arith.mulf %97, %96 : vector<16x1xf32>
    %99 = arith.addf %88, %98 : vector<16x1xf32>
    %cst_65 = arith.constant dense<0.000000e+00> : vector<1xf32>
    %100 = vector.multi_reduction <add>, %99, %cst_65 [0] : vector<16x1xf32> to vector<1xf32>
    %101 = vector.shape_cast %100 : vector<1xf32> to vector<1x1xf32>
    %102 = vector.shape_cast %101 : vector<1x1xf32> to vector<1x1xf32>
    %103 = vector.broadcast %102 : vector<1x1xf32> to vector<8x128xf32>
    %c0_66 = arith.constant 0 : index
    %c0_67 = arith.constant 0 : index
    %104 = vector.load %arg23[%c0_66, %c0_67] : memref<8x128xf32, #tpu.memory_space<vmem>>, vector<8x128xf32>
    tpu.vector_store %arg23[%c0_66, %c0_67], %103 {strides = array<i32>} : memref<8x128xf32, #tpu.memory_space<vmem>>, vector<8x128xf32>,
    %c0_68 = arith.constant 0 : index
    %c0_69 = arith.constant 0 : index
    %105 = vector.load %arg24[%c0_68, %c0_69] : memref<16x128xf32, #tpu.memory_space<vmem>>, vector<16x128xf32>
    tpu.vector_store %arg24[%c0_68, %c0_69], %84 {strides = array<i32>} : memref<16x128xf32, #tpu.memory_space<vmem>>, vector<16x128xf32>,
    %c0_70 = arith.constant 0 : index
    %c0_71 = arith.constant 0 : index
    %106 = vector.load %arg25[%c0_70, %c0_71] : memref<16x128xf32, #tpu.memory_space<vmem>>, vector<16x128xf32>
    tpu.vector_store %arg25[%c0_70, %c0_71], %40 {strides = array<i32>} : memref<16x128xf32, #tpu.memory_space<vmem>>, vector<16x128xf32>,
    %c0_72 = arith.constant 0 : index
    %c0_73 = arith.constant 0 : index
    %107 = vector.load %arg26[%c0_72, %c0_73] : memref<16x128xf32, #tpu.memory_space<vmem>>, vector<16x128xf32>
    tpu.vector_store %arg26[%c0_72, %c0_73], %41 {strides = array<i32>} : memref<16x128xf32, #tpu.memory_space<vmem>>, vector<16x128xf32>,
    return
  }
  func.func @transform_0(%arg0: i32) -> (i32, i32) {
    %c0_i32 = arith.constant 0 : i32
    %c0_i32_0 = arith.constant 0 : i32
    return %arg0, %c0_i32 : i32, i32
  }
  func.func @transform_1(%arg0: i32) -> (i32, i32) {
    %c0_i32 = arith.constant 0 : i32
    %c0_i32_0 = arith.constant 0 : i32
    return %arg0, %c0_i32 : i32, i32
  }
  func.func @transform_2(%arg0: i32) -> (i32, i32) {
    %c0_i32 = arith.constant 0 : i32
    %c0_i32_0 = arith.constant 0 : i32
    %c0_i32_1 = arith.constant 0 : i32
    return %c0_i32, %c0_i32_0 : i32, i32
  }
  func.func @transform_3(%arg0: i32) -> (i32, i32) {
    %c0_i32 = arith.constant 0 : i32
    %c0_i32_0 = arith.constant 0 : i32
    %c0_i32_1 = arith.constant 0 : i32
    return %c0_i32, %c0_i32_0 : i32, i32
  }
  func.func @transform_4(%arg0: i32) -> (i32, i32) {
    %c0_i32 = arith.constant 0 : i32
    %c0_i32_0 = arith.constant 0 : i32
    %c0_i32_1 = arith.constant 0 : i32
    return %c0_i32, %c0_i32_0 : i32, i32
  }
  func.func @transform_5(%arg0: i32) -> (i32, i32) {
    %c0_i32 = arith.constant 0 : i32
    %c0_i32_0 = arith.constant 0 : i32
    %c0_i32_1 = arith.constant 0 : i32
    return %c0_i32, %c0_i32_0 : i32, i32
  }
  func.func @transform_6(%arg0: i32) -> (i32, i32) {
    %c0_i32 = arith.constant 0 : i32
    %c0_i32_0 = arith.constant 0 : i32
    %c0_i32_1 = arith.constant 0 : i32
    return %c0_i32, %c0_i32_0 : i32, i32
  }
  func.func @transform_7(%arg0: i32) -> (i32, i32) {
    %c0_i32 = arith.constant 0 : i32
    %c0_i32_0 = arith.constant 0 : i32
    %c0_i32_1 = arith.constant 0 : i32
    return %c0_i32, %c0_i32_0 : i32, i32
  }
  func.func @transform_8(%arg0: i32) -> (i32, i32) {
    %c0_i32 = arith.constant 0 : i32
    %c0_i32_0 = arith.constant 0 : i32
    %c0_i32_1 = arith.constant 0 : i32
    return %c0_i32, %c0_i32_0 : i32, i32
  }
  func.func @transform_9(%arg0: i32) -> (i32, i32) {
    %c0_i32 = arith.constant 0 : i32
    %c0_i32_0 = arith.constant 0 : i32
    %c0_i32_1 = arith.constant 0 : i32
    return %c0_i32, %c0_i32_0 : i32, i32
  }
  func.func @transform_10(%arg0: i32) -> (i32, i32) {
    %c0_i32 = arith.constant 0 : i32
    %c0_i32_0 = arith.constant 0 : i32
    %c0_i32_1 = arith.constant 0 : i32
    return %c0_i32, %c0_i32_0 : i32, i32
  }
  func.func @transform_11(%arg0: i32) -> (i32, i32) {
    %c0_i32 = arith.constant 0 : i32
    %c0_i32_0 = arith.constant 0 : i32
    %c0_i32_1 = arith.constant 0 : i32
    return %c0_i32, %c0_i32_0 : i32, i32
  }
  func.func @transform_12(%arg0: i32) -> (i32, i32) {
    %c0_i32 = arith.constant 0 : i32
    %c0_i32_0 = arith.constant 0 : i32
    %c0_i32_1 = arith.constant 0 : i32
    return %c0_i32, %c0_i32_0 : i32, i32
  }
  func.func @transform_13(%arg0: i32) -> (i32, i32) {
    %c0_i32 = arith.constant 0 : i32
    %c0_i32_0 = arith.constant 0 : i32
    %c0_i32_1 = arith.constant 0 : i32
    return %c0_i32, %c0_i32_0 : i32, i32
  }
  func.func @transform_14(%arg0: i32) -> (i32, i32) {
    %c0_i32 = arith.constant 0 : i32
    %c0_i32_0 = arith.constant 0 : i32
    %c0_i32_1 = arith.constant 0 : i32
    return %c0_i32, %c0_i32_0 : i32, i32
  }
  func.func @transform_15(%arg0: i32) -> (i32, i32) {
    %c0_i32 = arith.constant 0 : i32
    %c0_i32_0 = arith.constant 0 : i32
    %c0_i32_1 = arith.constant 0 : i32
    return %c0_i32, %c0_i32_0 : i32, i32
  }
  func.func @transform_16(%arg0: i32) -> (i32, i32) {
    %c0_i32 = arith.constant 0 : i32
    %c0_i32_0 = arith.constant 0 : i32
    %c0_i32_1 = arith.constant 0 : i32
    return %c0_i32, %c0_i32_0 : i32, i32
  }
  func.func @transform_17(%arg0: i32) -> (i32, i32) {
    %c0_i32 = arith.constant 0 : i32
    %c0_i32_0 = arith.constant 0 : i32
    %c0_i32_1 = arith.constant 0 : i32
    return %c0_i32, %c0_i32_0 : i32, i32
  }
  func.func @transform_18(%arg0: i32) -> (i32, i32) {
    %c0_i32 = arith.constant 0 : i32
    %c0_i32_0 = arith.constant 0 : i32
    %c0_i32_1 = arith.constant 0 : i32
    return %c0_i32, %c0_i32_0 : i32, i32
  }
  func.func @transform_19(%arg0: i32) -> (i32, i32) {
    %c0_i32 = arith.constant 0 : i32
    %c0_i32_0 = arith.constant 0 : i32
    %c0_i32_1 = arith.constant 0 : i32
    return %c0_i32, %c0_i32_0 : i32, i32
  }
  func.func @transform_20(%arg0: i32) -> (i32, i32) {
    %c0_i32 = arith.constant 0 : i32
    %c0_i32_0 = arith.constant 0 : i32
    %c0_i32_1 = arith.constant 0 : i32
    return %c0_i32, %c0_i32_0 : i32, i32
  }
  func.func @transform_21(%arg0: i32) -> (i32, i32) {
    %c0_i32 = arith.constant 0 : i32
    %c0_i32_0 = arith.constant 0 : i32
    %c0_i32_1 = arith.constant 0 : i32
    return %c0_i32, %c0_i32_0 : i32, i32
  }
  func.func @transform_22(%arg0: i32) -> (i32, i32) {
    %c0_i32 = arith.constant 0 : i32
    %c0_i32_0 = arith.constant 0 : i32
    return %arg0, %c0_i32 : i32, i32
  }
  func.func @transform_23(%arg0: i32) -> (i32, i32) {
    %c0_i32 = arith.constant 0 : i32
    %c0_i32_0 = arith.constant 0 : i32
    return %arg0, %c0_i32 : i32, i32
  }
  func.func @transform_24(%arg0: i32) -> (i32, i32) {
    %c0_i32 = arith.constant 0 : i32
    %c0_i32_0 = arith.constant 0 : i32
    return %arg0, %c0_i32 : i32, i32
  }
  func.func @transform_25(%arg0: i32) -> (i32, i32) {
    %c0_i32 = arith.constant 0 : i32
    %c0_i32_0 = arith.constant 0 : i32
    return %arg0, %c0_i32 : i32, i32
  }
}

</mosaic_0001>

<llo_original>
// kernel: vae_forward.1
$region0: #{vae_forward.1}
  #allocation0 [shape = 'u32[]', space=smem, size = 0x4, offset = 0x4, fixed_abs, tag = 'smem constant byte address 0x4 - core index']
  #allocation1 [shape = 'u32[144,128]{1,0:T(1,128)}', space=vmem, size = 0x12000, scoped, tag = 'internal scratch']
  %s0 = inlined_call_operand.vmem [shape: f32[32,128], index: 0, kind: input, shape index: {}]
  %s1 = inlined_call_operand.vmem [shape: f32[32,128], index: 1, kind: input, shape index: {}]
  %s2 = inlined_call_operand.vmem [shape: bf16[128,128], index: 2, kind: input, shape index: {}]
  %s3 = inlined_call_operand.vmem [shape: f32[1,128], index: 3, kind: input, shape index: {}]
  %s4 = inlined_call_operand.vmem [shape: bf16[128,128], index: 4, kind: input, shape index: {}]
  %s5 = inlined_call_operand.vmem [shape: f32[1,128], index: 5, kind: input, shape index: {}]
  %s6 = inlined_call_operand.vmem [shape: bf16[128,128], index: 6, kind: input, shape index: {}]
  %s7 = inlined_call_operand.vmem [shape: f32[1,128], index: 7, kind: input, shape index: {}]
  %s8 = inlined_call_operand.vmem [shape: bf16[128,128], index: 8, kind: input, shape index: {}]
  %s9 = inlined_call_operand.vmem [shape: f32[1,128], index: 9, kind: input, shape index: {}]
  %s10 = inlined_call_operand.vmem [shape: bf16[128,256], index: 10, kind: input, shape index: {}]
  %s11 = inlined_call_operand.vmem [shape: f32[1,256], index: 11, kind: input, shape index: {}]
  %s12 = inlined_call_operand.vmem [shape: bf16[128,128], index: 12, kind: input, shape index: {}]
  %s13 = inlined_call_operand.vmem [shape: f32[1,128], index: 13, kind: input, shape index: {}]
  %s14 = inlined_call_operand.vmem [shape: bf16[128,128], index: 14, kind: input, shape index: {}]
  %s15 = inlined_call_operand.vmem [shape: f32[1,128], index: 15, kind: input, shape index: {}]
  %s16 = inlined_call_operand.vmem [shape: bf16[128,128], index: 16, kind: input, shape index: {}]
  %s17 = inlined_call_operand.vmem [shape: f32[1,128], index: 17, kind: input, shape index: {}]
  %s18 = inlined_call_operand.vmem [shape: bf16[128,128], index: 18, kind: input, shape index: {}]
  %s19 = inlined_call_operand.vmem [shape: f32[1,128], index: 19, kind: input, shape index: {}]
  %s20 = inlined_call_operand.vmem [shape: bf16[128,128], index: 20, kind: input, shape index: {}]
  %s21 = inlined_call_operand.vmem [shape: f32[1,128], index: 21, kind: input, shape index: {}]
  %s22 = inlined_call_operand.vmem [shape: f32[16,128], index: 22, kind: output, shape index: {0}]
  %s23 = inlined_call_operand.vmem [shape: f32[32,128], index: 23, kind: output, shape index: {1}]
  %s24 = inlined_call_operand.vmem [shape: f32[32,128], index: 24, kind: output, shape index: {2}]
  %s25 = inlined_call_operand.vmem [shape: f32[32,128], index: 25, kind: output, shape index: {3}]
  %26 = xla_tuple %s22, %s23, %s24, %s25
  %s27 = sld [smem:[#allocation0]]
  $region145: #{vae_forward.1} parent=0
    _
  %s29 = ssub.s32 1, %s27
  %s30 = scalar_select 0, %s29, %s27
  loop: start=0, step=1, limit=4
  $region2: #{vae_forward.1} parent=0 // loop_pre_header
    _
  $region3: #{vae_forward.1} parent=0 // loop_header
    %s32 = sphi 0, %s36
    %p33 = scmp.ge.s32.totalorder %s32, 4
    %s42 = sphi 0, %s44
    %s45 = sphi 0, %s42
    %s46 = sphi 0, %s45
    %s62 = sphi 0, %s46
    %s68 = sphi 0, %s70
    %s71 = sphi 0, %s68
    %s72 = sphi 0, %s71
    %s88 = sphi 0, %s72
    %s92 = sphi 0, %s92
    %s94 = sphi 0, %s92
    %s95 = sphi 0, %s94
    %s109 = sphi 0, %s95
    %s113 = sphi 0, %s113
    %s115 = sphi 0, %s113
    %s116 = sphi 0, %s115
    %s130 = sphi 0, %s116
    %s134 = sphi 0, %s134
    %s136 = sphi 0, %s134
    %s137 = sphi 0, %s136
    %s151 = sphi 0, %s137
    %s155 = sphi 0, %s155
    %s157 = sphi 0, %s155
    %s158 = sphi 0, %s157
    %s172 = sphi 0, %s158
    %s176 = sphi 0, %s176
    %s178 = sphi 0, %s176
    %s179 = sphi 0, %s178
    %s193 = sphi 0, %s179
    %s197 = sphi 0, %s197
    %s199 = sphi 0, %s197
    %s200 = sphi 0, %s199
    %s214 = sphi 0, %s200
    %s218 = sphi 0, %s218
    %s220 = sphi 0, %s218
    %s221 = sphi 0, %s220
    %s235 = sphi 0, %s221
    %s239 = sphi 0, %s239
    %s241 = sphi 0, %s239
    %s242 = sphi 0, %s241
    %s256 = sphi 0, %s242
    %s260 = sphi 0, %s260
    %s262 = sphi 0, %s260
    %s263 = sphi 0, %s262
    %s277 = sphi 0, %s263
    %s281 = sphi 0, %s281
    %s283 = sphi 0, %s281
    %s284 = sphi 0, %s283
    %s298 = sphi 0, %s284
    %s302 = sphi 0, %s302
    %s304 = sphi 0, %s302
    %s305 = sphi 0, %s304
    %s319 = sphi 0, %s305
    %s323 = sphi 0, %s323
    %s325 = sphi 0, %s323
    %s326 = sphi 0, %s325
    %s340 = sphi 0, %s326
    %s344 = sphi 0, %s344
    %s346 = sphi 0, %s344
    %s347 = sphi 0, %s346
    %s361 = sphi 0, %s347
    %s365 = sphi 0, %s365
    %s367 = sphi 0, %s365
    %s368 = sphi 0, %s367
    %s382 = sphi 0, %s368
    %s386 = sphi 0, %s386
    %s388 = sphi 0, %s386
    %s389 = sphi 0, %s388
    %s403 = sphi 0, %s389
    %s407 = sphi 0, %s407
    %s409 = sphi 0, %s407
    %s410 = sphi 0, %s409
    %s424 = sphi 0, %s410
    %s428 = sphi 0, %s428
    %s430 = sphi 0, %s428
    %s431 = sphi 0, %s430
    %s445 = sphi 0, %s431
    %s449 = sphi 0, %s449
    %s451 = sphi 0, %s449
    %s452 = sphi 0, %s451
    %s466 = sphi 0, %s452
    %s470 = sphi 0, %s470
    %s472 = sphi 0, %s470
    %s473 = sphi 0, %s472
    %s487 = sphi 0, %s473
    %s491 = sphi 0, %s491
    %s493 = sphi 0, %s491
    %s494 = sphi 0, %s493
    %s508 = sphi 0, %s494
    %s514 = sphi 0, %s516
    %s517 = sphi 0, %s514
    %s518 = sphi 0, %s517
    %s534 = sphi 0, %s518
    %s540 = sphi 0, %s542
    %s543 = sphi 0, %s540
    %s544 = sphi 0, %s543
    %s560 = sphi 0, %s544
    %s566 = sphi 0, %s568
    %s569 = sphi 0, %s566
    %s570 = sphi 0, %s569
    %s586 = sphi 0, %s570
    %s592 = sphi 0, %s594
    %s595 = sphi 0, %s592
    %s596 = sphi 0, %s595
    %s612 = sphi 0, %s596
  $region4: #{vae_forward.1} parent=0 // loop_header_branch
    %35 = sbr.rel (%p33) target = $region8
  $region5: #{vae_forward.1} parent=0 // loop_body
    %s37 = ssub.s32 %s32, 1
    %s38 = ssub.s32 %s32, 2
    %s39 = sadd.s32 %s32, 1
    %s40 = ssub.s32 %s32, %s39
    %p41 = scmp.eq.s32.totalorder %s40, 0
    %s43 = sadd.s32 %s42, 1
    %s44 = scalar_select %p41, %s42, %s43
    %p47 = pneg %p41
    %p48 = scmp.eq.s32.totalorder %s32, 1
    %p49 = por %p47, %p48
    %p50 = scmp.ne.s32.totalorder %s42, %s45
    %p51 = scmp.eq.s32.totalorder %s32, 0
    %p52 = por %p50, %p51
    %p53 = scmp.ne.s32.totalorder %s42, %s45
    %p54 = scmp.eq.s32.totalorder %s37, 1
    %p55 = por %p53, %p54
    %p56 = scmp.ne.s32.totalorder %s45, %s46
    %p57 = scmp.eq.s32.totalorder %s37, 0
    %p58 = por %p56, %p57
    %p59 = scmp.ne.s32.totalorder %s45, %s46
    %p60 = scmp.eq.s32.totalorder %s38, 1
    %p61 = por %p59, %p60
    %p63 = scmp.ne.s32.totalorder %s46, %s62
    %p64 = scmp.eq.s32.totalorder %s38, 0
    %p65 = por %p63, %p64
    %s66 = ssub.s32 %s32, %s39
    %p67 = scmp.eq.s32.totalorder %s66, 0
    %s69 = sadd.s32 %s68, 1
    %s70 = scalar_select %p67, %s68, %s69
    %p73 = pneg %p67
    %p74 = scmp.eq.s32.totalorder %s32, 1
    %p75 = por %p73, %p74
    %p76 = scmp.ne.s32.totalorder %s68, %s71
    %p77 = scmp.eq.s32.totalorder %s32, 0
    %p78 = por %p76, %p77
    %p79 = scmp.ne.s32.totalorder %s68, %s71
    %p80 = scmp.eq.s32.totalorder %s37, 1
    %p81 = por %p79, %p80
    %p82 = scmp.ne.s32.totalorder %s71, %s72
    %p83 = scmp.eq.s32.totalorder %s37, 0
    %p84 = por %p82, %p83
    %p85 = scmp.ne.s32.totalorder %s71, %s72
    %p86 = scmp.eq.s32.totalorder %s38, 1
    %p87 = por %p85, %p86
    %p89 = scmp.ne.s32.totalorder %s72, %s88
    %p90 = scmp.eq.s32.totalorder %s38, 0
    %p91 = por %p89, %p90
    %s93 = sadd.s32 %s92, 1
    %p96 = scmp.eq.s32.totalorder %s32, 1
    %p97 = scmp.ne.s32.totalorder %s92, %s94
    %p98 = scmp.eq.s32.totalorder %s32, 0
    %p99 = por %p97, %p98
    %p100 = scmp.ne.s32.totalorder %s92, %s94
    %p101 = scmp.eq.s32.totalorder %s37, 1
    %p102 = por %p100, %p101
    %p103 = scmp.ne.s32.totalorder %s94, %s95
    %p104 = scmp.eq.s32.totalorder %s37, 0
    %p105 = por %p103, %p104
    %p106 = scmp.ne.s32.totalorder %s94, %s95
    %p107 = scmp.eq.s32.totalorder %s38, 1
    %p108 = por %p106, %p107
    %p110 = scmp.ne.s32.totalorder %s95, %s109
    %p111 = scmp.eq.s32.totalorder %s38, 0
    %p112 = por %p110, %p111
    %s114 = sadd.s32 %s113, 1
    %p117 = scmp.eq.s32.totalorder %s32, 1
    %p118 = scmp.ne.s32.totalorder %s113, %s115
    %p119 = scmp.eq.s32.totalorder %s32, 0
    %p120 = por %p118, %p119
    %p121 = scmp.ne.s32.totalorder %s113, %s115
    %p122 = scmp.eq.s32.totalorder %s37, 1
    %p123 = por %p121, %p122
    %p124 = scmp.ne.s32.totalorder %s115, %s116
    %p125 = scmp.eq.s32.totalorder %s37, 0
    %p126 = por %p124, %p125
    %p127 = scmp.ne.s32.totalorder %s115, %s116
    %p128 = scmp.eq.s32.totalorder %s38, 1
    %p129 = por %p127, %p128
    %p131 = scmp.ne.s32.totalorder %s116, %s130
    %p132 = scmp.eq.s32.totalorder %s38, 0
    %p133 = por %p131, %p132
    %s135 = sadd.s32 %s134, 1
    %p138 = scmp.eq.s32.totalorder %s32, 1
    %p139 = scmp.ne.s32.totalorder %s134, %s136
    %p140 = scmp.eq.s32.totalorder %s32, 0
    %p141 = por %p139, %p140
    %p142 = scmp.ne.s32.totalorder %s134, %s136
    %p143 = scmp.eq.s32.totalorder %s37, 1
    %p144 = por %p142, %p143
    %p145 = scmp.ne.s32.totalorder %s136, %s137
    %p146 = scmp.eq.s32.totalorder %s37, 0
    %p147 = por %p145, %p146
    %p148 = scmp.ne.s32.totalorder %s136, %s137
    %p149 = scmp.eq.s32.totalorder %s38, 1
    %p150 = por %p148, %p149
    %p152 = scmp.ne.s32.totalorder %s137, %s151
    %p153 = scmp.eq.s32.totalorder %s38, 0
    %p154 = por %p152, %p153
    %s156 = sadd.s32 %s155, 1
    %p159 = scmp.eq.s32.totalorder %s32, 1
    %p160 = scmp.ne.s32.totalorder %s155, %s157
    %p161 = scmp.eq.s32.totalorder %s32, 0
    %p162 = por %p160, %p161
    %p163 = scmp.ne.s32.totalorder %s155, %s157
    %p164 = scmp.eq.s32.totalorder %s37, 1
    %p165 = por %p163, %p164
    %p166 = scmp.ne.s32.totalorder %s157, %s158
    %p167 = scmp.eq.s32.totalorder %s37, 0
    %p168 = por %p166, %p167
    %p169 = scmp.ne.s32.totalorder %s157, %s158
    %p170 = scmp.eq.s32.totalorder %s38, 1
    %p171 = por %p169, %p170
    %p173 = scmp.ne.s32.totalorder %s158, %s172
    %p174 = scmp.eq.s32.totalorder %s38, 0
    %p175 = por %p173, %p174
    %s177 = sadd.s32 %s176, 1
    %p180 = scmp.eq.s32.totalorder %s32, 1
    %p181 = scmp.ne.s32.totalorder %s176, %s178
    %p182 = scmp.eq.s32.totalorder %s32, 0
    %p183 = por %p181, %p182
    %p184 = scmp.ne.s32.totalorder %s176, %s178
    %p185 = scmp.eq.s32.totalorder %s37, 1
    %p186 = por %p184, %p185
    %p187 = scmp.ne.s32.totalorder %s178, %s179
    %p188 = scmp.eq.s32.totalorder %s37, 0
    %p189 = por %p187, %p188
    %p190 = scmp.ne.s32.totalorder %s178, %s179
    %p191 = scmp.eq.s32.totalorder %s38, 1
    %p192 = por %p190, %p191
    %p194 = scmp.ne.s32.totalorder %s179, %s193
    %p195 = scmp.eq.s32.totalorder %s38, 0
    %p196 = por %p194, %p195
    %s198 = sadd.s32 %s197, 1
    %p201 = scmp.eq.s32.totalorder %s32, 1
    %p202 = scmp.ne.s32.totalorder %s197, %s199
    %p203 = scmp.eq.s32.totalorder %s32, 0
    %p204 = por %p202, %p203
    %p205 = scmp.ne.s32.totalorder %s197, %s199
    %p206 = scmp.eq.s32.totalorder %s37, 1
    %p207 = por %p205, %p206
    %p208 = scmp.ne.s32.totalorder %s199, %s200
    %p209 = scmp.eq.s32.totalorder %s37, 0
    %p210 = por %p208, %p209
    %p211 = scmp.ne.s32.totalorder %s199, %s200
    %p212 = scmp.eq.s32.totalorder %s38, 1
    %p213 = por %p211, %p212
    %p215 = scmp.ne.s32.totalorder %s200, %s214
    %p216 = scmp.eq.s32.totalorder %s38, 0
    %p217 = por %p215, %p216
    %s219 = sadd.s32 %s218, 1
    %p222 = scmp.eq.s32.totalorder %s32, 1
    %p223 = scmp.ne.s32.totalorder %s218, %s220
    %p224 = scmp.eq.s32.totalorder %s32, 0
    %p225 = por %p223, %p224
    %p226 = scmp.ne.s32.totalorder %s218, %s220
    %p227 = scmp.eq.s32.totalorder %s37, 1
    %p228 = por %p226, %p227
    %p229 = scmp.ne.s32.totalorder %s220, %s221
    %p230 = scmp.eq.s32.totalorder %s37, 0
    %p231 = por %p229, %p230
    %p232 = scmp.ne.s32.totalorder %s220, %s221
    %p233 = scmp.eq.s32.totalorder %s38, 1
    %p234 = por %p232, %p233
    %p236 = scmp.ne.s32.totalorder %s221, %s235
    %p237 = scmp.eq.s32.totalorder %s38, 0
    %p238 = por %p236, %p237
    %s240 = sadd.s32 %s239, 1
    %p243 = scmp.eq.s32.totalorder %s32, 1
    %p244 = scmp.ne.s32.totalorder %s239, %s241
    %p245 = scmp.eq.s32.totalorder %s32, 0
    %p246 = por %p244, %p245
    %p247 = scmp.ne.s32.totalorder %s239, %s241
    %p248 = scmp.eq.s32.totalorder %s37, 1
    %p249 = por %p247, %p248
    %p250 = scmp.ne.s32.totalorder %s241, %s242
    %p251 = scmp.eq.s32.totalorder %s37, 0
    %p252 = por %p250, %p251
    %p253 = scmp.ne.s32.totalorder %s241, %s242
    %p254 = scmp.eq.s32.totalorder %s38, 1
    %p255 = por %p253, %p254
    %p257 = scmp.ne.s32.totalorder %s242, %s256
    %p258 = scmp.eq.s32.totalorder %s38, 0
    %p259 = por %p257, %p258
    %s261 = sadd.s32 %s260, 1
    %p264 = scmp.eq.s32.totalorder %s32, 1
    %p265 = scmp.ne.s32.totalorder %s260, %s262
    %p266 = scmp.eq.s32.totalorder %s32, 0
    %p267 = por %p265, %p266
    %p268 = scmp.ne.s32.totalorder %s260, %s262
    %p269 = scmp.eq.s32.totalorder %s37, 1
    %p270 = por %p268, %p269
    %p271 = scmp.ne.s32.totalorder %s262, %s263
    %p272 = scmp.eq.s32.totalorder %s37, 0
    %p273 = por %p271, %p272
    %p274 = scmp.ne.s32.totalorder %s262, %s263
    %p275 = scmp.eq.s32.totalorder %s38, 1
    %p276 = por %p274, %p275
    %p278 = scmp.ne.s32.totalorder %s263, %s277
    %p279 = scmp.eq.s32.totalorder %s38, 0
    %p280 = por %p278, %p279
    %s282 = sadd.s32 %s281, 1
    %p285 = scmp.eq.s32.totalorder %s32, 1
    %p286 = scmp.ne.s32.totalorder %s281, %s283
    %p287 = scmp.eq.s32.totalorder %s32, 0
    %p288 = por %p286, %p287
    %p289 = scmp.ne.s32.totalorder %s281, %s283
    %p290 = scmp.eq.s32.totalorder %s37, 1
    %p291 = por %p289, %p290
    %p292 = scmp.ne.s32.totalorder %s283, %s284
    %p293 = scmp.eq.s32.totalorder %s37, 0
    %p294 = por %p292, %p293
    %p295 = scmp.ne.s32.totalorder %s283, %s284
    %p296 = scmp.eq.s32.totalorder %s38, 1
    %p297 = por %p295, %p296
    %p299 = scmp.ne.s32.totalorder %s284, %s298
    %p300 = scmp.eq.s32.totalorder %s38, 0
    %p301 = por %p299, %p300
    %s303 = sadd.s32 %s302, 1
    %p306 = scmp.eq.s32.totalorder %s32, 1
    %p307 = scmp.ne.s32.totalorder %s302, %s304
    %p308 = scmp.eq.s32.totalorder %s32, 0
    %p309 = por %p307, %p308
    %p310 = scmp.ne.s32.totalorder %s302, %s304
    %p311 = scmp.eq.s32.totalorder %s37, 1
    %p312 = por %p310, %p311
    %p313 = scmp.ne.s32.totalorder %s304, %s305
    %p314 = scmp.eq.s32.totalorder %s37, 0
    %p315 = por %p313, %p314
    %p316 = scmp.ne.s32.totalorder %s304, %s305
    %p317 = scmp.eq.s32.totalorder %s38, 1
    %p318 = por %p316, %p317
    %p320 = scmp.ne.s32.totalorder %s305, %s319
    %p321 = scmp.eq.s32.totalorder %s38, 0
    %p322 = por %p320, %p321
    %s324 = sadd.s32 %s323, 1
    %p327 = scmp.eq.s32.totalorder %s32, 1
    %p328 = scmp.ne.s32.totalorder %s323, %s325
    %p329 = scmp.eq.s32.totalorder %s32, 0
    %p330 = por %p328, %p329
    %p331 = scmp.ne.s32.totalorder %s323, %s325
    %p332 = scmp.eq.s32.totalorder %s37, 1
    %p333 = por %p331, %p332
    %p334 = scmp.ne.s32.totalorder %s325, %s326
    %p335 = scmp.eq.s32.totalorder %s37, 0
    %p336 = por %p334, %p335
    %p337 = scmp.ne.s32.totalorder %s325, %s326
    %p338 = scmp.eq.s32.totalorder %s38, 1
    %p339 = por %p337, %p338
    %p341 = scmp.ne.s32.totalorder %s326, %s340
    %p342 = scmp.eq.s32.totalorder %s38, 0
    %p343 = por %p341, %p342
    %s345 = sadd.s32 %s344, 1
    %p348 = scmp.eq.s32.totalorder %s32, 1
    %p349 = scmp.ne.s32.totalorder %s344, %s346
    %p350 = scmp.eq.s32.totalorder %s32, 0
    %p351 = por %p349, %p350
    %p352 = scmp.ne.s32.totalorder %s344, %s346
    %p353 = scmp.eq.s32.totalorder %s37, 1
    %p354 = por %p352, %p353
    %p355 = scmp.ne.s32.totalorder %s346, %s347
    %p356 = scmp.eq.s32.totalorder %s37, 0
    %p357 = por %p355, %p356
    %p358 = scmp.ne.s32.totalorder %s346, %s347
    %p359 = scmp.eq.s32.totalorder %s38, 1
    %p360 = por %p358, %p359
    %p362 = scmp.ne.s32.totalorder %s347, %s361
    %p363 = scmp.eq.s32.totalorder %s38, 0
    %p364 = por %p362, %p363
    %s366 = sadd.s32 %s365, 1
    %p369 = scmp.eq.s32.totalorder %s32, 1
    %p370 = scmp.ne.s32.totalorder %s365, %s367
    %p371 = scmp.eq.s32.totalorder %s32, 0
    %p372 = por %p370, %p371
    %p373 = scmp.ne.s32.totalorder %s365, %s367
    %p374 = scmp.eq.s32.totalorder %s37, 1
    %p375 = por %p373, %p374
    %p376 = scmp.ne.s32.totalorder %s367, %s368
    %p377 = scmp.eq.s32.totalorder %s37, 0
    %p378 = por %p376, %p377
    %p379 = scmp.ne.s32.totalorder %s367, %s368
    %p380 = scmp.eq.s32.totalorder %s38, 1
    %p381 = por %p379, %p380
    %p383 = scmp.ne.s32.totalorder %s368, %s382
    %p384 = scmp.eq.s32.totalorder %s38, 0
    %p385 = por %p383, %p384
    %s387 = sadd.s32 %s386, 1
    %p390 = scmp.eq.s32.totalorder %s32, 1
    %p391 = scmp.ne.s32.totalorder %s386, %s388
    %p392 = scmp.eq.s32.totalorder %s32, 0
    %p393 = por %p391, %p392
    %p394 = scmp.ne.s32.totalorder %s386, %s388
    %p395 = scmp.eq.s32.totalorder %s37, 1
    %p396 = por %p394, %p395
    %p397 = scmp.ne.s32.totalorder %s388, %s389
    %p398 = scmp.eq.s32.totalorder %s37, 0
    %p399 = por %p397, %p398
    %p400 = scmp.ne.s32.totalorder %s388, %s389
    %p401 = scmp.eq.s32.totalorder %s38, 1
    %p402 = por %p400, %p401
    %p404 = scmp.ne.s32.totalorder %s389, %s403
    %p405 = scmp.eq.s32.totalorder %s38, 0
    %p406 = por %p404, %p405
    %s408 = sadd.s32 %s407, 1
    %p411 = scmp.eq.s32.totalorder %s32, 1
    %p412 = scmp.ne.s32.totalorder %s407, %s409
    %p413 = scmp.eq.s32.totalorder %s32, 0
    %p414 = por %p412, %p413
    %p415 = scmp.ne.s32.totalorder %s407, %s409
    %p416 = scmp.eq.s32.totalorder %s37, 1
    %p417 = por %p415, %p416
    %p418 = scmp.ne.s32.totalorder %s409, %s410
    %p419 = scmp.eq.s32.totalorder %s37, 0
    %p420 = por %p418, %p419
    %p421 = scmp.ne.s32.totalorder %s409, %s410
    %p422 = scmp.eq.s32.totalorder %s38, 1
    %p423 = por %p421, %p422
    %p425 = scmp.ne.s32.totalorder %s410, %s424
    %p426 = scmp.eq.s32.totalorder %s38, 0
    %p427 = por %p425, %p426
    %s429 = sadd.s32 %s428, 1
    %p432 = scmp.eq.s32.totalorder %s32, 1
    %p433 = scmp.ne.s32.totalorder %s428, %s430
    %p434 = scmp.eq.s32.totalorder %s32, 0
    %p435 = por %p433, %p434
    %p436 = scmp.ne.s32.totalorder %s428, %s430
    %p437 = scmp.eq.s32.totalorder %s37, 1
    %p438 = por %p436, %p437
    %p439 = scmp.ne.s32.totalorder %s430, %s431
    %p440 = scmp.eq.s32.totalorder %s37, 0
    %p441 = por %p439, %p440
    %p442 = scmp.ne.s32.totalorder %s430, %s431
    %p443 = scmp.eq.s32.totalorder %s38, 1
    %p444 = por %p442, %p443
    %p446 = scmp.ne.s32.totalorder %s431, %s445
    %p447 = scmp.eq.s32.totalorder %s38, 0
    %p448 = por %p446, %p447
    %s450 = sadd.s32 %s449, 1
    %p453 = scmp.eq.s32.totalorder %s32, 1
    %p454 = scmp.ne.s32.totalorder %s449, %s451
    %p455 = scmp.eq.s32.totalorder %s32, 0
    %p456 = por %p454, %p455
    %p457 = scmp.ne.s32.totalorder %s449, %s451
    %p458 = scmp.eq.s32.totalorder %s37, 1
    %p459 = por %p457, %p458
    %p460 = scmp.ne.s32.totalorder %s451, %s452
    %p461 = scmp.eq.s32.totalorder %s37, 0
    %p462 = por %p460, %p461
    %p463 = scmp.ne.s32.totalorder %s451, %s452
    %p464 = scmp.eq.s32.totalorder %s38, 1
    %p465 = por %p463, %p464
    %p467 = scmp.ne.s32.totalorder %s452, %s466
    %p468 = scmp.eq.s32.totalorder %s38, 0
    %p469 = por %p467, %p468
    %s471 = sadd.s32 %s470, 1
    %p474 = scmp.eq.s32.totalorder %s32, 1
    %p475 = scmp.ne.s32.totalorder %s470, %s472
    %p476 = scmp.eq.s32.totalorder %s32, 0
    %p477 = por %p475, %p476
    %p478 = scmp.ne.s32.totalorder %s470, %s472
    %p479 = scmp.eq.s32.totalorder %s37, 1
    %p480 = por %p478, %p479
    %p481 = scmp.ne.s32.totalorder %s472, %s473
    %p482 = scmp.eq.s32.totalorder %s37, 0
    %p483 = por %p481, %p482
    %p484 = scmp.ne.s32.totalorder %s472, %s473
    %p485 = scmp.eq.s32.totalorder %s38, 1
    %p486 = por %p484, %p485
    %p488 = scmp.ne.s32.totalorder %s473, %s487
    %p489 = scmp.eq.s32.totalorder %s38, 0
    %p490 = por %p488, %p489
    %s492 = sadd.s32 %s491, 1
    %p495 = scmp.eq.s32.totalorder %s32, 1
    %p496 = scmp.ne.s32.totalorder %s491, %s493
    %p497 = scmp.eq.s32.totalorder %s32, 0
    %p498 = por %p496, %p497
    %p499 = scmp.ne.s32.totalorder %s491, %s493
    %p500 = scmp.eq.s32.totalorder %s37, 1
    %p501 = por %p499, %p500
    %p502 = scmp.ne.s32.totalorder %s493, %s494
    %p503 = scmp.eq.s32.totalorder %s37, 0
    %p504 = por %p502, %p503
    %p505 = scmp.ne.s32.totalorder %s493, %s494
    %p506 = scmp.eq.s32.totalorder %s38, 1
    %p507 = por %p505, %p506
    %p509 = scmp.ne.s32.totalorder %s494, %s508
    %p510 = scmp.eq.s32.totalorder %s38, 0
    %p511 = por %p509, %p510
    %s512 = ssub.s32 %s32, %s39
    %p513 = scmp.eq.s32.totalorder %s512, 0
    %s515 = sadd.s32 %s514, 1
    %s516 = scalar_select %p513, %s514, %s515
    %p519 = pneg %p513
    %p520 = scmp.eq.s32.totalorder %s32, 1
    %p521 = por %p519, %p520
    %p522 = scmp.ne.s32.totalorder %s514, %s517
    %p523 = scmp.eq.s32.totalorder %s32, 0
    %p524 = por %p522, %p523
    %p525 = scmp.ne.s32.totalorder %s514, %s517
    %p526 = scmp.eq.s32.totalorder %s37, 1
    %p527 = por %p525, %p526
    %p528 = scmp.ne.s32.totalorder %s517, %s518
    %p529 = scmp.eq.s32.totalorder %s37, 0
    %p530 = por %p528, %p529
    %p531 = scmp.ne.s32.totalorder %s517, %s518
    %p532 = scmp.eq.s32.totalorder %s38, 1
    %p533 = por %p531, %p532
    %p535 = scmp.ne.s32.totalorder %s518, %s534
    %p536 = scmp.eq.s32.totalorder %s38, 0
    %p537 = por %p535, %p536
    %s538 = ssub.s32 %s32, %s39
    %p539 = scmp.eq.s32.totalorder %s538, 0
    %s541 = sadd.s32 %s540, 1
    %s542 = scalar_select %p539, %s540, %s541
    %p545 = pneg %p539
    %p546 = scmp.eq.s32.totalorder %s32, 1
    %p547 = por %p545, %p546
    %p548 = scmp.ne.s32.totalorder %s540, %s543
    %p549 = scmp.eq.s32.totalorder %s32, 0
    %p550 = por %p548, %p549
    %p551 = scmp.ne.s32.totalorder %s540, %s543
    %p552 = scmp.eq.s32.totalorder %s37, 1
    %p553 = por %p551, %p552
    %p554 = scmp.ne.s32.totalorder %s543, %s544
    %p555 = scmp.eq.s32.totalorder %s37, 0
    %p556 = por %p554, %p555
    %p557 = scmp.ne.s32.totalorder %s543, %s544
    %p558 = scmp.eq.s32.totalorder %s38, 1
    %p559 = por %p557, %p558
    %p561 = scmp.ne.s32.totalorder %s544, %s560
    %p562 = scmp.eq.s32.totalorder %s38, 0
    %p563 = por %p561, %p562
    %s564 = ssub.s32 %s32, %s39
    %p565 = scmp.eq.s32.totalorder %s564, 0
    %s567 = sadd.s32 %s566, 1
    %s568 = scalar_select %p565, %s566, %s567
    %p571 = pneg %p565
    %p572 = scmp.eq.s32.totalorder %s32, 1
    %p573 = por %p571, %p572
    %p574 = scmp.ne.s32.totalorder %s566, %s569
    %p575 = scmp.eq.s32.totalorder %s32, 0
    %p576 = por %p574, %p575
    %p577 = scmp.ne.s32.totalorder %s566, %s569
    %p578 = scmp.eq.s32.totalorder %s37, 1
    %p579 = por %p577, %p578
    %p580 = scmp.ne.s32.totalorder %s569, %s570
    %p581 = scmp.eq.s32.totalorder %s37, 0
    %p582 = por %p580, %p581
    %p583 = scmp.ne.s32.totalorder %s569, %s570
    %p584 = scmp.eq.s32.totalorder %s38, 1
    %p585 = por %p583, %p584
    %p587 = scmp.ne.s32.totalorder %s570, %s586
    %p588 = scmp.eq.s32.totalorder %s38, 0
    %p589 = por %p587, %p588
    %s590 = ssub.s32 %s32, %s39
    %p591 = scmp.eq.s32.totalorder %s590, 0
    %s593 = sadd.s32 %s592, 1
    %s594 = scalar_select %p591, %s592, %s593
    %p597 = pneg %p591
    %p598 = scmp.eq.s32.totalorder %s32, 1
    %p599 = por %p597, %p598
    %p600 = scmp.ne.s32.totalorder %s592, %s595
    %p601 = scmp.eq.s32.totalorder %s32, 0
    %p602 = por %p600, %p601
    %p603 = scmp.ne.s32.totalorder %s592, %s595
    %p604 = scmp.eq.s32.totalorder %s37, 1
    %p605 = por %p603, %p604
    %p606 = scmp.ne.s32.totalorder %s595, %s596
    %p607 = scmp.eq.s32.totalorder %s37, 0
    %p608 = por %p606, %p607
    %p609 = scmp.ne.s32.totalorder %s595, %s596
    %p610 = scmp.eq.s32.totalorder %s38, 1
    %p611 = por %p609, %p610
    %p613 = scmp.ne.s32.totalorder %s596, %s612
    %p614 = scmp.eq.s32.totalorder %s38, 0
    %p615 = por %p613, %p614
    %p616 = scmp.le.s32.totalorder 1, %s32
    %p617 = scmp.lt.s32.totalorder %s32, 3
    %p618 = pnand %p616, %p617
    %p619 = pneg %p618
    // Predicated region
    $region9: #{vae_forward.1} parent=5 // pred_check
      _
    $region10: #{vae_forward.1} parent=5 // pred_check_branch
      %621 = sbr.rel (%p618) target = $region12
    $region11: #{vae_forward.1} parent=5 // pred_region
      %s622 = ssub.s32 %s32, 1
      // Predicated region
      $region13: #{vae_forward.1} parent=11 // pred_check
        %p623 = pneg %p105
      $region14: #{vae_forward.1} parent=11 // pred_check_branch
        %625 = sbr.rel (%p623) target = $region16
      $region15: #{vae_forward.1} parent=11 // pred_region
        _
      $region16: #{vae_forward.1} parent=11 // pred_fallthru
        _
      // Predicated region
      $region17: #{vae_forward.1} parent=11 // pred_check
        %p626 = pneg %p126
      $region18: #{vae_forward.1} parent=11 // pred_check_branch
        %628 = sbr.rel (%p626) target = $region20
      $region19: #{vae_forward.1} parent=11 // pred_region
        _
      $region20: #{vae_forward.1} parent=11 // pred_fallthru
        _
      // Predicated region
      $region21: #{vae_forward.1} parent=11 // pred_check
        %p629 = pneg %p147
      $region22: #{vae_forward.1} parent=11 // pred_check_branch
        %631 = sbr.rel (%p629) target = $region24
      $region23: #{vae_forward.1} parent=11 // pred_region
        _
      $region24: #{vae_forward.1} parent=11 // pred_fallthru
        _
      // Predicated region
      $region25: #{vae_forward.1} parent=11 // pred_check
        %p632 = pneg %p168
      $region26: #{vae_forward.1} parent=11 // pred_check_branch
        %634 = sbr.rel (%p632) target = $region28
      $region27: #{vae_forward.1} parent=11 // pred_region
        _
      $region28: #{vae_forward.1} parent=11 // pred_fallthru
        _
      // Predicated region
      $region29: #{vae_forward.1} parent=11 // pred_check
        %p635 = pneg %p189
      $region30: #{vae_forward.1} parent=11 // pred_check_branch
        %637 = sbr.rel (%p635) target = $region32
      $region31: #{vae_forward.1} parent=11 // pred_region
        _
      $region32: #{vae_forward.1} parent=11 // pred_fallthru
        _
      // Predicated region
      $region33: #{vae_forward.1} parent=11 // pred_check
        %p638 = pneg %p210
      $region34: #{vae_forward.1} parent=11 // pred_check_branch
        %640 = sbr.rel (%p638) target = $region36
      $region35: #{vae_forward.1} parent=11 // pred_region
        _
      $region36: #{vae_forward.1} parent=11 // pred_fallthru
        _
      // Predicated region
      $region37: #{vae_forward.1} parent=11 // pred_check
        %p641 = pneg %p231
      $region38: #{vae_forward.1} parent=11 // pred_check_branch
        %643 = sbr.rel (%p641) target = $region40
      $region39: #{vae_forward.1} parent=11 // pred_region
        _
      $region40: #{vae_forward.1} parent=11 // pred_fallthru
        _
      // Predicated region
      $region41: #{vae_forward.1} parent=11 // pred_check
        %p644 = pneg %p252
      $region42: #{vae_forward.1} parent=11 // pred_check_branch
        %646 = sbr.rel (%p644) target = $region44
      $region43: #{vae_forward.1} parent=11 // pred_region
        _
      $region44: #{vae_forward.1} parent=11 // pred_fallthru
        _
      // Predicated region
      $region45: #{vae_forward.1} parent=11 // pred_check
        %p647 = pneg %p273
      $region46: #{vae_forward.1} parent=11 // pred_check_branch
        %649 = sbr.rel (%p647) target = $region48
      $region47: #{vae_forward.1} parent=11 // pred_region
        _
      $region48: #{vae_forward.1} parent=11 // pred_fallthru
        _
      // Predicated region
      $region49: #{vae_forward.1} parent=11 // pred_check
        %p650 = pneg %p294
      $region50: #{vae_forward.1} parent=11 // pred_check_branch
        %652 = sbr.rel (%p650) target = $region52
      $region51: #{vae_forward.1} parent=11 // pred_region
        _
      $region52: #{vae_forward.1} parent=11 // pred_fallthru
        _
      // Predicated region
      $region53: #{vae_forward.1} parent=11 // pred_check
        %p653 = pneg %p315
      $region54: #{vae_forward.1} parent=11 // pred_check_branch
        %655 = sbr.rel (%p653) target = $region56
      $region55: #{vae_forward.1} parent=11 // pred_region
        _
      $region56: #{vae_forward.1} parent=11 // pred_fallthru
        _
      // Predicated region
      $region57: #{vae_forward.1} parent=11 // pred_check
        %p656 = pneg %p336
      $region58: #{vae_forward.1} parent=11 // pred_check_branch
        %658 = sbr.rel (%p656) target = $region60
      $region59: #{vae_forward.1} parent=11 // pred_region
        _
      $region60: #{vae_forward.1} parent=11 // pred_fallthru
        _
      // Predicated region
      $region61: #{vae_forward.1} parent=11 // pred_check
        %p659 = pneg %p357
      $region62: #{vae_forward.1} parent=11 // pred_check_branch
        %661 = sbr.rel (%p659) target = $region64
      $region63: #{vae_forward.1} parent=11 // pred_region
        _
      $region64: #{vae_forward.1} parent=11 // pred_fallthru
        _
      // Predicated region
      $region65: #{vae_forward.1} parent=11 // pred_check
        %p662 = pneg %p378
      $region66: #{vae_forward.1} parent=11 // pred_check_branch
        %664 = sbr.rel (%p662) target = $region68
      $region67: #{vae_forward.1} parent=11 // pred_region
        _
      $region68: #{vae_forward.1} parent=11 // pred_fallthru
        _
      // Predicated region
      $region69: #{vae_forward.1} parent=11 // pred_check
        %p665 = pneg %p399
      $region70: #{vae_forward.1} parent=11 // pred_check_branch
        %667 = sbr.rel (%p665) target = $region72
      $region71: #{vae_forward.1} parent=11 // pred_region
        _
      $region72: #{vae_forward.1} parent=11 // pred_fallthru
        _
      // Predicated region
      $region73: #{vae_forward.1} parent=11 // pred_check
        %p668 = pneg %p420
      $region74: #{vae_forward.1} parent=11 // pred_check_branch
        %670 = sbr.rel (%p668) target = $region76
      $region75: #{vae_forward.1} parent=11 // pred_region
        _
      $region76: #{vae_forward.1} parent=11 // pred_fallthru
        _
      // Predicated region
      $region77: #{vae_forward.1} parent=11 // pred_check
        %p671 = pneg %p441
      $region78: #{vae_forward.1} parent=11 // pred_check_branch
        %673 = sbr.rel (%p671) target = $region80
      $region79: #{vae_forward.1} parent=11 // pred_region
        _
      $region80: #{vae_forward.1} parent=11 // pred_fallthru
        _
      // Predicated region
      $region81: #{vae_forward.1} parent=11 // pred_check
        %p674 = pneg %p462
      $region82: #{vae_forward.1} parent=11 // pred_check_branch
        %676 = sbr.rel (%p674) target = $region84
      $region83: #{vae_forward.1} parent=11 // pred_region
        _
      $region84: #{vae_forward.1} parent=11 // pred_fallthru
        _
      // Predicated region
      $region85: #{vae_forward.1} parent=11 // pred_check
        %p677 = pneg %p483
      $region86: #{vae_forward.1} parent=11 // pred_check_branch
        %679 = sbr.rel (%p677) target = $region88
      $region87: #{vae_forward.1} parent=11 // pred_region
        _
      $region88: #{vae_forward.1} parent=11 // pred_fallthru
        _
      // Predicated region
      $region89: #{vae_forward.1} parent=11 // pred_check
        %p680 = pneg %p504
      $region90: #{vae_forward.1} parent=11 // pred_check_branch
        %682 = sbr.rel (%p680) target = $region92
      $region91: #{vae_forward.1} parent=11 // pred_region
        _
      $region92: #{vae_forward.1} parent=11 // pred_fallthru
        _
    $region12: #{vae_forward.1} parent=5 // pred_fallthru
      _
    %p683 = scmp.lt.s32.totalorder %s32, 2
    // Predicated region
    $region93: #{vae_forward.1} parent=5 // pred_check
      %p684 = pneg %p683
    $region94: #{vae_forward.1} parent=5 // pred_check_branch
      %686 = sbr.rel (%p684) target = $region96
    $region95: #{vae_forward.1} parent=5 // pred_region
      // Predicated region
      $region97: #{vae_forward.1} parent=95 // pred_check
        %p687 = pneg %p52
      $region98: #{vae_forward.1} parent=95 // pred_check_branch
        %689 = sbr.rel (%p687) target = $region100
      $region99: #{vae_forward.1} parent=95 // pred_region
        %s690 = smul.u32 2, %s32
        %p691 = scmp.lt.s32.totalorder %s690, 3
        %s692 = scalar_select %p691, %s690, 3
        %s693 = smul.addr %s692, 8
        %s694 = scalar_lea.vmem %s0, %s693
        %s695 = smul.u32 2, %s32
      $region100: #{vae_forward.1} parent=95 // pred_fallthru
        _
      // Predicated region
      $region101: #{vae_forward.1} parent=95 // pred_check
        %p696 = pneg %p78
      $region102: #{vae_forward.1} parent=95 // pred_check_branch
        %698 = sbr.rel (%p696) target = $region104
      $region103: #{vae_forward.1} parent=95 // pred_region
        %s699 = smul.u32 2, %s32
        %p700 = scmp.lt.s32.totalorder %s699, 3
        %s701 = scalar_select %p700, %s699, 3
        %s702 = smul.addr %s701, 8
        %s703 = scalar_lea.vmem %s1, %s702
        %s704 = smul.u32 2, %s32
      $region104: #{vae_forward.1} parent=95 // pred_fallthru
        _
    $region96: #{vae_forward.1} parent=5 // pred_fallthru
      _
    %p705 = scmp.le.s32.totalorder 1, %s32
    %p706 = scmp.lt.s32.totalorder %s32, 3
    %p707 = pnand %p705, %p706
    %p708 = pneg %p707
    // Predicated region
    $region105: #{vae_forward.1} parent=5 // pred_check
      _
    $region106: #{vae_forward.1} parent=5 // pred_check_branch
      %710 = sbr.rel (%p707) target = $region108
    $region107: #{vae_forward.1} parent=5 // pred_region
      %s711 = ssub.s32 %s32, 1
      %s712 = smul.u32 2, %s37
      %p713 = scmp.lt.s32.totalorder %s712, 3
      %s714 = scalar_select %p713, %s712, 3
      %s715 = smul.addr %s714, 8
      %s716 = scalar_lea.vmem %s0, %s715
      %p717 = pneg %p58
      %p718 = pneg %p55
      %s719 = smul.u32 2, %s37
      %p720 = scmp.lt.s32.totalorder %s719, 3
      %s721 = scalar_select %p720, %s719, 3
      %s722 = smul.addr %s721, 8
      %s723 = scalar_lea.vmem %s1, %s722
      %p724 = pneg %p84
      %p725 = pneg %p81
      %p726 = pneg %p105
      %p727 = pneg %p102
      %p728 = pneg %p126
      %p729 = pneg %p123
      %p730 = pneg %p147
      %p731 = pneg %p144
      %p732 = pneg %p168
      %p733 = pneg %p165
      %p734 = pneg %p189
      %p735 = pneg %p186
      %p736 = pneg %p210
      %p737 = pneg %p207
      %p738 = pneg %p231
      %p739 = pneg %p228
      %p740 = pneg %p252
      %p741 = pneg %p249
      %p742 = pneg %p273
      %p743 = pneg %p270
      %p744 = pneg %p294
      %p745 = pneg %p291
      %p746 = pneg %p315
      %p747 = pneg %p312
      %p748 = pneg %p336
      %p749 = pneg %p333
      %p750 = pneg %p357
      %p751 = pneg %p354
      %p752 = pneg %p378
      %p753 = pneg %p375
      %p754 = pneg %p399
      %p755 = pneg %p396
      %p756 = pneg %p420
      %p757 = pneg %p417
      %p758 = pneg %p441
      %p759 = pneg %p438
      %p760 = pneg %p462
      %p761 = pneg %p459
      %p762 = pneg %p483
      %p763 = pneg %p480
      %p764 = pneg %p504
      %p765 = pneg %p501
      %p766 = pneg %p530
      %p767 = pneg %p527
      %p768 = scmp.lt.s32.totalorder %s37, 1
      %s769 = scalar_select %p768, %s37, 1
      %s770 = smul.addr %s769, 8
      %s771 = scalar_lea.vmem %s22, %s770
      %p772 = pneg %p556
      %p773 = pneg %p553
      %s774 = smul.u32 2, %s37
      %p775 = scmp.lt.s32.totalorder %s774, 3
      %s776 = scalar_select %p775, %s774, 3
      %s777 = smul.addr %s776, 8
      %s778 = scalar_lea.vmem %s23, %s777
      %p779 = pneg %p582
      %p780 = pneg %p579
      %s781 = smul.u32 2, %s37
      %p782 = scmp.lt.s32.totalorder %s781, 3
      %s783 = scalar_select %p782, %s781, 3
      %s784 = smul.addr %s783, 8
      %s785 = scalar_lea.vmem %s24, %s784
      %p786 = pneg %p608
      %p787 = pneg %p605
      %s788 = smul.u32 2, %s37
      %p789 = scmp.lt.s32.totalorder %s788, 3
      %s790 = scalar_select %p789, %s788, 3
      %s791 = smul.addr %s790, 8
      %s792 = scalar_lea.vmem %s25, %s791
      %s793 = smul.u32 2, %s37
      %p794 = scmp.lt.s32.totalorder %s793, 3
      %s795 = scalar_select %p794, %s793, 3
      %s796 = smul.addr %s795, 8
      %s797 = scalar_lea.vmem %s0, %s796
      %s798 = smul.u32 2, %s37
      %s799 = smul.u32 2, %s37
      %p800 = scmp.lt.s32.totalorder %s799, 3
      %s801 = scalar_select %p800, %s799, 3
      %s802 = smul.addr %s801, 8
      %s803 = scalar_lea.vmem %s1, %s802
      %s804 = smul.u32 2, %s37
      %p805 = scmp.lt.s32.totalorder %s37, 1
      %s806 = scalar_select %p805, %s37, 1
      %s807 = smul.addr %s806, 8
      %s808 = scalar_lea.vmem %s22, %s807
      %s809 = smul.u32 2, %s37
      %p810 = scmp.lt.s32.totalorder %s809, 3
      %s811 = scalar_select %p810, %s809, 3
      %s812 = smul.addr %s811, 8
      %s813 = scalar_lea.vmem %s23, %s812
      %s814 = smul.u32 2, %s37
      %s815 = smul.u32 2, %s37
      %p816 = scmp.lt.s32.totalorder %s815, 3
      %s817 = scalar_select %p816, %s815, 3
      %s818 = smul.addr %s817, 8
      %s819 = scalar_lea.vmem %s24, %s818
      %s820 = smul.u32 2, %s37
      %s821 = smul.u32 2, %s37
      %p822 = scmp.lt.s32.totalorder %s821, 3
      %s823 = scalar_select %p822, %s821, 3
      %s824 = smul.addr %s823, 8
      %s825 = scalar_lea.vmem %s25, %s824
      %s826 = smul.u32 2, %s37
      %v828 = vld [vmem:[%s797] sm:$0xff]
      %v829 = vld [vmem:[%s797 + $0x8] sm:$0xff]
      %v830 = vld [vmem:[%s803] sm:$0xff]
      %v831 = vld [vmem:[%s803 + $0x8] sm:$0xff]
      %v832 = vld [vmem:[%s3] sm:$0x1]
      %v833 = vpack.c.bf16 %v829, %v828
      %v834 = vld [vmem:[%s2] sm:$0xf]
      %v835 = vld [vmem:[%s2 + $0x4] sm:$0xf]
      %v836 = vld [vmem:[%s2 + $0x8] sm:$0xf]
      %v837 = vld [vmem:[%s2 + $0xc] sm:$0xf]
      %v838 = vld [vmem:[%s2 + $0x10] sm:$0xf]
      %v839 = vld [vmem:[%s2 + $0x14] sm:$0xf]
      %v840 = vld [vmem:[%s2 + $0x18] sm:$0xf]
      %v841 = vld [vmem:[%s2 + $0x1c] sm:$0xf]
      %v842 = vld [vmem:[%s2 + $0x20] sm:$0xf]
      %v843 = vld [vmem:[%s2 + $0x24] sm:$0xf]
      %v844 = vld [vmem:[%s2 + $0x28] sm:$0xf]
      %v845 = vld [vmem:[%s2 + $0x2c] sm:$0xf]
      %v846 = vld [vmem:[%s2 + $0x30] sm:$0xf]
      %v847 = vld [vmem:[%s2 + $0x34] sm:$0xf]
      %v848 = vld [vmem:[%s2 + $0x38] sm:$0xf]
      %v849 = vld [vmem:[%s2 + $0x3c] sm:$0xf]
      %v851 = vlaneseq
      %v852 = vshrl.u32 %v851, 7
      %v853 = vsub.s32 0, %v852
      %v854 = vrot.slane %v832, %v853
      %v872 = vunpack.c.l.b16 %v834
      %v873 = vunpack.c.l.b16 %v835
      %v874 = vunpack.c.l.b16 %v836
      %v875 = vunpack.c.l.b16 %v837
      %v876 = vunpack.c.l.b16 %v838
      %v877 = vunpack.c.l.b16 %v839
      %v878 = vunpack.c.l.b16 %v840
      %v879 = vunpack.c.l.b16 %v841
      %v880 = vunpack.c.l.b16 %v842
      %v881 = vunpack.c.l.b16 %v843
      %v882 = vunpack.c.l.b16 %v844
      %v883 = vunpack.c.l.b16 %v845
      %v884 = vunpack.c.l.b16 %v846
      %v885 = vunpack.c.l.b16 %v847
      %v886 = vunpack.c.l.b16 %v848
      %v887 = vunpack.c.l.b16 %v849
      %v888 = vpack.c.b16 %v873, %v872
      %v889 = vpack.c.b16 %v875, %v874
      %v890 = vpack.c.b16 %v877, %v876
      %v891 = vpack.c.b16 %v879, %v878
      %v892 = vpack.c.b16 %v881, %v880
      %v893 = vpack.c.b16 %v883, %v882
      %v894 = vpack.c.b16 %v885, %v884
      %v895 = vpack.c.b16 %v887, %v886
      %904 = vmatprep.subr.bf16.mxu0 0
      %905 = vmatpush1.bf16.msra.mxu0 %v895
      %906 = vmatprep.subr.bf16.mxu0 0
      %907 = vmatpush1.bf16.msra.mxu0 %v894
      %908 = vmatprep.subr.bf16.mxu0 0
      %909 = vmatpush1.bf16.msra.mxu0 %v893
      %910 = vmatprep.subr.bf16.mxu0 0
      %911 = vmatpush1.bf16.msra.mxu0 %v892
      %912 = vmatprep.subr.bf16.mxu0 0
      %913 = vmatpush1.bf16.msra.mxu0 %v891
      %914 = vmatprep.subr.bf16.mxu0 0
      %915 = vmatpush1.bf16.msra.mxu0 %v890
      %916 = vmatprep.subr.bf16.mxu0 0
      %917 = vmatpush1.bf16.msra.mxu0 %v889
      %918 = vmatprep.subr.bf16.mxu0 0
      %919 = vmatpush1.bf16.msra.mxu0 %v888
      %920 = vmatprep.subr.bf16.mxu0 0
      %921 = vmatpush2.bf16.msra.mxu0 0
      %922 = vmatprep.subr.bf16.mxu0 0
      %923 = vmatpush2.bf16.msra.mxu0 0
      %924 = vmatprep.subr.bf16.mxu0 0
      %925 = vmatpush2.bf16.msra.mxu0 0
      %926 = vmatprep.subr.bf16.mxu0 0
      %927 = vmatpush2.bf16.msra.mxu0 0
      %928 = vmatprep.subr.bf16.mxu0 0
      %929 = vmatpush2.bf16.msra.mxu0 0
      %930 = vmatprep.subr.bf16.mxu0 0
      %931 = vmatpush2.bf16.msra.mxu0 0
      %932 = vmatprep.subr.bf16.mxu0 0
      %933 = vmatpush2.bf16.msra.mxu0 0
      %934 = vmatprep.subr.bf16.mxu0 0
      %935 = vmatpush2.bf16.msra.mxu0 0
      %936 = vmatprep.mubr.bf16.mxu0 0
      %937 = vmatmul.mubr.bf16.gmra.mxu0 %v833
      %v938 = vpop.f32.mrf.mxu0
      %v939 = vadd.f32 %v854, %v938
      %v940 = vpop.f32.mrf.mxu0
      %v941 = vpop.f32.mrf.mxu0
      %v942 = vadd.f32 %v854, %v941
      %v943 = vpop.f32.mrf.mxu0
      %944 = vdwg.mxu0
      %v945 = vmax.f32 %v939, 0.0
      %v946 = vmax.f32 %v942, 0.0
      %v947 = vld [vmem:[%s5] sm:$0x1]
      %v948 = vpack.c.bf16 %v946, %v945
      %v949 = vld [vmem:[%s4] sm:$0xf]
      %v950 = vld [vmem:[%s4 + $0x4] sm:$0xf]
      %v951 = vld [vmem:[%s4 + $0x8] sm:$0xf]
      %v952 = vld [vmem:[%s4 + $0xc] sm:$0xf]
      %v953 = vld [vmem:[%s4 + $0x10] sm:$0xf]
      %v954 = vld [vmem:[%s4 + $0x14] sm:$0xf]
      %v955 = vld [vmem:[%s4 + $0x18] sm:$0xf]
      %v956 = vld [vmem:[%s4 + $0x1c] sm:$0xf]
      %v957 = vld [vmem:[%s4 + $0x20] sm:$0xf]
      %v958 = vld [vmem:[%s4 + $0x24] sm:$0xf]
      %v959 = vld [vmem:[%s4 + $0x28] sm:$0xf]
      %v960 = vld [vmem:[%s4 + $0x2c] sm:$0xf]
      %v961 = vld [vmem:[%s4 + $0x30] sm:$0xf]
      %v962 = vld [vmem:[%s4 + $0x34] sm:$0xf]
      %v963 = vld [vmem:[%s4 + $0x38] sm:$0xf]
      %v964 = vld [vmem:[%s4 + $0x3c] sm:$0xf]
      %v966 = vlaneseq
      %v967 = vshrl.u32 %v966, 7
      %v968 = vsub.s32 0, %v967
      %v969 = vrot.slane %v947, %v968
      %v987 = vunpack.c.l.b16 %v949
      %v988 = vunpack.c.l.b16 %v950
      %v989 = vunpack.c.l.b16 %v951
      %v990 = vunpack.c.l.b16 %v952
      %v991 = vunpack.c.l.b16 %v953
      %v992 = vunpack.c.l.b16 %v954
      %v993 = vunpack.c.l.b16 %v955
      %v994 = vunpack.c.l.b16 %v956
      %v995 = vunpack.c.l.b16 %v957
      %v996 = vunpack.c.l.b16 %v958
      %v997 = vunpack.c.l.b16 %v959
      %v998 = vunpack.c.l.b16 %v960
      %v999 = vunpack.c.l.b16 %v961
      %v1000 = vunpack.c.l.b16 %v962
      %v1001 = vunpack.c.l.b16 %v963
      %v1002 = vunpack.c.l.b16 %v964
      %v1003 = vpack.c.b16 %v988, %v987
      %v1004 = vpack.c.b16 %v990, %v989
      %v1005 = vpack.c.b16 %v992, %v991
      %v1006 = vpack.c.b16 %v994, %v993
      %v1007 = vpack.c.b16 %v996, %v995
      %v1008 = vpack.c.b16 %v998, %v997
      %v1009 = vpack.c.b16 %v1000, %v999
      %v1010 = vpack.c.b16 %v1002, %v1001
      %1019 = vmatprep.subr.bf16.mxu0 0
      %1020 = vmatpush1.bf16.msra.mxu0 %v1010
      %1021 = vmatprep.subr.bf16.mxu0 0
      %1022 = vmatpush1.bf16.msra.mxu0 %v1009
      %1023 = vmatprep.subr.bf16.mxu0 0
      %1024 = vmatpush1.bf16.msra.mxu0 %v1008
      %1025 = vmatprep.subr.bf16.mxu0 0
      %1026 = vmatpush1.bf16.msra.mxu0 %v1007
      %1027 = vmatprep.subr.bf16.mxu0 0
      %1028 = vmatpush1.bf16.msra.mxu0 %v1006
      %1029 = vmatprep.subr.bf16.mxu0 0
      %1030 = vmatpush1.bf16.msra.mxu0 %v1005
      %1031 = vmatprep.subr.bf16.mxu0 0
      %1032 = vmatpush1.bf16.msra.mxu0 %v1004
      %1033 = vmatprep.subr.bf16.mxu0 0
      %1034 = vmatpush1.bf16.msra.mxu0 %v1003
      %1035 = vmatprep.subr.bf16.mxu0 0
      %1036 = vmatpush2.bf16.msra.mxu0 0
      %1037 = vmatprep.subr.bf16.mxu0 0
      %1038 = vmatpush2.bf16.msra.mxu0 0
      %1039 = vmatprep.subr.bf16.mxu0 0
      %1040 = vmatpush2.bf16.msra.mxu0 0
      %1041 = vmatprep.subr.bf16.mxu0 0
      %1042 = vmatpush2.bf16.msra.mxu0 0
      %1043 = vmatprep.subr.bf16.mxu0 0
      %1044 = vmatpush2.bf16.msra.mxu0 0
      %1045 = vmatprep.subr.bf16.mxu0 0
      %1046 = vmatpush2.bf16.msra.mxu0 0
      %1047 = vmatprep.subr.bf16.mxu0 0
      %1048 = vmatpush2.bf16.msra.mxu0 0
      %1049 = vmatprep.subr.bf16.mxu0 0
      %1050 = vmatpush2.bf16.msra.mxu0 0
      %1051 = vmatprep.mubr.bf16.mxu0 0
      %1052 = vmatmul.mubr.bf16.gmra.mxu0 %v948
      %v1053 = vpop.f32.mrf.mxu0
      %v1054 = vadd.f32 %v969, %v1053
      %v1055 = vpop.f32.mrf.mxu0
      %v1056 = vpop.f32.mrf.mxu0
      %v1057 = vadd.f32 %v969, %v1056
      %v1058 = vpop.f32.mrf.mxu0
      %1059 = vdwg.mxu0
      %v1060 = vmax.f32 %v1054, 0.0
      %v1061 = vmax.f32 %v1057, 0.0
      %v1062 = vld [vmem:[%s7] sm:$0x1]
      %v1063 = vpack.c.bf16 %v1061, %v1060
      %v1064 = vld [vmem:[%s6] sm:$0xf]
      %v1065 = vld [vmem:[%s6 + $0x4] sm:$0xf]
      %v1066 = vld [vmem:[%s6 + $0x8] sm:$0xf]
      %v1067 = vld [vmem:[%s6 + $0xc] sm:$0xf]
      %v1068 = vld [vmem:[%s6 + $0x10] sm:$0xf]
      %v1069 = vld [vmem:[%s6 + $0x14] sm:$0xf]
      %v1070 = vld [vmem:[%s6 + $0x18] sm:$0xf]
      %v1071 = vld [vmem:[%s6 + $0x1c] sm:$0xf]
      %v1072 = vld [vmem:[%s6 + $0x20] sm:$0xf]
      %v1073 = vld [vmem:[%s6 + $0x24] sm:$0xf]
      %v1074 = vld [vmem:[%s6 + $0x28] sm:$0xf]
      %v1075 = vld [vmem:[%s6 + $0x2c] sm:$0xf]
      %v1076 = vld [vmem:[%s6 + $0x30] sm:$0xf]
      %v1077 = vld [vmem:[%s6 + $0x34] sm:$0xf]
      %v1078 = vld [vmem:[%s6 + $0x38] sm:$0xf]
      %v1079 = vld [vmem:[%s6 + $0x3c] sm:$0xf]
      %v1081 = vlaneseq
      %v1082 = vshrl.u32 %v1081, 7
      %v1083 = vsub.s32 0, %v1082
      %v1084 = vrot.slane %v1062, %v1083
      %v1102 = vunpack.c.l.b16 %v1064
      %v1103 = vunpack.c.l.b16 %v1065
      %v1104 = vunpack.c.l.b16 %v1066
      %v1105 = vunpack.c.l.b16 %v1067
      %v1106 = vunpack.c.l.b16 %v1068
      %v1107 = vunpack.c.l.b16 %v1069
      %v1108 = vunpack.c.l.b16 %v1070
      %v1109 = vunpack.c.l.b16 %v1071
      %v1110 = vunpack.c.l.b16 %v1072
      %v1111 = vunpack.c.l.b16 %v1073
      %v1112 = vunpack.c.l.b16 %v1074
      %v1113 = vunpack.c.l.b16 %v1075
      %v1114 = vunpack.c.l.b16 %v1076
      %v1115 = vunpack.c.l.b16 %v1077
      %v1116 = vunpack.c.l.b16 %v1078
      %v1117 = vunpack.c.l.b16 %v1079
      %v1118 = vpack.c.b16 %v1103, %v1102
      %v1119 = vpack.c.b16 %v1105, %v1104
      %v1120 = vpack.c.b16 %v1107, %v1106
      %v1121 = vpack.c.b16 %v1109, %v1108
      %v1122 = vpack.c.b16 %v1111, %v1110
      %v1123 = vpack.c.b16 %v1113, %v1112
      %v1124 = vpack.c.b16 %v1115, %v1114
      %v1125 = vpack.c.b16 %v1117, %v1116
      %1134 = vmatprep.subr.bf16.mxu0 0
      %1135 = vmatpush1.bf16.msra.mxu0 %v1125
      %1136 = vmatprep.subr.bf16.mxu0 0
      %1137 = vmatpush1.bf16.msra.mxu0 %v1124
      %1138 = vmatprep.subr.bf16.mxu0 0
      %1139 = vmatpush1.bf16.msra.mxu0 %v1123
      %1140 = vmatprep.subr.bf16.mxu0 0
      %1141 = vmatpush1.bf16.msra.mxu0 %v1122
      %1142 = vmatprep.subr.bf16.mxu0 0
      %1143 = vmatpush1.bf16.msra.mxu0 %v1121
      %1144 = vmatprep.subr.bf16.mxu0 0
      %1145 = vmatpush1.bf16.msra.mxu0 %v1120
      %1146 = vmatprep.subr.bf16.mxu0 0
      %1147 = vmatpush1.bf16.msra.mxu0 %v1119
      %1148 = vmatprep.subr.bf16.mxu0 0
      %1149 = vmatpush1.bf16.msra.mxu0 %v1118
      %1150 = vmatprep.subr.bf16.mxu0 0
      %1151 = vmatpush2.bf16.msra.mxu0 0
      %1152 = vmatprep.subr.bf16.mxu0 0
      %1153 = vmatpush2.bf16.msra.mxu0 0
      %1154 = vmatprep.subr.bf16.mxu0 0
      %1155 = vmatpush2.bf16.msra.mxu0 0
      %1156 = vmatprep.subr.bf16.mxu0 0
      %1157 = vmatpush2.bf16.msra.mxu0 0
      %1158 = vmatprep.subr.bf16.mxu0 0
      %1159 = vmatpush2.bf16.msra.mxu0 0
      %1160 = vmatprep.subr.bf16.mxu0 0
      %1161 = vmatpush2.bf16.msra.mxu0 0
      %1162 = vmatprep.subr.bf16.mxu0 0
      %1163 = vmatpush2.bf16.msra.mxu0 0
      %1164 = vmatprep.subr.bf16.mxu0 0
      %1165 = vmatpush2.bf16.msra.mxu0 0
      %1166 = vmatprep.mubr.bf16.mxu0 0
      %1167 = vmatmul.mubr.bf16.gmra.mxu0 %v1063
      %v1168 = vpop.f32.mrf.mxu0
      %v1169 = vadd.f32 %v1084, %v1168
      %v1170 = vpop.f32.mrf.mxu0
      %v1171 = vpop.f32.mrf.mxu0
      %v1172 = vadd.f32 %v1084, %v1171
      %v1173 = vpop.f32.mrf.mxu0
      %1174 = vdwg.mxu0
      %v1175 = vmax.f32 %v1169, 0.0
      %v1176 = vmax.f32 %v1172, 0.0
      %v1177 = vld [vmem:[%s9] sm:$0x1]
      %v1178 = vpack.c.bf16 %v1176, %v1175
      %v1179 = vld [vmem:[%s8] sm:$0xf]
      %v1180 = vld [vmem:[%s8 + $0x4] sm:$0xf]
      %v1181 = vld [vmem:[%s8 + $0x8] sm:$0xf]
      %v1182 = vld [vmem:[%s8 + $0xc] sm:$0xf]
      %v1183 = vld [vmem:[%s8 + $0x10] sm:$0xf]
      %v1184 = vld [vmem:[%s8 + $0x14] sm:$0xf]
      %v1185 = vld [vmem:[%s8 + $0x18] sm:$0xf]
      %v1186 = vld [vmem:[%s8 + $0x1c] sm:$0xf]
      %v1187 = vld [vmem:[%s8 + $0x20] sm:$0xf]
      %v1188 = vld [vmem:[%s8 + $0x24] sm:$0xf]
      %v1189 = vld [vmem:[%s8 + $0x28] sm:$0xf]
      %v1190 = vld [vmem:[%s8 + $0x2c] sm:$0xf]
      %v1191 = vld [vmem:[%s8 + $0x30] sm:$0xf]
      %v1192 = vld [vmem:[%s8 + $0x34] sm:$0xf]
      %v1193 = vld [vmem:[%s8 + $0x38] sm:$0xf]
      %v1194 = vld [vmem:[%s8 + $0x3c] sm:$0xf]
      %v1196 = vlaneseq
      %v1197 = vshrl.u32 %v1196, 7
      %v1198 = vsub.s32 0, %v1197
      %v1199 = vrot.slane %v1177, %v1198
      %v1217 = vunpack.c.l.b16 %v1179
      %v1218 = vunpack.c.l.b16 %v1180
      %v1219 = vunpack.c.l.b16 %v1181
      %v1220 = vunpack.c.l.b16 %v1182
      %v1221 = vunpack.c.l.b16 %v1183
      %v1222 = vunpack.c.l.b16 %v1184
      %v1223 = vunpack.c.l.b16 %v1185
      %v1224 = vunpack.c.l.b16 %v1186
      %v1225 = vunpack.c.l.b16 %v1187
      %v1226 = vunpack.c.l.b16 %v1188
      %v1227 = vunpack.c.l.b16 %v1189
      %v1228 = vunpack.c.l.b16 %v1190
      %v1229 = vunpack.c.l.b16 %v1191
      %v1230 = vunpack.c.l.b16 %v1192
      %v1231 = vunpack.c.l.b16 %v1193
      %v1232 = vunpack.c.l.b16 %v1194
      %v1233 = vpack.c.b16 %v1218, %v1217
      %v1234 = vpack.c.b16 %v1220, %v1219
      %v1235 = vpack.c.b16 %v1222, %v1221
      %v1236 = vpack.c.b16 %v1224, %v1223
      %v1237 = vpack.c.b16 %v1226, %v1225
      %v1238 = vpack.c.b16 %v1228, %v1227
      %v1239 = vpack.c.b16 %v1230, %v1229
      %v1240 = vpack.c.b16 %v1232, %v1231
      %1249 = vmatprep.subr.bf16.mxu0 0
      %1250 = vmatpush1.bf16.msra.mxu0 %v1240
      %1251 = vmatprep.subr.bf16.mxu0 0
      %1252 = vmatpush1.bf16.msra.mxu0 %v1239
      %1253 = vmatprep.subr.bf16.mxu0 0
      %1254 = vmatpush1.bf16.msra.mxu0 %v1238
      %1255 = vmatprep.subr.bf16.mxu0 0
      %1256 = vmatpush1.bf16.msra.mxu0 %v1237
      %1257 = vmatprep.subr.bf16.mxu0 0
      %1258 = vmatpush1.bf16.msra.mxu0 %v1236
      %1259 = vmatprep.subr.bf16.mxu0 0
      %1260 = vmatpush1.bf16.msra.mxu0 %v1235
      %1261 = vmatprep.subr.bf16.mxu0 0
      %1262 = vmatpush1.bf16.msra.mxu0 %v1234
      %1263 = vmatprep.subr.bf16.mxu0 0
      %1264 = vmatpush1.bf16.msra.mxu0 %v1233
      %1265 = vmatprep.subr.bf16.mxu0 0
      %1266 = vmatpush2.bf16.msra.mxu0 0
      %1267 = vmatprep.subr.bf16.mxu0 0
      %1268 = vmatpush2.bf16.msra.mxu0 0
      %1269 = vmatprep.subr.bf16.mxu0 0
      %1270 = vmatpush2.bf16.msra.mxu0 0
      %1271 = vmatprep.subr.bf16.mxu0 0
      %1272 = vmatpush2.bf16.msra.mxu0 0
      %1273 = vmatprep.subr.bf16.mxu0 0
      %1274 = vmatpush2.bf16.msra.mxu0 0
      %1275 = vmatprep.subr.bf16.mxu0 0
      %1276 = vmatpush2.bf16.msra.mxu0 0
      %1277 = vmatprep.subr.bf16.mxu0 0
      %1278 = vmatpush2.bf16.msra.mxu0 0
      %1279 = vmatprep.subr.bf16.mxu0 0
      %1280 = vmatpush2.bf16.msra.mxu0 0
      %1281 = vmatprep.mubr.bf16.mxu0 0
      %1282 = vmatmul.mubr.bf16.gmra.mxu0 %v1178
      %v1283 = vpop.f32.mrf.mxu0
      %v1284 = vadd.f32 %v1199, %v1283
      %v1285 = vpop.f32.mrf.mxu0
      %v1286 = vpop.f32.mrf.mxu0
      %v1287 = vadd.f32 %v1199, %v1286
      %v1288 = vpop.f32.mrf.mxu0
      %1289 = vdwg.mxu0
      %v1290 = vmax.f32 %v1284, 0.0
      %v1291 = vmax.f32 %v1287, 0.0
      %v1292 = vld [vmem:[%s11] sm:$0x3]
      %v1293 = vpack.c.bf16 %v1291, %v1290
      %v1294 = vld [vmem:[%s10] sm:$0xff]
      %v1295 = vld [vmem:[%s10 + $0x8] sm:$0xff]
      %v1296 = vld [vmem:[%s10 + $0x10] sm:$0xff]
      %v1297 = vld [vmem:[%s10 + $0x18] sm:$0xff]
      %v1298 = vld [vmem:[%s10 + $0x20] sm:$0xff]
      %v1299 = vld [vmem:[%s10 + $0x28] sm:$0xff]
      %v1300 = vld [vmem:[%s10 + $0x30] sm:$0xff]
      %v1301 = vld [vmem:[%s10 + $0x38] sm:$0xff]
      %v1302 = vld [vmem:[%s10 + $0x40] sm:$0xff]
      %v1303 = vld [vmem:[%s10 + $0x48] sm:$0xff]
      %v1304 = vld [vmem:[%s10 + $0x50] sm:$0xff]
      %v1305 = vld [vmem:[%s10 + $0x58] sm:$0xff]
      %v1306 = vld [vmem:[%s10 + $0x60] sm:$0xff]
      %v1307 = vld [vmem:[%s10 + $0x68] sm:$0xff]
      %v1308 = vld [vmem:[%s10 + $0x70] sm:$0xff]
      %v1309 = vld [vmem:[%s10 + $0x78] sm:$0xff]
      %v1311 = vlaneseq
      %v1312 = vshrl.u32 %v1311, 7
      %v1313 = vsub.s32 0, %v1312
      %v1314 = vrot.slane %v1292, %v1313
      %v1315 = vlaneseq
      %v1316 = vshrl.u32 %v1315, 7
      %v1317 = vsub.s32 1, %v1316
      %v1318 = vrot.slane %v1292, %v1317
      %v1337 = vunpack.c.l.b16 %v1294
      %v1338 = vunpack.c.h.b16 %v1294
      %v1339 = vunpack.c.l.b16 %v1295
      %v1340 = vunpack.c.h.b16 %v1295
      %v1341 = vunpack.c.l.b16 %v1296
      %v1342 = vunpack.c.h.b16 %v1296
      %v1343 = vunpack.c.l.b16 %v1297
      %v1344 = vunpack.c.h.b16 %v1297
      %v1345 = vunpack.c.l.b16 %v1298
      %v1346 = vunpack.c.h.b16 %v1298
      %v1347 = vunpack.c.l.b16 %v1299
      %v1348 = vunpack.c.h.b16 %v1299
      %v1349 = vunpack.c.l.b16 %v1300
      %v1350 = vunpack.c.h.b16 %v1300
      %v1351 = vunpack.c.l.b16 %v1301
      %v1352 = vunpack.c.h.b16 %v1301
      %v1353 = vunpack.c.l.b16 %v1302
      %v1354 = vunpack.c.h.b16 %v1302
      %v1355 = vunpack.c.l.b16 %v1303
      %v1356 = vunpack.c.h.b16 %v1303
      %v1357 = vunpack.c.l.b16 %v1304
      %v1358 = vunpack.c.h.b16 %v1304
      %v1359 = vunpack.c.l.b16 %v1305
      %v1360 = vunpack.c.h.b16 %v1305
      %v1361 = vunpack.c.l.b16 %v1306
      %v1362 = vunpack.c.h.b16 %v1306
      %v1363 = vunpack.c.l.b16 %v1307
      %v1364 = vunpack.c.h.b16 %v1307
      %v1365 = vunpack.c.l.b16 %v1308
      %v1366 = vunpack.c.h.b16 %v1308
      %v1367 = vunpack.c.l.b16 %v1309
      %v1368 = vunpack.c.h.b16 %v1309
      %v1369 = vpack.c.b16 %v1339, %v1337
      %v1370 = vpack.c.b16 %v1340, %v1338
      %v1371 = vpack.c.b16 %v1343, %v1341
      %v1372 = vpack.c.b16 %v1344, %v1342
      %v1373 = vpack.c.b16 %v1347, %v1345
      %v1374 = vpack.c.b16 %v1348, %v1346
      %v1375 = vpack.c.b16 %v1351, %v1349
      %v1376 = vpack.c.b16 %v1352, %v1350
      %v1377 = vpack.c.b16 %v1355, %v1353
      %v1378 = vpack.c.b16 %v1356, %v1354
      %v1379 = vpack.c.b16 %v1359, %v1357
      %v1380 = vpack.c.b16 %v1360, %v1358
      %v1381 = vpack.c.b16 %v1363, %v1361
      %v1382 = vpack.c.b16 %v1364, %v1362
      %v1383 = vpack.c.b16 %v1367, %v1365
      %v1384 = vpack.c.b16 %v1368, %v1366
      %1401 = vmatprep.subr.bf16.mxu0 %v1384
      %1402 = vmatpush1.bf16.msra.mxu0 %v1383
      %1403 = vmatprep.subr.bf16.mxu0 %v1382
      %1404 = vmatpush1.bf16.msra.mxu0 %v1381
      %1405 = vmatprep.subr.bf16.mxu0 %v1380
      %1406 = vmatpush1.bf16.msra.mxu0 %v1379
      %1407 = vmatprep.subr.bf16.mxu0 %v1378
      %1408 = vmatpush1.bf16.msra.mxu0 %v1377
      %1409 = vmatprep.subr.bf16.mxu0 %v1376
      %1410 = vmatpush1.bf16.msra.mxu0 %v1375
      %1411 = vmatprep.subr.bf16.mxu0 %v1374
      %1412 = vmatpush1.bf16.msra.mxu0 %v1373
      %1413 = vmatprep.subr.bf16.mxu0 %v1372
      %1414 = vmatpush1.bf16.msra.mxu0 %v1371
      %1415 = vmatprep.subr.bf16.mxu0 %v1370
      %1416 = vmatpush1.bf16.msra.mxu0 %v1369
      %1417 = vmatprep.subr.bf16.mxu0 0
      %1418 = vmatpush2.bf16.msra.mxu0 0
      %1419 = vmatprep.subr.bf16.mxu0 0
      %1420 = vmatpush2.bf16.msra.mxu0 0
      %1421 = vmatprep.subr.bf16.mxu0 0
      %1422 = vmatpush2.bf16.msra.mxu0 0
      %1423 = vmatprep.subr.bf16.mxu0 0
      %1424 = vmatpush2.bf16.msra.mxu0 0
      %1425 = vmatprep.subr.bf16.mxu0 0
      %1426 = vmatpush2.bf16.msra.mxu0 0
      %1427 = vmatprep.subr.bf16.mxu0 0
      %1428 = vmatpush2.bf16.msra.mxu0 0
      %1429 = vmatprep.subr.bf16.mxu0 0
      %1430 = vmatpush2.bf16.msra.mxu0 0
      %1431 = vmatprep.subr.bf16.mxu0 0
      %1432 = vmatpush2.bf16.msra.mxu0 0
      %1433 = vmatprep.mubr.bf16.mxu0 0
      %1434 = vmatmul.mubr.bf16.gmra.mxu0 %v1293
      %v1435 = vpop.f32.mrf.mxu0
      %v1436 = vadd.f32 %v1314, %v1435
      %v1437 = vpop.f32.mrf.mxu0
      %v1438 = vadd.f32 %v1318, %v1437
      %v1439 = vpop.f32.mrf.mxu0
      %v1440 = vadd.f32 %v1314, %v1439
      %v1441 = vpop.f32.mrf.mxu0
      %v1442 = vadd.f32 %v1318, %v1441
      %1443 = vdwg.mxu0
      %v1444 = vmul.f32 %v1438, 0.5
      %v1445 = vmul.f32 %v1442, 0.5
      %v1446 = vmul.f32 %v1444, 1.442695
      %v1447 = vpow.pop %v1446
      %v1448 = vmul.f32 %v1445, 1.442695
      %v1449 = vpow.pop %v1448
      %v1450 = vmul.f32 %v830, %v1447
      %v1451 = vmul.f32 %v831, %v1449
      %v1452 = vadd.f32 %v1436, %v1450
      %v1453 = vadd.f32 %v1440, %v1451
      %v1454 = vld [vmem:[%s13] sm:$0x1]
      %v1455 = vpack.c.bf16 %v1453, %v1452
      %v1456 = vld [vmem:[%s12] sm:$0xf]
      %v1457 = vld [vmem:[%s12 + $0x4] sm:$0xf]
      %v1458 = vld [vmem:[%s12 + $0x8] sm:$0xf]
      %v1459 = vld [vmem:[%s12 + $0xc] sm:$0xf]
      %v1460 = vld [vmem:[%s12 + $0x10] sm:$0xf]
      %v1461 = vld [vmem:[%s12 + $0x14] sm:$0xf]
      %v1462 = vld [vmem:[%s12 + $0x18] sm:$0xf]
      %v1463 = vld [vmem:[%s12 + $0x1c] sm:$0xf]
      %v1464 = vld [vmem:[%s12 + $0x20] sm:$0xf]
      %v1465 = vld [vmem:[%s12 + $0x24] sm:$0xf]
      %v1466 = vld [vmem:[%s12 + $0x28] sm:$0xf]
      %v1467 = vld [vmem:[%s12 + $0x2c] sm:$0xf]
      %v1468 = vld [vmem:[%s12 + $0x30] sm:$0xf]
      %v1469 = vld [vmem:[%s12 + $0x34] sm:$0xf]
      %v1470 = vld [vmem:[%s12 + $0x38] sm:$0xf]
      %v1471 = vld [vmem:[%s12 + $0x3c] sm:$0xf]
      %v1473 = vlaneseq
      %v1474 = vshrl.u32 %v1473, 7
      %v1475 = vsub.s32 0, %v1474
      %v1476 = vrot.slane %v1454, %v1475
      %v1494 = vunpack.c.l.b16 %v1456
      %v1495 = vunpack.c.l.b16 %v1457
      %v1496 = vunpack.c.l.b16 %v1458
      %v1497 = vunpack.c.l.b16 %v1459
      %v1498 = vunpack.c.l.b16 %v1460
      %v1499 = vunpack.c.l.b16 %v1461
      %v1500 = vunpack.c.l.b16 %v1462
      %v1501 = vunpack.c.l.b16 %v1463
      %v1502 = vunpack.c.l.b16 %v1464
      %v1503 = vunpack.c.l.b16 %v1465
      %v1504 = vunpack.c.l.b16 %v1466
      %v1505 = vunpack.c.l.b16 %v1467
      %v1506 = vunpack.c.l.b16 %v1468
      %v1507 = vunpack.c.l.b16 %v1469
      %v1508 = vunpack.c.l.b16 %v1470
      %v1509 = vunpack.c.l.b16 %v1471
      %v1510 = vpack.c.b16 %v1495, %v1494
      %v1511 = vpack.c.b16 %v1497, %v1496
      %v1512 = vpack.c.b16 %v1499, %v1498
      %v1513 = vpack.c.b16 %v1501, %v1500
      %v1514 = vpack.c.b16 %v1503, %v1502
      %v1515 = vpack.c.b16 %v1505, %v1504
      %v1516 = vpack.c.b16 %v1507, %v1506
      %v1517 = vpack.c.b16 %v1509, %v1508
      %1526 = vmatprep.subr.bf16.mxu0 0
      %1527 = vmatpush1.bf16.msra.mxu0 %v1517
      %1528 = vmatprep.subr.bf16.mxu0 0
      %1529 = vmatpush1.bf16.msra.mxu0 %v1516
      %1530 = vmatprep.subr.bf16.mxu0 0
      %1531 = vmatpush1.bf16.msra.mxu0 %v1515
      %1532 = vmatprep.subr.bf16.mxu0 0
      %1533 = vmatpush1.bf16.msra.mxu0 %v1514
      %1534 = vmatprep.subr.bf16.mxu0 0
      %1535 = vmatpush1.bf16.msra.mxu0 %v1513
      %1536 = vmatprep.subr.bf16.mxu0 0
      %1537 = vmatpush1.bf16.msra.mxu0 %v1512
      %1538 = vmatprep.subr.bf16.mxu0 0
      %1539 = vmatpush1.bf16.msra.mxu0 %v1511
      %1540 = vmatprep.subr.bf16.mxu0 0
      %1541 = vmatpush1.bf16.msra.mxu0 %v1510
      %1542 = vmatprep.subr.bf16.mxu0 0
      %1543 = vmatpush2.bf16.msra.mxu0 0
      %1544 = vmatprep.subr.bf16.mxu0 0
      %1545 = vmatpush2.bf16.msra.mxu0 0
      %1546 = vmatprep.subr.bf16.mxu0 0
      %1547 = vmatpush2.bf16.msra.mxu0 0
      %1548 = vmatprep.subr.bf16.mxu0 0
      %1549 = vmatpush2.bf16.msra.mxu0 0
      %1550 = vmatprep.subr.bf16.mxu0 0
      %1551 = vmatpush2.bf16.msra.mxu0 0
      %1552 = vmatprep.subr.bf16.mxu0 0
      %1553 = vmatpush2.bf16.msra.mxu0 0
      %1554 = vmatprep.subr.bf16.mxu0 0
      %1555 = vmatpush2.bf16.msra.mxu0 0
      %1556 = vmatprep.subr.bf16.mxu0 0
      %1557 = vmatpush2.bf16.msra.mxu0 0
      %1558 = vmatprep.mubr.bf16.mxu0 0
      %1559 = vmatmul.mubr.bf16.gmra.mxu0 %v1455
      %v1560 = vpop.f32.mrf.mxu0
      %v1561 = vadd.f32 %v1476, %v1560
      %v1562 = vpop.f32.mrf.mxu0
      %v1563 = vpop.f32.mrf.mxu0
      %v1564 = vadd.f32 %v1476, %v1563
      %v1565 = vpop.f32.mrf.mxu0
      %1566 = vdwg.mxu0
      %v1567 = vmax.f32 %v1561, 0.0
      %v1568 = vmax.f32 %v1564, 0.0
      %v1569 = vld [vmem:[%s15] sm:$0x1]
      %v1570 = vpack.c.bf16 %v1568, %v1567
      %v1571 = vld [vmem:[%s14] sm:$0xf]
      %v1572 = vld [vmem:[%s14 + $0x4] sm:$0xf]
      %v1573 = vld [vmem:[%s14 + $0x8] sm:$0xf]
      %v1574 = vld [vmem:[%s14 + $0xc] sm:$0xf]
      %v1575 = vld [vmem:[%s14 + $0x10] sm:$0xf]
      %v1576 = vld [vmem:[%s14 + $0x14] sm:$0xf]
      %v1577 = vld [vmem:[%s14 + $0x18] sm:$0xf]
      %v1578 = vld [vmem:[%s14 + $0x1c] sm:$0xf]
      %v1579 = vld [vmem:[%s14 + $0x20] sm:$0xf]
      %v1580 = vld [vmem:[%s14 + $0x24] sm:$0xf]
      %v1581 = vld [vmem:[%s14 + $0x28] sm:$0xf]
      %v1582 = vld [vmem:[%s14 + $0x2c] sm:$0xf]
      %v1583 = vld [vmem:[%s14 + $0x30] sm:$0xf]
      %v1584 = vld [vmem:[%s14 + $0x34] sm:$0xf]
      %v1585 = vld [vmem:[%s14 + $0x38] sm:$0xf]
      %v1586 = vld [vmem:[%s14 + $0x3c] sm:$0xf]
      %v1588 = vlaneseq
      %v1589 = vshrl.u32 %v1588, 7
      %v1590 = vsub.s32 0, %v1589
      %v1591 = vrot.slane %v1569, %v1590
      %v1609 = vunpack.c.l.b16 %v1571
      %v1610 = vunpack.c.l.b16 %v1572
      %v1611 = vunpack.c.l.b16 %v1573
      %v1612 = vunpack.c.l.b16 %v1574
      %v1613 = vunpack.c.l.b16 %v1575
      %v1614 = vunpack.c.l.b16 %v1576
      %v1615 = vunpack.c.l.b16 %v1577
      %v1616 = vunpack.c.l.b16 %v1578
      %v1617 = vunpack.c.l.b16 %v1579
      %v1618 = vunpack.c.l.b16 %v1580
      %v1619 = vunpack.c.l.b16 %v1581
      %v1620 = vunpack.c.l.b16 %v1582
      %v1621 = vunpack.c.l.b16 %v1583
      %v1622 = vunpack.c.l.b16 %v1584
      %v1623 = vunpack.c.l.b16 %v1585
      %v1624 = vunpack.c.l.b16 %v1586
      %v1625 = vpack.c.b16 %v1610, %v1609
      %v1626 = vpack.c.b16 %v1612, %v1611
      %v1627 = vpack.c.b16 %v1614, %v1613
      %v1628 = vpack.c.b16 %v1616, %v1615
      %v1629 = vpack.c.b16 %v1618, %v1617
      %v1630 = vpack.c.b16 %v1620, %v1619
      %v1631 = vpack.c.b16 %v1622, %v1621
      %v1632 = vpack.c.b16 %v1624, %v1623
      %1641 = vmatprep.subr.bf16.mxu0 0
      %1642 = vmatpush1.bf16.msra.mxu0 %v1632
      %1643 = vmatprep.subr.bf16.mxu0 0
      %1644 = vmatpush1.bf16.msra.mxu0 %v1631
      %1645 = vmatprep.subr.bf16.mxu0 0
      %1646 = vmatpush1.bf16.msra.mxu0 %v1630
      %1647 = vmatprep.subr.bf16.mxu0 0
      %1648 = vmatpush1.bf16.msra.mxu0 %v1629
      %1649 = vmatprep.subr.bf16.mxu0 0
      %1650 = vmatpush1.bf16.msra.mxu0 %v1628
      %1651 = vmatprep.subr.bf16.mxu0 0
      %1652 = vmatpush1.bf16.msra.mxu0 %v1627
      %1653 = vmatprep.subr.bf16.mxu0 0
      %1654 = vmatpush1.bf16.msra.mxu0 %v1626
      %1655 = vmatprep.subr.bf16.mxu0 0
      %1656 = vmatpush1.bf16.msra.mxu0 %v1625
      %1657 = vmatprep.subr.bf16.mxu0 0
      %1658 = vmatpush2.bf16.msra.mxu0 0
      %1659 = vmatprep.subr.bf16.mxu0 0
      %1660 = vmatpush2.bf16.msra.mxu0 0
      %1661 = vmatprep.subr.bf16.mxu0 0
      %1662 = vmatpush2.bf16.msra.mxu0 0
      %1663 = vmatprep.subr.bf16.mxu0 0
      %1664 = vmatpush2.bf16.msra.mxu0 0
      %1665 = vmatprep.subr.bf16.mxu0 0
      %1666 = vmatpush2.bf16.msra.mxu0 0
      %1667 = vmatprep.subr.bf16.mxu0 0
      %1668 = vmatpush2.bf16.msra.mxu0 0
      %1669 = vmatprep.subr.bf16.mxu0 0
      %1670 = vmatpush2.bf16.msra.mxu0 0
      %1671 = vmatprep.subr.bf16.mxu0 0
      %1672 = vmatpush2.bf16.msra.mxu0 0
      %1673 = vmatprep.mubr.bf16.mxu0 0
      %1674 = vmatmul.mubr.bf16.gmra.mxu0 %v1570
      %v1675 = vpop.f32.mrf.mxu0
      %v1676 = vadd.f32 %v1591, %v1675
      %v1677 = vpop.f32.mrf.mxu0
      %v1678 = vpop.f32.mrf.mxu0
      %v1679 = vadd.f32 %v1591, %v1678
      %v1680 = vpop.f32.mrf.mxu0
      %1681 = vdwg.mxu0
      %v1682 = vmax.f32 %v1676, 0.0
      %v1683 = vmax.f32 %v1679, 0.0
      %v1684 = vld [vmem:[%s17] sm:$0x1]
      %v1685 = vpack.c.bf16 %v1683, %v1682
      %v1686 = vld [vmem:[%s16] sm:$0xf]
      %v1687 = vld [vmem:[%s16 + $0x4] sm:$0xf]
      %v1688 = vld [vmem:[%s16 + $0x8] sm:$0xf]
      %v1689 = vld [vmem:[%s16 + $0xc] sm:$0xf]
      %v1690 = vld [vmem:[%s16 + $0x10] sm:$0xf]
      %v1691 = vld [vmem:[%s16 + $0x14] sm:$0xf]
      %v1692 = vld [vmem:[%s16 + $0x18] sm:$0xf]
      %v1693 = vld [vmem:[%s16 + $0x1c] sm:$0xf]
      %v1694 = vld [vmem:[%s16 + $0x20] sm:$0xf]
      %v1695 = vld [vmem:[%s16 + $0x24] sm:$0xf]
      %v1696 = vld [vmem:[%s16 + $0x28] sm:$0xf]
      %v1697 = vld [vmem:[%s16 + $0x2c] sm:$0xf]
      %v1698 = vld [vmem:[%s16 + $0x30] sm:$0xf]
      %v1699 = vld [vmem:[%s16 + $0x34] sm:$0xf]
      %v1700 = vld [vmem:[%s16 + $0x38] sm:$0xf]
      %v1701 = vld [vmem:[%s16 + $0x3c] sm:$0xf]
      %v1703 = vlaneseq
      %v1704 = vshrl.u32 %v1703, 7
      %v1705 = vsub.s32 0, %v1704
      %v1706 = vrot.slane %v1684, %v1705
      %v1724 = vunpack.c.l.b16 %v1686
      %v1725 = vunpack.c.l.b16 %v1687
      %v1726 = vunpack.c.l.b16 %v1688
      %v1727 = vunpack.c.l.b16 %v1689
      %v1728 = vunpack.c.l.b16 %v1690
      %v1729 = vunpack.c.l.b16 %v1691
      %v1730 = vunpack.c.l.b16 %v1692
      %v1731 = vunpack.c.l.b16 %v1693
      %v1732 = vunpack.c.l.b16 %v1694
      %v1733 = vunpack.c.l.b16 %v1695
      %v1734 = vunpack.c.l.b16 %v1696
      %v1735 = vunpack.c.l.b16 %v1697
      %v1736 = vunpack.c.l.b16 %v1698
      %v1737 = vunpack.c.l.b16 %v1699
      %v1738 = vunpack.c.l.b16 %v1700
      %v1739 = vunpack.c.l.b16 %v1701
      %v1740 = vpack.c.b16 %v1725, %v1724
      %v1741 = vpack.c.b16 %v1727, %v1726
      %v1742 = vpack.c.b16 %v1729, %v1728
      %v1743 = vpack.c.b16 %v1731, %v1730
      %v1744 = vpack.c.b16 %v1733, %v1732
      %v1745 = vpack.c.b16 %v1735, %v1734
      %v1746 = vpack.c.b16 %v1737, %v1736
      %v1747 = vpack.c.b16 %v1739, %v1738
      %1756 = vmatprep.subr.bf16.mxu0 0
      %1757 = vmatpush1.bf16.msra.mxu0 %v1747
      %1758 = vmatprep.subr.bf16.mxu0 0
      %1759 = vmatpush1.bf16.msra.mxu0 %v1746
      %1760 = vmatprep.subr.bf16.mxu0 0
      %1761 = vmatpush1.bf16.msra.mxu0 %v1745
      %1762 = vmatprep.subr.bf16.mxu0 0
      %1763 = vmatpush1.bf16.msra.mxu0 %v1744
      %1764 = vmatprep.subr.bf16.mxu0 0
      %1765 = vmatpush1.bf16.msra.mxu0 %v1743
      %1766 = vmatprep.subr.bf16.mxu0 0
      %1767 = vmatpush1.bf16.msra.mxu0 %v1742
      %1768 = vmatprep.subr.bf16.mxu0 0
      %1769 = vmatpush1.bf16.msra.mxu0 %v1741
      %1770 = vmatprep.subr.bf16.mxu0 0
      %1771 = vmatpush1.bf16.msra.mxu0 %v1740
      %1772 = vmatprep.subr.bf16.mxu0 0
      %1773 = vmatpush2.bf16.msra.mxu0 0
      %1774 = vmatprep.subr.bf16.mxu0 0
      %1775 = vmatpush2.bf16.msra.mxu0 0
      %1776 = vmatprep.subr.bf16.mxu0 0
      %1777 = vmatpush2.bf16.msra.mxu0 0
      %1778 = vmatprep.subr.bf16.mxu0 0
      %1779 = vmatpush2.bf16.msra.mxu0 0
      %1780 = vmatprep.subr.bf16.mxu0 0
      %1781 = vmatpush2.bf16.msra.mxu0 0
      %1782 = vmatprep.subr.bf16.mxu0 0
      %1783 = vmatpush2.bf16.msra.mxu0 0
      %1784 = vmatprep.subr.bf16.mxu0 0
      %1785 = vmatpush2.bf16.msra.mxu0 0
      %1786 = vmatprep.subr.bf16.mxu0 0
      %1787 = vmatpush2.bf16.msra.mxu0 0
      %1788 = vmatprep.mubr.bf16.mxu0 0
      %1789 = vmatmul.mubr.bf16.gmra.mxu0 %v1685
      %v1790 = vpop.f32.mrf.mxu0
      %v1791 = vadd.f32 %v1706, %v1790
      %v1792 = vpop.f32.mrf.mxu0
      %v1793 = vpop.f32.mrf.mxu0
      %v1794 = vadd.f32 %v1706, %v1793
      %v1795 = vpop.f32.mrf.mxu0
      %1796 = vdwg.mxu0
      %v1797 = vmax.f32 %v1791, 0.0
      %v1798 = vmax.f32 %v1794, 0.0
      %v1799 = vld [vmem:[%s19] sm:$0x1]
      %v1800 = vpack.c.bf16 %v1798, %v1797
      %v1801 = vld [vmem:[%s18] sm:$0xf]
      %v1802 = vld [vmem:[%s18 + $0x4] sm:$0xf]
      %v1803 = vld [vmem:[%s18 + $0x8] sm:$0xf]
      %v1804 = vld [vmem:[%s18 + $0xc] sm:$0xf]
      %v1805 = vld [vmem:[%s18 + $0x10] sm:$0xf]
      %v1806 = vld [vmem:[%s18 + $0x14] sm:$0xf]
      %v1807 = vld [vmem:[%s18 + $0x18] sm:$0xf]
      %v1808 = vld [vmem:[%s18 + $0x1c] sm:$0xf]
      %v1809 = vld [vmem:[%s18 + $0x20] sm:$0xf]
      %v1810 = vld [vmem:[%s18 + $0x24] sm:$0xf]
      %v1811 = vld [vmem:[%s18 + $0x28] sm:$0xf]
      %v1812 = vld [vmem:[%s18 + $0x2c] sm:$0xf]
      %v1813 = vld [vmem:[%s18 + $0x30] sm:$0xf]
      %v1814 = vld [vmem:[%s18 + $0x34] sm:$0xf]
      %v1815 = vld [vmem:[%s18 + $0x38] sm:$0xf]
      %v1816 = vld [vmem:[%s18 + $0x3c] sm:$0xf]
      %v1818 = vlaneseq
      %v1819 = vshrl.u32 %v1818, 7
      %v1820 = vsub.s32 0, %v1819
      %v1821 = vrot.slane %v1799, %v1820
      %v1839 = vunpack.c.l.b16 %v1801
      %v1840 = vunpack.c.l.b16 %v1802
      %v1841 = vunpack.c.l.b16 %v1803
      %v1842 = vunpack.c.l.b16 %v1804
      %v1843 = vunpack.c.l.b16 %v1805
      %v1844 = vunpack.c.l.b16 %v1806
      %v1845 = vunpack.c.l.b16 %v1807
      %v1846 = vunpack.c.l.b16 %v1808
      %v1847 = vunpack.c.l.b16 %v1809
      %v1848 = vunpack.c.l.b16 %v1810
      %v1849 = vunpack.c.l.b16 %v1811
      %v1850 = vunpack.c.l.b16 %v1812
      %v1851 = vunpack.c.l.b16 %v1813
      %v1852 = vunpack.c.l.b16 %v1814
      %v1853 = vunpack.c.l.b16 %v1815
      %v1854 = vunpack.c.l.b16 %v1816
      %v1855 = vpack.c.b16 %v1840, %v1839
      %v1856 = vpack.c.b16 %v1842, %v1841
      %v1857 = vpack.c.b16 %v1844, %v1843
      %v1858 = vpack.c.b16 %v1846, %v1845
      %v1859 = vpack.c.b16 %v1848, %v1847
      %v1860 = vpack.c.b16 %v1850, %v1849
      %v1861 = vpack.c.b16 %v1852, %v1851
      %v1862 = vpack.c.b16 %v1854, %v1853
      %1871 = vmatprep.subr.bf16.mxu0 0
      %1872 = vmatpush1.bf16.msra.mxu0 %v1862
      %1873 = vmatprep.subr.bf16.mxu0 0
      %1874 = vmatpush1.bf16.msra.mxu0 %v1861
      %1875 = vmatprep.subr.bf16.mxu0 0
      %1876 = vmatpush1.bf16.msra.mxu0 %v1860
      %1877 = vmatprep.subr.bf16.mxu0 0
      %1878 = vmatpush1.bf16.msra.mxu0 %v1859
      %1879 = vmatprep.subr.bf16.mxu0 0
      %1880 = vmatpush1.bf16.msra.mxu0 %v1858
      %1881 = vmatprep.subr.bf16.mxu0 0
      %1882 = vmatpush1.bf16.msra.mxu0 %v1857
      %1883 = vmatprep.subr.bf16.mxu0 0
      %1884 = vmatpush1.bf16.msra.mxu0 %v1856
      %1885 = vmatprep.subr.bf16.mxu0 0
      %1886 = vmatpush1.bf16.msra.mxu0 %v1855
      %1887 = vmatprep.subr.bf16.mxu0 0
      %1888 = vmatpush2.bf16.msra.mxu0 0
      %1889 = vmatprep.subr.bf16.mxu0 0
      %1890 = vmatpush2.bf16.msra.mxu0 0
      %1891 = vmatprep.subr.bf16.mxu0 0
      %1892 = vmatpush2.bf16.msra.mxu0 0
      %1893 = vmatprep.subr.bf16.mxu0 0
      %1894 = vmatpush2.bf16.msra.mxu0 0
      %1895 = vmatprep.subr.bf16.mxu0 0
      %1896 = vmatpush2.bf16.msra.mxu0 0
      %1897 = vmatprep.subr.bf16.mxu0 0
      %1898 = vmatpush2.bf16.msra.mxu0 0
      %1899 = vmatprep.subr.bf16.mxu0 0
      %1900 = vmatpush2.bf16.msra.mxu0 0
      %1901 = vmatprep.subr.bf16.mxu0 0
      %1902 = vmatpush2.bf16.msra.mxu0 0
      %1903 = vmatprep.mubr.bf16.mxu0 0
      %1904 = vmatmul.mubr.bf16.gmra.mxu0 %v1800
      %v1905 = vpop.f32.mrf.mxu0
      %v1906 = vadd.f32 %v1821, %v1905
      %v1907 = vpop.f32.mrf.mxu0
      %v1908 = vpop.f32.mrf.mxu0
      %v1909 = vadd.f32 %v1821, %v1908
      %v1910 = vpop.f32.mrf.mxu0
      %1911 = vdwg.mxu0
      %v1912 = vmax.f32 %v1906, 0.0
      %v1913 = vmax.f32 %v1909, 0.0
      %v1914 = vld [vmem:[%s21] sm:$0x1]
      %v1915 = vpack.c.bf16 %v1913, %v1912
      %v1916 = vld [vmem:[%s20] sm:$0xf]
      %v1917 = vld [vmem:[%s20 + $0x4] sm:$0xf]
      %v1918 = vld [vmem:[%s20 + $0x8] sm:$0xf]
      %v1919 = vld [vmem:[%s20 + $0xc] sm:$0xf]
      %v1920 = vld [vmem:[%s20 + $0x10] sm:$0xf]
      %v1921 = vld [vmem:[%s20 + $0x14] sm:$0xf]
      %v1922 = vld [vmem:[%s20 + $0x18] sm:$0xf]
      %v1923 = vld [vmem:[%s20 + $0x1c] sm:$0xf]
      %v1924 = vld [vmem:[%s20 + $0x20] sm:$0xf]
      %v1925 = vld [vmem:[%s20 + $0x24] sm:$0xf]
      %v1926 = vld [vmem:[%s20 + $0x28] sm:$0xf]
      %v1927 = vld [vmem:[%s20 + $0x2c] sm:$0xf]
      %v1928 = vld [vmem:[%s20 + $0x30] sm:$0xf]
      %v1929 = vld [vmem:[%s20 + $0x34] sm:$0xf]
      %v1930 = vld [vmem:[%s20 + $0x38] sm:$0xf]
      %v1931 = vld [vmem:[%s20 + $0x3c] sm:$0xf]
      %v1933 = vlaneseq
      %v1934 = vshrl.u32 %v1933, 7
      %v1935 = vsub.s32 0, %v1934
      %v1936 = vrot.slane %v1914, %v1935
      %v1954 = vunpack.c.l.b16 %v1916
      %v1955 = vunpack.c.l.b16 %v1917
      %v1956 = vunpack.c.l.b16 %v1918
      %v1957 = vunpack.c.l.b16 %v1919
      %v1958 = vunpack.c.l.b16 %v1920
      %v1959 = vunpack.c.l.b16 %v1921
      %v1960 = vunpack.c.l.b16 %v1922
      %v1961 = vunpack.c.l.b16 %v1923
      %v1962 = vunpack.c.l.b16 %v1924
      %v1963 = vunpack.c.l.b16 %v1925
      %v1964 = vunpack.c.l.b16 %v1926
      %v1965 = vunpack.c.l.b16 %v1927
      %v1966 = vunpack.c.l.b16 %v1928
      %v1967 = vunpack.c.l.b16 %v1929
      %v1968 = vunpack.c.l.b16 %v1930
      %v1969 = vunpack.c.l.b16 %v1931
      %v1970 = vpack.c.b16 %v1955, %v1954
      %v1971 = vpack.c.b16 %v1957, %v1956
      %v1972 = vpack.c.b16 %v1959, %v1958
      %v1973 = vpack.c.b16 %v1961, %v1960
      %v1974 = vpack.c.b16 %v1963, %v1962
      %v1975 = vpack.c.b16 %v1965, %v1964
      %v1976 = vpack.c.b16 %v1967, %v1966
      %v1977 = vpack.c.b16 %v1969, %v1968
      %1986 = vmatprep.subr.bf16.mxu0 0
      %1987 = vmatpush1.bf16.msra.mxu0 %v1977
      %1988 = vmatprep.subr.bf16.mxu0 0
      %1989 = vmatpush1.bf16.msra.mxu0 %v1976
      %1990 = vmatprep.subr.bf16.mxu0 0
      %1991 = vmatpush1.bf16.msra.mxu0 %v1975
      %1992 = vmatprep.subr.bf16.mxu0 0
      %1993 = vmatpush1.bf16.msra.mxu0 %v1974
      %1994 = vmatprep.subr.bf16.mxu0 0
      %1995 = vmatpush1.bf16.msra.mxu0 %v1973
      %1996 = vmatprep.subr.bf16.mxu0 0
      %1997 = vmatpush1.bf16.msra.mxu0 %v1972
      %1998 = vmatprep.subr.bf16.mxu0 0
      %1999 = vmatpush1.bf16.msra.mxu0 %v1971
      %2000 = vmatprep.subr.bf16.mxu0 0
      %2001 = vmatpush1.bf16.msra.mxu0 %v1970
      %2002 = vmatprep.subr.bf16.mxu0 0
      %2003 = vmatpush2.bf16.msra.mxu0 0
      %2004 = vmatprep.subr.bf16.mxu0 0
      %2005 = vmatpush2.bf16.msra.mxu0 0
      %2006 = vmatprep.subr.bf16.mxu0 0
      %2007 = vmatpush2.bf16.msra.mxu0 0
      %2008 = vmatprep.subr.bf16.mxu0 0
      %2009 = vmatpush2.bf16.msra.mxu0 0
      %2010 = vmatprep.subr.bf16.mxu0 0
      %2011 = vmatpush2.bf16.msra.mxu0 0
      %2012 = vmatprep.subr.bf16.mxu0 0
      %2013 = vmatpush2.bf16.msra.mxu0 0
      %2014 = vmatprep.subr.bf16.mxu0 0
      %2015 = vmatpush2.bf16.msra.mxu0 0
      %2016 = vmatprep.subr.bf16.mxu0 0
      %2017 = vmatpush2.bf16.msra.mxu0 0
      %2018 = vmatprep.mubr.bf16.mxu0 0
      %2019 = vmatmul.mubr.bf16.gmra.mxu0 %v1915
      %v2020 = vpop.f32.mrf.mxu0
      %v2021 = vadd.f32 %v1936, %v2020
      %v2022 = vpop.f32.mrf.mxu0
      %v2023 = vpop.f32.mrf.mxu0
      %v2024 = vadd.f32 %v1936, %v2023
      %v2025 = vpop.f32.mrf.mxu0
      %2026 = vdwg.mxu0
      %v2027 = vsub.f32 %v2021, %v828
      %v2028 = vsub.f32 %v2024, %v829
      %v2029 = vmul.f32 %v2027, %v2027
      %v2030 = vmul.f32 %v2028, %v2028
      %2031 = vadd.xlane.f32.xlu0 %v2029
      %v2032 = vpop.xlane.xlu0 %2031
      %2033 = vadd.xlane.f32.xlu0 %v2030
      %v2034 = vpop.xlane.xlu0 %2033
      %v2035 = vmul.f32 %v1447, %v1447
      %v2036 = vmul.f32 %v1449, %v1449
      %v2037 = vadd.f32 %v1438, 1.0
      %v2038 = vadd.f32 %v1442, 1.0
      %v2039 = vmul.f32 %v1436, %v1436
      %v2040 = vmul.f32 %v1440, %v1440
      %v2041 = vsub.f32 %v2037, %v2039
      %v2042 = vsub.f32 %v2038, %v2040
      %v2043 = vsub.f32 %v2041, %v2035
      %v2044 = vsub.f32 %v2042, %v2036
      %2045 = vadd.xlane.f32.xlu0 %v2043
      %v2046 = vpop.xlane.xlu0 %2045
      %2047 = vadd.xlane.f32.xlu0 %v2044
      %v2048 = vpop.xlane.xlu0 %2047
      %v2049 = vmul.f32 %v2046, -0.5
      %v2050 = vmul.f32 %v2048, -0.5
      %v2051 = vadd.f32 %v2032, %v2049
      %v2052 = vadd.f32 %v2034, %v2050
      %v2053 = vadd.f32 %v2051, %v2052
      %v2054 = vrot.slane %v2053, 4
      %v2055 = vadd.f32 %v2053, %v2054
      %v2056 = vrot.slane %v2055, 2
      %v2057 = vadd.f32 %v2055, %v2056
      %v2058 = vrot.slane %v2057, 1
      %v2059 = vadd.f32 %v2057, %v2058
      %2060 = vst [vmem:[%s808] sm:$0xff] %v2059
      %2061 = vst [vmem:[%s813] sm:$0xff] %v2021
      %2062 = vst [vmem:[%s813 + $0x8] sm:$0xff] %v2024
      %2063 = vst [vmem:[%s819] sm:$0xff] %v1436
      %2064 = vst [vmem:[%s819 + $0x8] sm:$0xff] %v1440
      %2065 = vst [vmem:[%s825] sm:$0xff] %v1438
      %2066 = vst [vmem:[%s825 + $0x8] sm:$0xff] %v1442
      %p2067 = scmp.lt.s32.totalorder %s37, 1
      %s2068 = scalar_select %p2067, %s37, 1
      %s2069 = smul.addr %s2068, 8
      %s2070 = scalar_lea.vmem %s22, %s2069
      %s2071 = smul.u32 2, %s37
      %p2072 = scmp.lt.s32.totalorder %s2071, 3
      %s2073 = scalar_select %p2072, %s2071, 3
      %s2074 = smul.addr %s2073, 8
      %s2075 = scalar_lea.vmem %s23, %s2074
      %s2076 = smul.u32 2, %s37
      %p2077 = scmp.lt.s32.totalorder %s2076, 3
      %s2078 = scalar_select %p2077, %s2076, 3
      %s2079 = smul.addr %s2078, 8
      %s2080 = scalar_lea.vmem %s24, %s2079
      %s2081 = smul.u32 2, %s37
      %p2082 = scmp.lt.s32.totalorder %s2081, 3
      %s2083 = scalar_select %p2082, %s2081, 3
      %s2084 = smul.addr %s2083, 8
      %s2085 = scalar_lea.vmem %s25, %s2084
      // Predicated region
      $region109: #{vae_forward.1} parent=107 // pred_check
        %p2086 = pneg %p527
      $region110: #{vae_forward.1} parent=107 // pred_check_branch
        %2088 = sbr.rel (%p2086) target = $region112
      $region111: #{vae_forward.1} parent=107 // pred_region
        _
      $region112: #{vae_forward.1} parent=107 // pred_fallthru
        _
      // Predicated region
      $region113: #{vae_forward.1} parent=107 // pred_check
        %p2089 = pneg %p553
      $region114: #{vae_forward.1} parent=107 // pred_check_branch
        %2091 = sbr.rel (%p2089) target = $region116
      $region115: #{vae_forward.1} parent=107 // pred_region
        %s2092 = smul.u32 2, %s37
      $region116: #{vae_forward.1} parent=107 // pred_fallthru
        _
      // Predicated region
      $region117: #{vae_forward.1} parent=107 // pred_check
        %p2093 = pneg %p579
      $region118: #{vae_forward.1} parent=107 // pred_check_branch
        %2095 = sbr.rel (%p2093) target = $region120
      $region119: #{vae_forward.1} parent=107 // pred_region
        %s2096 = smul.u32 2, %s37
      $region120: #{vae_forward.1} parent=107 // pred_fallthru
        _
      // Predicated region
      $region121: #{vae_forward.1} parent=107 // pred_check
        %p2097 = pneg %p605
      $region122: #{vae_forward.1} parent=107 // pred_check_branch
        %2099 = sbr.rel (%p2097) target = $region124
      $region123: #{vae_forward.1} parent=107 // pred_region
        %s2100 = smul.u32 2, %s37
      $region124: #{vae_forward.1} parent=107 // pred_fallthru
        _
    $region108: #{vae_forward.1} parent=5 // pred_fallthru
      _
    %p2101 = scmp.le.s32.totalorder 2, %s32
    // Predicated region
    $region125: #{vae_forward.1} parent=5 // pred_check
      %p2102 = pneg %p2101
    $region126: #{vae_forward.1} parent=5 // pred_check_branch
      %2104 = sbr.rel (%p2102) target = $region128
    $region127: #{vae_forward.1} parent=5 // pred_region
      %s2105 = ssub.s32 %s32, 2
      // Predicated region
      $region129: #{vae_forward.1} parent=127 // pred_check
        %p2106 = pneg %p533
      $region130: #{vae_forward.1} parent=127 // pred_check_branch
        %2108 = sbr.rel (%p2106) target = $region132
      $region131: #{vae_forward.1} parent=127 // pred_region
        %p2109 = scmp.lt.s32.totalorder %s38, 1
        %s2110 = scalar_select %p2109, %s38, 1
        %s2111 = smul.addr %s2110, 8
        %s2112 = scalar_lea.vmem %s22, %s2111
      $region132: #{vae_forward.1} parent=127 // pred_fallthru
        _
      // Predicated region
      $region133: #{vae_forward.1} parent=127 // pred_check
        %p2113 = pneg %p559
      $region134: #{vae_forward.1} parent=127 // pred_check_branch
        %2115 = sbr.rel (%p2113) target = $region136
      $region135: #{vae_forward.1} parent=127 // pred_region
        %s2116 = smul.u32 2, %s38
        %p2117 = scmp.lt.s32.totalorder %s2116, 3
        %s2118 = scalar_select %p2117, %s2116, 3
        %s2119 = smul.addr %s2118, 8
        %s2120 = scalar_lea.vmem %s23, %s2119
      $region136: #{vae_forward.1} parent=127 // pred_fallthru
        _
      // Predicated region
      $region137: #{vae_forward.1} parent=127 // pred_check
        %p2121 = pneg %p585
      $region138: #{vae_forward.1} parent=127 // pred_check_branch
        %2123 = sbr.rel (%p2121) target = $region140
      $region139: #{vae_forward.1} parent=127 // pred_region
        %s2124 = smul.u32 2, %s38
        %p2125 = scmp.lt.s32.totalorder %s2124, 3
        %s2126 = scalar_select %p2125, %s2124, 3
        %s2127 = smul.addr %s2126, 8
        %s2128 = scalar_lea.vmem %s24, %s2127
      $region140: #{vae_forward.1} parent=127 // pred_fallthru
        _
      // Predicated region
      $region141: #{vae_forward.1} parent=127 // pred_check
        %p2129 = pneg %p611
      $region142: #{vae_forward.1} parent=127 // pred_check_branch
        %2131 = sbr.rel (%p2129) target = $region144
      $region143: #{vae_forward.1} parent=127 // pred_region
        %s2132 = smul.u32 2, %s38
        %p2133 = scmp.lt.s32.totalorder %s2132, 3
        %s2134 = scalar_select %p2133, %s2132, 3
        %s2135 = smul.addr %s2134, 8
        %s2136 = scalar_lea.vmem %s25, %s2135
      $region144: #{vae_forward.1} parent=127 // pred_fallthru
        _
    $region128: #{vae_forward.1} parent=5 // pred_fallthru
      _
  $region6: #{vae_forward.1} parent=0 // loop_footer
    %s36 = sadd.s32 1, %s32
  $region7: #{vae_forward.1} parent=0 // loop_footer_branch
    %31 = sbr.rel target = $region3
  $region8: #{vae_forward.1} parent=0 // loop_exit
    _

// kernel: vae_forward.1
$region0: #{vae_forward.1}
  #allocation0 [shape = 'u32[]', space=smem, size = 0x4, offset = 0x4, fixed_abs, tag = 'smem constant byte address 0x4 - core index']
  #allocation1 [shape = 'u32[144,128]{1,0:T(1,128)}', space=vmem, size = 0x12000, scoped, tag = 'internal scratch']
  %s0 = inlined_call_operand.vmem [shape: f32[32,128], index: 0, kind: input, shape index: {}]
  %s1 = inlined_call_operand.vmem [shape: f32[32,128], index: 1, kind: input, shape index: {}]
  %s2 = inlined_call_operand.vmem [shape: bf16[128,128], index: 2, kind: input, shape index: {}]
  %s3 = inlined_call_operand.vmem [shape: f32[1,128], index: 3, kind: input, shape index: {}]
  %s4 = inlined_call_operand.vmem [shape: bf16[128,128], index: 4, kind: input, shape index: {}]
  %s5 = inlined_call_operand.vmem [shape: f32[1,128], index: 5, kind: input, shape index: {}]
  %s6 = inlined_call_operand.vmem [shape: bf16[128,128], index: 6, kind: input, shape index: {}]
  %s7 = inlined_call_operand.vmem [shape: f32[1,128], index: 7, kind: input, shape index: {}]
  %s8 = inlined_call_operand.vmem [shape: bf16[128,128], index: 8, kind: input, shape index: {}]
  %s9 = inlined_call_operand.vmem [shape: f32[1,128], index: 9, kind: input, shape index: {}]
  %s10 = inlined_call_operand.vmem [shape: bf16[128,256], index: 10, kind: input, shape index: {}]
  %s11 = inlined_call_operand.vmem [shape: f32[1,256], index: 11, kind: input, shape index: {}]
  %s12 = inlined_call_operand.vmem [shape: bf16[128,128], index: 12, kind: input, shape index: {}]
  %s13 = inlined_call_operand.vmem [shape: f32[1,128], index: 13, kind: input, shape index: {}]
  %s14 = inlined_call_operand.vmem [shape: bf16[128,128], index: 14, kind: input, shape index: {}]
  %s15 = inlined_call_operand.vmem [shape: f32[1,128], index: 15, kind: input, shape index: {}]
  %s16 = inlined_call_operand.vmem [shape: bf16[128,128], index: 16, kind: input, shape index: {}]
  %s17 = inlined_call_operand.vmem [shape: f32[1,128], index: 17, kind: input, shape index: {}]
  %s18 = inlined_call_operand.vmem [shape: bf16[128,128], index: 18, kind: input, shape index: {}]
  %s19 = inlined_call_operand.vmem [shape: f32[1,128], index: 19, kind: input, shape index: {}]
  %s20 = inlined_call_operand.vmem [shape: bf16[128,128], index: 20, kind: input, shape index: {}]
  %s21 = inlined_call_operand.vmem [shape: f32[1,128], index: 21, kind: input, shape index: {}]
  %s22 = inlined_call_operand.vmem [shape: f32[16,128], index: 22, kind: output, shape index: {0}]
  %s23 = inlined_call_operand.vmem [shape: f32[32,128], index: 23, kind: output, shape index: {1}]
  %s24 = inlined_call_operand.vmem [shape: f32[32,128], index: 24, kind: output, shape index: {2}]
  %s25 = inlined_call_operand.vmem [shape: f32[32,128], index: 25, kind: output, shape index: {3}]
  %26 = xla_tuple %s22, %s23, %s24, %s25
  %s27 = sld [smem:[#allocation0]]
  $region145: #{vae_forward.1} parent=0
    _
  %s29 = ssub.s32 1, %s27
  %s30 = scalar_select 0, %s29, %s27
  loop: start=0, step=1, limit=4
  $region2: #{vae_forward.1} parent=0 // loop_pre_header
    _
  $region3: #{vae_forward.1} parent=0 // loop_header
    %s32 = sphi 0, %s36
    %p33 = scmp.ge.s32.totalorder %s32, 4
    %s42 = sphi 0, %s44
    %s45 = sphi 0, %s42
    %s46 = sphi 0, %s45
    %s62 = sphi 0, %s46
    %s68 = sphi 0, %s70
    %s71 = sphi 0, %s68
    %s72 = sphi 0, %s71
    %s88 = sphi 0, %s72
    %s92 = sphi 0, %s92
    %s94 = sphi 0, %s92
    %s95 = sphi 0, %s94
    %s109 = sphi 0, %s95
    %s113 = sphi 0, %s113
    %s115 = sphi 0, %s113
    %s116 = sphi 0, %s115
    %s130 = sphi 0, %s116
    %s134 = sphi 0, %s134
    %s136 = sphi 0, %s134
    %s137 = sphi 0, %s136
    %s151 = sphi 0, %s137
    %s155 = sphi 0, %s155
    %s157 = sphi 0, %s155
    %s158 = sphi 0, %s157
    %s172 = sphi 0, %s158
    %s176 = sphi 0, %s176
    %s178 = sphi 0, %s176
    %s179 = sphi 0, %s178
    %s193 = sphi 0, %s179
    %s197 = sphi 0, %s197
    %s199 = sphi 0, %s197
    %s200 = sphi 0, %s199
    %s214 = sphi 0, %s200
    %s218 = sphi 0, %s218
    %s220 = sphi 0, %s218
    %s221 = sphi 0, %s220
    %s235 = sphi 0, %s221
    %s239 = sphi 0, %s239
    %s241 = sphi 0, %s239
    %s242 = sphi 0, %s241
    %s256 = sphi 0, %s242
    %s260 = sphi 0, %s260
    %s262 = sphi 0, %s260
    %s263 = sphi 0, %s262
    %s277 = sphi 0, %s263
    %s281 = sphi 0, %s281
    %s283 = sphi 0, %s281
    %s284 = sphi 0, %s283
    %s298 = sphi 0, %s284
    %s302 = sphi 0, %s302
    %s304 = sphi 0, %s302
    %s305 = sphi 0, %s304
    %s319 = sphi 0, %s305
    %s323 = sphi 0, %s323
    %s325 = sphi 0, %s323
    %s326 = sphi 0, %s325
    %s340 = sphi 0, %s326
    %s344 = sphi 0, %s344
    %s346 = sphi 0, %s344
    %s347 = sphi 0, %s346
    %s361 = sphi 0, %s347
    %s365 = sphi 0, %s365
    %s367 = sphi 0, %s365
    %s368 = sphi 0, %s367
    %s382 = sphi 0, %s368
    %s386 = sphi 0, %s386
    %s388 = sphi 0, %s386
    %s389 = sphi 0, %s388
    %s403 = sphi 0, %s389
    %s407 = sphi 0, %s407
    %s409 = sphi 0, %s407
    %s410 = sphi 0, %s409
    %s424 = sphi 0, %s410
    %s428 = sphi 0, %s428
    %s430 = sphi 0, %s428
    %s431 = sphi 0, %s430
    %s445 = sphi 0, %s431
    %s449 = sphi 0, %s449
    %s451 = sphi 0, %s449
    %s452 = sphi 0, %s451
    %s466 = sphi 0, %s452
    %s470 = sphi 0, %s470
    %s472 = sphi 0, %s470
    %s473 = sphi 0, %s472
    %s487 = sphi 0, %s473
    %s491 = sphi 0, %s491
    %s493 = sphi 0, %s491
    %s494 = sphi 0, %s493
    %s508 = sphi 0, %s494
    %s514 = sphi 0, %s516
    %s517 = sphi 0, %s514
    %s518 = sphi 0, %s517
    %s534 = sphi 0, %s518
    %s540 = sphi 0, %s542
    %s543 = sphi 0, %s540
    %s544 = sphi 0, %s543
    %s560 = sphi 0, %s544
    %s566 = sphi 0, %s568
    %s569 = sphi 0, %s566
    %s570 = sphi 0, %s569
    %s586 = sphi 0, %s570
    %s592 = sphi 0, %s594
    %s595 = sphi 0, %s592
    %s596 = sphi 0, %s595
    %s612 = sphi 0, %s596
  $region4: #{vae_forward.1} parent=0 // loop_header_branch
    %35 = sbr.rel (%p33) target = $region8
  $region5: #{vae_forward.1} parent=0 // loop_body
    %s37 = ssub.s32 %s32, 1
    %s38 = ssub.s32 %s32, 2
    %s39 = sadd.s32 %s32, 1
    %s40 = ssub.s32 %s32, %s39
    %p41 = scmp.eq.s32.totalorder %s40, 0
    %s43 = sadd.s32 %s42, 1
    %s44 = scalar_select %p41, %s42, %s43
    %p47 = pneg %p41
    %p48 = scmp.eq.s32.totalorder %s32, 1
    %p49 = por %p47, %p48
    %p50 = scmp.ne.s32.totalorder %s42, %s45
    %p51 = scmp.eq.s32.totalorder %s32, 0
    %p52 = por %p50, %p51
    %p53 = scmp.ne.s32.totalorder %s42, %s45
    %p54 = scmp.eq.s32.totalorder %s37, 1
    %p55 = por %p53, %p54
    %p56 = scmp.ne.s32.totalorder %s45, %s46
    %p57 = scmp.eq.s32.totalorder %s37, 0
    %p58 = por %p56, %p57
    %p59 = scmp.ne.s32.totalorder %s45, %s46
    %p60 = scmp.eq.s32.totalorder %s38, 1
    %p61 = por %p59, %p60
    %p63 = scmp.ne.s32.totalorder %s46, %s62
    %p64 = scmp.eq.s32.totalorder %s38, 0
    %p65 = por %p63, %p64
    %s66 = ssub.s32 %s32, %s39
    %p67 = scmp.eq.s32.totalorder %s66, 0
    %s69 = sadd.s32 %s68, 1
    %s70 = scalar_select %p67, %s68, %s69
    %p73 = pneg %p67
    %p74 = scmp.eq.s32.totalorder %s32, 1
    %p75 = por %p73, %p74
    %p76 = scmp.ne.s32.totalorder %s68, %s71
    %p77 = scmp.eq.s32.totalorder %s32, 0
    %p78 = por %p76, %p77
    %p79 = scmp.ne.s32.totalorder %s68, %s71
    %p80 = scmp.eq.s32.totalorder %s37, 1
    %p81 = por %p79, %p80
    %p82 = scmp.ne.s32.totalorder %s71, %s72
    %p83 = scmp.eq.s32.totalorder %s37, 0
    %p84 = por %p82, %p83
    %p85 = scmp.ne.s32.totalorder %s71, %s72
    %p86 = scmp.eq.s32.totalorder %s38, 1
    %p87 = por %p85, %p86
    %p89 = scmp.ne.s32.totalorder %s72, %s88
    %p90 = scmp.eq.s32.totalorder %s38, 0
    %p91 = por %p89, %p90
    %s93 = sadd.s32 %s92, 1
    %p96 = scmp.eq.s32.totalorder %s32, 1
    %p97 = scmp.ne.s32.totalorder %s92, %s94
    %p98 = scmp.eq.s32.totalorder %s32, 0
    %p99 = por %p97, %p98
    %p100 = scmp.ne.s32.totalorder %s92, %s94
    %p101 = scmp.eq.s32.totalorder %s37, 1
    %p102 = por %p100, %p101
    %p103 = scmp.ne.s32.totalorder %s94, %s95
    %p104 = scmp.eq.s32.totalorder %s37, 0
    %p105 = por %p103, %p104
    %p106 = scmp.ne.s32.totalorder %s94, %s95
    %p107 = scmp.eq.s32.totalorder %s38, 1
    %p108 = por %p106, %p107
    %p110 = scmp.ne.s32.totalorder %s95, %s109
    %p111 = scmp.eq.s32.totalorder %s38, 0
    %p112 = por %p110, %p111
    %s114 = sadd.s32 %s113, 1
    %p117 = scmp.eq.s32.totalorder %s32, 1
    %p118 = scmp.ne.s32.totalorder %s113, %s115
    %p119 = scmp.eq.s32.totalorder %s32, 0
    %p120 = por %p118, %p119
    %p121 = scmp.ne.s32.totalorder %s113, %s115
    %p122 = scmp.eq.s32.totalorder %s37, 1
    %p123 = por %p121, %p122
    %p124 = scmp.ne.s32.totalorder %s115, %s116
    %p125 = scmp.eq.s32.totalorder %s37, 0
    %p126 = por %p124, %p125
    %p127 = scmp.ne.s32.totalorder %s115, %s116
    %p128 = scmp.eq.s32.totalorder %s38, 1
    %p129 = por %p127, %p128
    %p131 = scmp.ne.s32.totalorder %s116, %s130
    %p132 = scmp.eq.s32.totalorder %s38, 0
    %p133 = por %p131, %p132
    %s135 = sadd.s32 %s134, 1
    %p138 = scmp.eq.s32.totalorder %s32, 1
    %p139 = scmp.ne.s32.totalorder %s134, %s136
    %p140 = scmp.eq.s32.totalorder %s32, 0
    %p141 = por %p139, %p140
    %p142 = scmp.ne.s32.totalorder %s134, %s136
    %p143 = scmp.eq.s32.totalorder %s37, 1
    %p144 = por %p142, %p143
    %p145 = scmp.ne.s32.totalorder %s136, %s137
    %p146 = scmp.eq.s32.totalorder %s37, 0
    %p147 = por %p145, %p146
    %p148 = scmp.ne.s32.totalorder %s136, %s137
    %p149 = scmp.eq.s32.totalorder %s38, 1
    %p150 = por %p148, %p149
    %p152 = scmp.ne.s32.totalorder %s137, %s151
    %p153 = scmp.eq.s32.totalorder %s38, 0
    %p154 = por %p152, %p153
    %s156 = sadd.s32 %s155, 1
    %p159 = scmp.eq.s32.totalorder %s32, 1
    %p160 = scmp.ne.s32.totalorder %s155, %s157
    %p161 = scmp.eq.s32.totalorder %s32, 0
    %p162 = por %p160, %p161
    %p163 = scmp.ne.s32.totalorder %s155, %s157
    %p164 = scmp.eq.s32.totalorder %s37, 1
    %p165 = por %p163, %p164
    %p166 = scmp.ne.s32.totalorder %s157, %s158
    %p167 = scmp.eq.s32.totalorder %s37, 0
    %p168 = por %p166, %p167
    %p169 = scmp.ne.s32.totalorder %s157, %s158
    %p170 = scmp.eq.s32.totalorder %s38, 1
    %p171 = por %p169, %p170
    %p173 = scmp.ne.s32.totalorder %s158, %s172
    %p174 = scmp.eq.s32.totalorder %s38, 0
    %p175 = por %p173, %p174
    %s177 = sadd.s32 %s176, 1
    %p180 = scmp.eq.s32.totalorder %s32, 1
    %p181 = scmp.ne.s32.totalorder %s176, %s178
    %p182 = scmp.eq.s32.totalorder %s32, 0
    %p183 = por %p181, %p182
    %p184 = scmp.ne.s32.totalorder %s176, %s178
    %p185 = scmp.eq.s32.totalorder %s37, 1
    %p186 = por %p184, %p185
    %p187 = scmp.ne.s32.totalorder %s178, %s179
    %p188 = scmp.eq.s32.totalorder %s37, 0
    %p189 = por %p187, %p188
    %p190 = scmp.ne.s32.totalorder %s178, %s179
    %p191 = scmp.eq.s32.totalorder %s38, 1
    %p192 = por %p190, %p191
    %p194 = scmp.ne.s32.totalorder %s179, %s193
    %p195 = scmp.eq.s32.totalorder %s38, 0
    %p196 = por %p194, %p195
    %s198 = sadd.s32 %s197, 1
    %p201 = scmp.eq.s32.totalorder %s32, 1
    %p202 = scmp.ne.s32.totalorder %s197, %s199
    %p203 = scmp.eq.s32.totalorder %s32, 0
    %p204 = por %p202, %p203
    %p205 = scmp.ne.s32.totalorder %s197, %s199
    %p206 = scmp.eq.s32.totalorder %s37, 1
    %p207 = por %p205, %p206
    %p208 = scmp.ne.s32.totalorder %s199, %s200
    %p209 = scmp.eq.s32.totalorder %s37, 0
    %p210 = por %p208, %p209
    %p211 = scmp.ne.s32.totalorder %s199, %s200
    %p212 = scmp.eq.s32.totalorder %s38, 1
    %p213 = por %p211, %p212
    %p215 = scmp.ne.s32.totalorder %s200, %s214
    %p216 = scmp.eq.s32.totalorder %s38, 0
    %p217 = por %p215, %p216
    %s219 = sadd.s32 %s218, 1
    %p222 = scmp.eq.s32.totalorder %s32, 1
    %p223 = scmp.ne.s32.totalorder %s218, %s220
    %p224 = scmp.eq.s32.totalorder %s32, 0
    %p225 = por %p223, %p224
    %p226 = scmp.ne.s32.totalorder %s218, %s220
    %p227 = scmp.eq.s32.totalorder %s37, 1
    %p228 = por %p226, %p227
    %p229 = scmp.ne.s32.totalorder %s220, %s221
    %p230 = scmp.eq.s32.totalorder %s37, 0
    %p231 = por %p229, %p230
    %p232 = scmp.ne.s32.totalorder %s220, %s221
    %p233 = scmp.eq.s32.totalorder %s38, 1
    %p234 = por %p232, %p233
    %p236 = scmp.ne.s32.totalorder %s221, %s235
    %p237 = scmp.eq.s32.totalorder %s38, 0
    %p238 = por %p236, %p237
    %s240 = sadd.s32 %s239, 1
    %p243 = scmp.eq.s32.totalorder %s32, 1
    %p244 = scmp.ne.s32.totalorder %s239, %s241
    %p245 = scmp.eq.s32.totalorder %s32, 0
    %p246 = por %p244, %p245
    %p247 = scmp.ne.s32.totalorder %s239, %s241
    %p248 = scmp.eq.s32.totalorder %s37, 1
    %p249 = por %p247, %p248
    %p250 = scmp.ne.s32.totalorder %s241, %s242
    %p251 = scmp.eq.s32.totalorder %s37, 0
    %p252 = por %p250, %p251
    %p253 = scmp.ne.s32.totalorder %s241, %s242
    %p254 = scmp.eq.s32.totalorder %s38, 1
    %p255 = por %p253, %p254
    %p257 = scmp.ne.s32.totalorder %s242, %s256
    %p258 = scmp.eq.s32.totalorder %s38, 0
    %p259 = por %p257, %p258
    %s261 = sadd.s32 %s260, 1
    %p264 = scmp.eq.s32.totalorder %s32, 1
    %p265 = scmp.ne.s32.totalorder %s260, %s262
    %p266 = scmp.eq.s32.totalorder %s32, 0
    %p267 = por %p265, %p266
    %p268 = scmp.ne.s32.totalorder %s260, %s262
    %p269 = scmp.eq.s32.totalorder %s37, 1
    %p270 = por %p268, %p269
    %p271 = scmp.ne.s32.totalorder %s262, %s263
    %p272 = scmp.eq.s32.totalorder %s37, 0
    %p273 = por %p271, %p272
    %p274 = scmp.ne.s32.totalorder %s262, %s263
    %p275 = scmp.eq.s32.totalorder %s38, 1
    %p276 = por %p274, %p275
    %p278 = scmp.ne.s32.totalorder %s263, %s277
    %p279 = scmp.eq.s32.totalorder %s38, 0
    %p280 = por %p278, %p279
    %s282 = sadd.s32 %s281, 1
    %p285 = scmp.eq.s32.totalorder %s32, 1
    %p286 = scmp.ne.s32.totalorder %s281, %s283
    %p287 = scmp.eq.s32.totalorder %s32, 0
    %p288 = por %p286, %p287
    %p289 = scmp.ne.s32.totalorder %s281, %s283
    %p290 = scmp.eq.s32.totalorder %s37, 1
    %p291 = por %p289, %p290
    %p292 = scmp.ne.s32.totalorder %s283, %s284
    %p293 = scmp.eq.s32.totalorder %s37, 0
    %p294 = por %p292, %p293
    %p295 = scmp.ne.s32.totalorder %s283, %s284
    %p296 = scmp.eq.s32.totalorder %s38, 1
    %p297 = por %p295, %p296
    %p299 = scmp.ne.s32.totalorder %s284, %s298
    %p300 = scmp.eq.s32.totalorder %s38, 0
    %p301 = por %p299, %p300
    %s303 = sadd.s32 %s302, 1
    %p306 = scmp.eq.s32.totalorder %s32, 1
    %p307 = scmp.ne.s32.totalorder %s302, %s304
    %p308 = scmp.eq.s32.totalorder %s32, 0
    %p309 = por %p307, %p308
    %p310 = scmp.ne.s32.totalorder %s302, %s304
    %p311 = scmp.eq.s32.totalorder %s37, 1
    %p312 = por %p310, %p311
    %p313 = scmp.ne.s32.totalorder %s304, %s305
    %p314 = scmp.eq.s32.totalorder %s37, 0
    %p315 = por %p313, %p314
    %p316 = scmp.ne.s32.totalorder %s304, %s305
    %p317 = scmp.eq.s32.totalorder %s38, 1
    %p318 = por %p316, %p317
    %p320 = scmp.ne.s32.totalorder %s305, %s319
    %p321 = scmp.eq.s32.totalorder %s38, 0
    %p322 = por %p320, %p321
    %s324 = sadd.s32 %s323, 1
    %p327 = scmp.eq.s32.totalorder %s32, 1
    %p328 = scmp.ne.s32.totalorder %s323, %s325
    %p329 = scmp.eq.s32.totalorder %s32, 0
    %p330 = por %p328, %p329
    %p331 = scmp.ne.s32.totalorder %s323, %s325
    %p332 = scmp.eq.s32.totalorder %s37, 1
    %p333 = por %p331, %p332
    %p334 = scmp.ne.s32.totalorder %s325, %s326
    %p335 = scmp.eq.s32.totalorder %s37, 0
    %p336 = por %p334, %p335
    %p337 = scmp.ne.s32.totalorder %s325, %s326
    %p338 = scmp.eq.s32.totalorder %s38, 1
    %p339 = por %p337, %p338
    %p341 = scmp.ne.s32.totalorder %s326, %s340
    %p342 = scmp.eq.s32.totalorder %s38, 0
    %p343 = por %p341, %p342
    %s345 = sadd.s32 %s344, 1
    %p348 = scmp.eq.s32.totalorder %s32, 1
    %p349 = scmp.ne.s32.totalorder %s344, %s346
    %p350 = scmp.eq.s32.totalorder %s32, 0
    %p351 = por %p349, %p350
    %p352 = scmp.ne.s32.totalorder %s344, %s346
    %p353 = scmp.eq.s32.totalorder %s37, 1
    %p354 = por %p352, %p353
    %p355 = scmp.ne.s32.totalorder %s346, %s347
    %p356 = scmp.eq.s32.totalorder %s37, 0
    %p357 = por %p355, %p356
    %p358 = scmp.ne.s32.totalorder %s346, %s347
    %p359 = scmp.eq.s32.totalorder %s38, 1
    %p360 = por %p358, %p359
    %p362 = scmp.ne.s32.totalorder %s347, %s361
    %p363 = scmp.eq.s32.totalorder %s38, 0
    %p364 = por %p362, %p363
    %s366 = sadd.s32 %s365, 1
    %p369 = scmp.eq.s32.totalorder %s32, 1
    %p370 = scmp.ne.s32.totalorder %s365, %s367
    %p371 = scmp.eq.s32.totalorder %s32, 0
    %p372 = por %p370, %p371
    %p373 = scmp.ne.s32.totalorder %s365, %s367
    %p374 = scmp.eq.s32.totalorder %s37, 1
    %p375 = por %p373, %p374
    %p376 = scmp.ne.s32.totalorder %s367, %s368
    %p377 = scmp.eq.s32.totalorder %s37, 0
    %p378 = por %p376, %p377
    %p379 = scmp.ne.s32.totalorder %s367, %s368
    %p380 = scmp.eq.s32.totalorder %s38, 1
    %p381 = por %p379, %p380
    %p383 = scmp.ne.s32.totalorder %s368, %s382
    %p384 = scmp.eq.s32.totalorder %s38, 0
    %p385 = por %p383, %p384
    %s387 = sadd.s32 %s386, 1
    %p390 = scmp.eq.s32.totalorder %s32, 1
    %p391 = scmp.ne.s32.totalorder %s386, %s388
    %p392 = scmp.eq.s32.totalorder %s32, 0
    %p393 = por %p391, %p392
    %p394 = scmp.ne.s32.totalorder %s386, %s388
    %p395 = scmp.eq.s32.totalorder %s37, 1
    %p396 = por %p394, %p395
    %p397 = scmp.ne.s32.totalorder %s388, %s389
    %p398 = scmp.eq.s32.totalorder %s37, 0
    %p399 = por %p397, %p398
    %p400 = scmp.ne.s32.totalorder %s388, %s389
    %p401 = scmp.eq.s32.totalorder %s38, 1
    %p402 = por %p400, %p401
    %p404 = scmp.ne.s32.totalorder %s389, %s403
    %p405 = scmp.eq.s32.totalorder %s38, 0
    %p406 = por %p404, %p405
    %s408 = sadd.s32 %s407, 1
    %p411 = scmp.eq.s32.totalorder %s32, 1
    %p412 = scmp.ne.s32.totalorder %s407, %s409
    %p413 = scmp.eq.s32.totalorder %s32, 0
    %p414 = por %p412, %p413
    %p415 = scmp.ne.s32.totalorder %s407, %s409
    %p416 = scmp.eq.s32.totalorder %s37, 1
    %p417 = por %p415, %p416
    %p418 = scmp.ne.s32.totalorder %s409, %s410
    %p419 = scmp.eq.s32.totalorder %s37, 0
    %p420 = por %p418, %p419
    %p421 = scmp.ne.s32.totalorder %s409, %s410
    %p422 = scmp.eq.s32.totalorder %s38, 1
    %p423 = por %p421, %p422
    %p425 = scmp.ne.s32.totalorder %s410, %s424
    %p426 = scmp.eq.s32.totalorder %s38, 0
    %p427 = por %p425, %p426
    %s429 = sadd.s32 %s428, 1
    %p432 = scmp.eq.s32.totalorder %s32, 1
    %p433 = scmp.ne.s32.totalorder %s428, %s430
    %p434 = scmp.eq.s32.totalorder %s32, 0
    %p435 = por %p433, %p434
    %p436 = scmp.ne.s32.totalorder %s428, %s430
    %p437 = scmp.eq.s32.totalorder %s37, 1
    %p438 = por %p436, %p437
    %p439 = scmp.ne.s32.totalorder %s430, %s431
    %p440 = scmp.eq.s32.totalorder %s37, 0
    %p441 = por %p439, %p440
    %p442 = scmp.ne.s32.totalorder %s430, %s431
    %p443 = scmp.eq.s32.totalorder %s38, 1
    %p444 = por %p442, %p443
    %p446 = scmp.ne.s32.totalorder %s431, %s445
    %p447 = scmp.eq.s32.totalorder %s38, 0
    %p448 = por %p446, %p447
    %s450 = sadd.s32 %s449, 1
    %p453 = scmp.eq.s32.totalorder %s32, 1
    %p454 = scmp.ne.s32.totalorder %s449, %s451
    %p455 = scmp.eq.s32.totalorder %s32, 0
    %p456 = por %p454, %p455
    %p457 = scmp.ne.s32.totalorder %s449, %s451
    %p458 = scmp.eq.s32.totalorder %s37, 1
    %p459 = por %p457, %p458
    %p460 = scmp.ne.s32.totalorder %s451, %s452
    %p461 = scmp.eq.s32.totalorder %s37, 0
    %p462 = por %p460, %p461
    %p463 = scmp.ne.s32.totalorder %s451, %s452
    %p464 = scmp.eq.s32.totalorder %s38, 1
    %p465 = por %p463, %p464
    %p467 = scmp.ne.s32.totalorder %s452, %s466
    %p468 = scmp.eq.s32.totalorder %s38, 0
    %p469 = por %p467, %p468
    %s471 = sadd.s32 %s470, 1
    %p474 = scmp.eq.s32.totalorder %s32, 1
    %p475 = scmp.ne.s32.totalorder %s470, %s472
    %p476 = scmp.eq.s32.totalorder %s32, 0
    %p477 = por %p475, %p476
    %p478 = scmp.ne.s32.totalorder %s470, %s472
    %p479 = scmp.eq.s32.totalorder %s37, 1
    %p480 = por %p478, %p479
    %p481 = scmp.ne.s32.totalorder %s472, %s473
    %p482 = scmp.eq.s32.totalorder %s37, 0
    %p483 = por %p481, %p482
    %p484 = scmp.ne.s32.totalorder %s472, %s473
    %p485 = scmp.eq.s32.totalorder %s38, 1
    %p486 = por %p484, %p485
    %p488 = scmp.ne.s32.totalorder %s473, %s487
    %p489 = scmp.eq.s32.totalorder %s38, 0
    %p490 = por %p488, %p489
    %s492 = sadd.s32 %s491, 1
    %p495 = scmp.eq.s32.totalorder %s32, 1
    %p496 = scmp.ne.s32.totalorder %s491, %s493
    %p497 = scmp.eq.s32.totalorder %s32, 0
    %p498 = por %p496, %p497
    %p499 = scmp.ne.s32.totalorder %s491, %s493
    %p500 = scmp.eq.s32.totalorder %s37, 1
    %p501 = por %p499, %p500
    %p502 = scmp.ne.s32.totalorder %s493, %s494
    %p503 = scmp.eq.s32.totalorder %s37, 0
    %p504 = por %p502, %p503
    %p505 = scmp.ne.s32.totalorder %s493, %s494
    %p506 = scmp.eq.s32.totalorder %s38, 1
    %p507 = por %p505, %p506
    %p509 = scmp.ne.s32.totalorder %s494, %s508
    %p510 = scmp.eq.s32.totalorder %s38, 0
    %p511 = por %p509, %p510
    %s512 = ssub.s32 %s32, %s39
    %p513 = scmp.eq.s32.totalorder %s512, 0
    %s515 = sadd.s32 %s514, 1
    %s516 = scalar_select %p513, %s514, %s515
    %p519 = pneg %p513
    %p520 = scmp.eq.s32.totalorder %s32, 1
    %p521 = por %p519, %p520
    %p522 = scmp.ne.s32.totalorder %s514, %s517
    %p523 = scmp.eq.s32.totalorder %s32, 0
    %p524 = por %p522, %p523
    %p525 = scmp.ne.s32.totalorder %s514, %s517
    %p526 = scmp.eq.s32.totalorder %s37, 1
    %p527 = por %p525, %p526
    %p528 = scmp.ne.s32.totalorder %s517, %s518
    %p529 = scmp.eq.s32.totalorder %s37, 0
    %p530 = por %p528, %p529
    %p531 = scmp.ne.s32.totalorder %s517, %s518
    %p532 = scmp.eq.s32.totalorder %s38, 1
    %p533 = por %p531, %p532
    %p535 = scmp.ne.s32.totalorder %s518, %s534
    %p536 = scmp.eq.s32.totalorder %s38, 0
    %p537 = por %p535, %p536
    %s538 = ssub.s32 %s32, %s39
    %p539 = scmp.eq.s32.totalorder %s538, 0
    %s541 = sadd.s32 %s540, 1
    %s542 = scalar_select %p539, %s540, %s541
    %p545 = pneg %p539
    %p546 = scmp.eq.s32.totalorder %s32, 1
    %p547 = por %p545, %p546
    %p548 = scmp.ne.s32.totalorder %s540, %s543
    %p549 = scmp.eq.s32.totalorder %s32, 0
    %p550 = por %p548, %p549
    %p551 = scmp.ne.s32.totalorder %s540, %s543
    %p552 = scmp.eq.s32.totalorder %s37, 1
    %p553 = por %p551, %p552
    %p554 = scmp.ne.s32.totalorder %s543, %s544
    %p555 = scmp.eq.s32.totalorder %s37, 0
    %p556 = por %p554, %p555
    %p557 = scmp.ne.s32.totalorder %s543, %s544
    %p558 = scmp.eq.s32.totalorder %s38, 1
    %p559 = por %p557, %p558
    %p561 = scmp.ne.s32.totalorder %s544, %s560
    %p562 = scmp.eq.s32.totalorder %s38, 0
    %p563 = por %p561, %p562
    %s564 = ssub.s32 %s32, %s39
    %p565 = scmp.eq.s32.totalorder %s564, 0
    %s567 = sadd.s32 %s566, 1
    %s568 = scalar_select %p565, %s566, %s567
    %p571 = pneg %p565
    %p572 = scmp.eq.s32.totalorder %s32, 1
    %p573 = por %p571, %p572
    %p574 = scmp.ne.s32.totalorder %s566, %s569
    %p575 = scmp.eq.s32.totalorder %s32, 0
    %p576 = por %p574, %p575
    %p577 = scmp.ne.s32.totalorder %s566, %s569
    %p578 = scmp.eq.s32.totalorder %s37, 1
    %p579 = por %p577, %p578
    %p580 = scmp.ne.s32.totalorder %s569, %s570
    %p581 = scmp.eq.s32.totalorder %s37, 0
    %p582 = por %p580, %p581
    %p583 = scmp.ne.s32.totalorder %s569, %s570
    %p584 = scmp.eq.s32.totalorder %s38, 1
    %p585 = por %p583, %p584
    %p587 = scmp.ne.s32.totalorder %s570, %s586
    %p588 = scmp.eq.s32.totalorder %s38, 0
    %p589 = por %p587, %p588
    %s590 = ssub.s32 %s32, %s39
    %p591 = scmp.eq.s32.totalorder %s590, 0
    %s593 = sadd.s32 %s592, 1
    %s594 = scalar_select %p591, %s592, %s593
    %p597 = pneg %p591
    %p598 = scmp.eq.s32.totalorder %s32, 1
    %p599 = por %p597, %p598
    %p600 = scmp.ne.s32.totalorder %s592, %s595
    %p601 = scmp.eq.s32.totalorder %s32, 0
    %p602 = por %p600, %p601
    %p603 = scmp.ne.s32.totalorder %s592, %s595
    %p604 = scmp.eq.s32.totalorder %s37, 1
    %p605 = por %p603, %p604
    %p606 = scmp.ne.s32.totalorder %s595, %s596
    %p607 = scmp.eq.s32.totalorder %s37, 0
    %p608 = por %p606, %p607
    %p609 = scmp.ne.s32.totalorder %s595, %s596
    %p610 = scmp.eq.s32.totalorder %s38, 1
    %p611 = por %p609, %p610
    %p613 = scmp.ne.s32.totalorder %s596, %s612
    %p614 = scmp.eq.s32.totalorder %s38, 0
    %p615 = por %p613, %p614
    %p616 = scmp.le.s32.totalorder 1, %s32
    %p617 = scmp.lt.s32.totalorder %s32, 3
    %p618 = pnand %p616, %p617
    %p619 = pneg %p618
    // Predicated region
    $region9: #{vae_forward.1} parent=5 // pred_check
      _
    $region10: #{vae_forward.1} parent=5 // pred_check_branch
      %621 = sbr.rel (%p618) target = $region12
    $region11: #{vae_forward.1} parent=5 // pred_region
      %s622 = ssub.s32 %s32, 1
      // Predicated region
      $region13: #{vae_forward.1} parent=11 // pred_check
        %p623 = pneg %p105
      $region14: #{vae_forward.1} parent=11 // pred_check_branch
        %625 = sbr.rel (%p623) target = $region16
      $region15: #{vae_forward.1} parent=11 // pred_region
        _
      $region16: #{vae_forward.1} parent=11 // pred_fallthru
        _
      // Predicated region
      $region17: #{vae_forward.1} parent=11 // pred_check
        %p626 = pneg %p126
      $region18: #{vae_forward.1} parent=11 // pred_check_branch
        %628 = sbr.rel (%p626) target = $region20
      $region19: #{vae_forward.1} parent=11 // pred_region
        _
      $region20: #{vae_forward.1} parent=11 // pred_fallthru
        _
      // Predicated region
      $region21: #{vae_forward.1} parent=11 // pred_check
        %p629 = pneg %p147
      $region22: #{vae_forward.1} parent=11 // pred_check_branch
        %631 = sbr.rel (%p629) target = $region24
      $region23: #{vae_forward.1} parent=11 // pred_region
        _
      $region24: #{vae_forward.1} parent=11 // pred_fallthru
        _
      // Predicated region
      $region25: #{vae_forward.1} parent=11 // pred_check
        %p632 = pneg %p168
      $region26: #{vae_forward.1} parent=11 // pred_check_branch
        %634 = sbr.rel (%p632) target = $region28
      $region27: #{vae_forward.1} parent=11 // pred_region
        _
      $region28: #{vae_forward.1} parent=11 // pred_fallthru
        _
      // Predicated region
      $region29: #{vae_forward.1} parent=11 // pred_check
        %p635 = pneg %p189
      $region30: #{vae_forward.1} parent=11 // pred_check_branch
        %637 = sbr.rel (%p635) target = $region32
      $region31: #{vae_forward.1} parent=11 // pred_region
        _
      $region32: #{vae_forward.1} parent=11 // pred_fallthru
        _
      // Predicated region
      $region33: #{vae_forward.1} parent=11 // pred_check
        %p638 = pneg %p210
      $region34: #{vae_forward.1} parent=11 // pred_check_branch
        %640 = sbr.rel (%p638) target = $region36
      $region35: #{vae_forward.1} parent=11 // pred_region
        _
      $region36: #{vae_forward.1} parent=11 // pred_fallthru
        _
      // Predicated region
      $region37: #{vae_forward.1} parent=11 // pred_check
        %p641 = pneg %p231
      $region38: #{vae_forward.1} parent=11 // pred_check_branch
        %643 = sbr.rel (%p641) target = $region40
      $region39: #{vae_forward.1} parent=11 // pred_region
        _
      $region40: #{vae_forward.1} parent=11 // pred_fallthru
        _
      // Predicated region
      $region41: #{vae_forward.1} parent=11 // pred_check
        %p644 = pneg %p252
      $region42: #{vae_forward.1} parent=11 // pred_check_branch
        %646 = sbr.rel (%p644) target = $region44
      $region43: #{vae_forward.1} parent=11 // pred_region
        _
      $region44: #{vae_forward.1} parent=11 // pred_fallthru
        _
      // Predicated region
      $region45: #{vae_forward.1} parent=11 // pred_check
        %p647 = pneg %p273
      $region46: #{vae_forward.1} parent=11 // pred_check_branch
        %649 = sbr.rel (%p647) target = $region48
      $region47: #{vae_forward.1} parent=11 // pred_region
        _
      $region48: #{vae_forward.1} parent=11 // pred_fallthru
        _
      // Predicated region
      $region49: #{vae_forward.1} parent=11 // pred_check
        %p650 = pneg %p294
      $region50: #{vae_forward.1} parent=11 // pred_check_branch
        %652 = sbr.rel (%p650) target = $region52
      $region51: #{vae_forward.1} parent=11 // pred_region
        _
      $region52: #{vae_forward.1} parent=11 // pred_fallthru
        _
      // Predicated region
      $region53: #{vae_forward.1} parent=11 // pred_check
        %p653 = pneg %p315
      $region54: #{vae_forward.1} parent=11 // pred_check_branch
        %655 = sbr.rel (%p653) target = $region56
      $region55: #{vae_forward.1} parent=11 // pred_region
        _
      $region56: #{vae_forward.1} parent=11 // pred_fallthru
        _
      // Predicated region
      $region57: #{vae_forward.1} parent=11 // pred_check
        %p656 = pneg %p336
      $region58: #{vae_forward.1} parent=11 // pred_check_branch
        %658 = sbr.rel (%p656) target = $region60
      $region59: #{vae_forward.1} parent=11 // pred_region
        _
      $region60: #{vae_forward.1} parent=11 // pred_fallthru
        _
      // Predicated region
      $region61: #{vae_forward.1} parent=11 // pred_check
        %p659 = pneg %p357
      $region62: #{vae_forward.1} parent=11 // pred_check_branch
        %661 = sbr.rel (%p659) target = $region64
      $region63: #{vae_forward.1} parent=11 // pred_region
        _
      $region64: #{vae_forward.1} parent=11 // pred_fallthru
        _
      // Predicated region
      $region65: #{vae_forward.1} parent=11 // pred_check
        %p662 = pneg %p378
      $region66: #{vae_forward.1} parent=11 // pred_check_branch
        %664 = sbr.rel (%p662) target = $region68
      $region67: #{vae_forward.1} parent=11 // pred_region
        _
      $region68: #{vae_forward.1} parent=11 // pred_fallthru
        _
      // Predicated region
      $region69: #{vae_forward.1} parent=11 // pred_check
        %p665 = pneg %p399
      $region70: #{vae_forward.1} parent=11 // pred_check_branch
        %667 = sbr.rel (%p665) target = $region72
      $region71: #{vae_forward.1} parent=11 // pred_region
        _
      $region72: #{vae_forward.1} parent=11 // pred_fallthru
        _
      // Predicated region
      $region73: #{vae_forward.1} parent=11 // pred_check
        %p668 = pneg %p420
      $region74: #{vae_forward.1} parent=11 // pred_check_branch
        %670 = sbr.rel (%p668) target = $region76
      $region75: #{vae_forward.1} parent=11 // pred_region
        _
      $region76: #{vae_forward.1} parent=11 // pred_fallthru
        _
      // Predicated region
      $region77: #{vae_forward.1} parent=11 // pred_check
        %p671 = pneg %p441
      $region78: #{vae_forward.1} parent=11 // pred_check_branch
        %673 = sbr.rel (%p671) target = $region80
      $region79: #{vae_forward.1} parent=11 // pred_region
        _
      $region80: #{vae_forward.1} parent=11 // pred_fallthru
        _
      // Predicated region
      $region81: #{vae_forward.1} parent=11 // pred_check
        %p674 = pneg %p462
      $region82: #{vae_forward.1} parent=11 // pred_check_branch
        %676 = sbr.rel (%p674) target = $region84
      $region83: #{vae_forward.1} parent=11 // pred_region
        _
      $region84: #{vae_forward.1} parent=11 // pred_fallthru
        _
      // Predicated region
      $region85: #{vae_forward.1} parent=11 // pred_check
        %p677 = pneg %p483
      $region86: #{vae_forward.1} parent=11 // pred_check_branch
        %679 = sbr.rel (%p677) target = $region88
      $region87: #{vae_forward.1} parent=11 // pred_region
        _
      $region88: #{vae_forward.1} parent=11 // pred_fallthru
        _
      // Predicated region
      $region89: #{vae_forward.1} parent=11 // pred_check
        %p680 = pneg %p504
      $region90: #{vae_forward.1} parent=11 // pred_check_branch
        %682 = sbr.rel (%p680) target = $region92
      $region91: #{vae_forward.1} parent=11 // pred_region
        _
      $region92: #{vae_forward.1} parent=11 // pred_fallthru
        _
    $region12: #{vae_forward.1} parent=5 // pred_fallthru
      _
    %p683 = scmp.lt.s32.totalorder %s32, 2
    // Predicated region
    $region93: #{vae_forward.1} parent=5 // pred_check
      %p684 = pneg %p683
    $region94: #{vae_forward.1} parent=5 // pred_check_branch
      %686 = sbr.rel (%p684) target = $region96
    $region95: #{vae_forward.1} parent=5 // pred_region
      // Predicated region
      $region97: #{vae_forward.1} parent=95 // pred_check
        %p687 = pneg %p52
      $region98: #{vae_forward.1} parent=95 // pred_check_branch
        %689 = sbr.rel (%p687) target = $region100
      $region99: #{vae_forward.1} parent=95 // pred_region
        %s690 = smul.u32 2, %s32
        %p691 = scmp.lt.s32.totalorder %s690, 3
        %s692 = scalar_select %p691, %s690, 3
        %s693 = smul.addr %s692, 8
        %s694 = scalar_lea.vmem %s0, %s693
        %s695 = smul.u32 2, %s32
      $region100: #{vae_forward.1} parent=95 // pred_fallthru
        _
      // Predicated region
      $region101: #{vae_forward.1} parent=95 // pred_check
        %p696 = pneg %p78
      $region102: #{vae_forward.1} parent=95 // pred_check_branch
        %698 = sbr.rel (%p696) target = $region104
      $region103: #{vae_forward.1} parent=95 // pred_region
        %s699 = smul.u32 2, %s32
        %p700 = scmp.lt.s32.totalorder %s699, 3
        %s701 = scalar_select %p700, %s699, 3
        %s702 = smul.addr %s701, 8
        %s703 = scalar_lea.vmem %s1, %s702
        %s704 = smul.u32 2, %s32
      $region104: #{vae_forward.1} parent=95 // pred_fallthru
        _
    $region96: #{vae_forward.1} parent=5 // pred_fallthru
      _
    %p705 = scmp.le.s32.totalorder 1, %s32
    %p706 = scmp.lt.s32.totalorder %s32, 3
    %p707 = pnand %p705, %p706
    %p708 = pneg %p707
    // Predicated region
    $region105: #{vae_forward.1} parent=5 // pred_check
      _
    $region106: #{vae_forward.1} parent=5 // pred_check_branch
      %710 = sbr.rel (%p707) target = $region108
    $region107: #{vae_forward.1} parent=5 // pred_region
      %s711 = ssub.s32 %s32, 1
      %s712 = smul.u32 2, %s37
      %p713 = scmp.lt.s32.totalorder %s712, 3
      %s714 = scalar_select %p713, %s712, 3
      %s715 = smul.addr %s714, 8
      %s716 = scalar_lea.vmem %s0, %s715
      %p717 = pneg %p58
      %p718 = pneg %p55
      %s719 = smul.u32 2, %s37
      %p720 = scmp.lt.s32.totalorder %s719, 3
      %s721 = scalar_select %p720, %s719, 3
      %s722 = smul.addr %s721, 8
      %s723 = scalar_lea.vmem %s1, %s722
      %p724 = pneg %p84
      %p725 = pneg %p81
      %p726 = pneg %p105
      %p727 = pneg %p102
      %p728 = pneg %p126
      %p729 = pneg %p123
      %p730 = pneg %p147
      %p731 = pneg %p144
      %p732 = pneg %p168
      %p733 = pneg %p165
      %p734 = pneg %p189
      %p735 = pneg %p186
      %p736 = pneg %p210
      %p737 = pneg %p207
      %p738 = pneg %p231
      %p739 = pneg %p228
      %p740 = pneg %p252
      %p741 = pneg %p249
      %p742 = pneg %p273
      %p743 = pneg %p270
      %p744 = pneg %p294
      %p745 = pneg %p291
      %p746 = pneg %p315
      %p747 = pneg %p312
      %p748 = pneg %p336
      %p749 = pneg %p333
      %p750 = pneg %p357
      %p751 = pneg %p354
      %p752 = pneg %p378
      %p753 = pneg %p375
      %p754 = pneg %p399
      %p755 = pneg %p396
      %p756 = pneg %p420
      %p757 = pneg %p417
      %p758 = pneg %p441
      %p759 = pneg %p438
      %p760 = pneg %p462
      %p761 = pneg %p459
      %p762 = pneg %p483
      %p763 = pneg %p480
      %p764 = pneg %p504
      %p765 = pneg %p501
      %p766 = pneg %p530
      %p767 = pneg %p527
      %p768 = scmp.lt.s32.totalorder %s37, 1
      %s769 = scalar_select %p768, %s37, 1
      %s770 = smul.addr %s769, 8
      %s771 = scalar_lea.vmem %s22, %s770
      %p772 = pneg %p556
      %p773 = pneg %p553
      %s774 = smul.u32 2, %s37
      %p775 = scmp.lt.s32.totalorder %s774, 3
      %s776 = scalar_select %p775, %s774, 3
      %s777 = smul.addr %s776, 8
      %s778 = scalar_lea.vmem %s23, %s777
      %p779 = pneg %p582
      %p780 = pneg %p579
      %s781 = smul.u32 2, %s37
      %p782 = scmp.lt.s32.totalorder %s781, 3
      %s783 = scalar_select %p782, %s781, 3
      %s784 = smul.addr %s783, 8
      %s785 = scalar_lea.vmem %s24, %s784
      %p786 = pneg %p608
      %p787 = pneg %p605
      %s788 = smul.u32 2, %s37
      %p789 = scmp.lt.s32.totalorder %s788, 3
      %s790 = scalar_select %p789, %s788, 3
      %s791 = smul.addr %s790, 8
      %s792 = scalar_lea.vmem %s25, %s791
      %s793 = smul.u32 2, %s37
      %p794 = scmp.lt.s32.totalorder %s793, 3
      %s795 = scalar_select %p794, %s793, 3
      %s796 = smul.addr %s795, 8
      %s797 = scalar_lea.vmem %s0, %s796
      %s798 = smul.u32 2, %s37
      %s799 = smul.u32 2, %s37
      %p800 = scmp.lt.s32.totalorder %s799, 3
      %s801 = scalar_select %p800, %s799, 3
      %s802 = smul.addr %s801, 8
      %s803 = scalar_lea.vmem %s1, %s802
      %s804 = smul.u32 2, %s37
      %p805 = scmp.lt.s32.totalorder %s37, 1
      %s806 = scalar_select %p805, %s37, 1
      %s807 = smul.addr %s806, 8
      %s808 = scalar_lea.vmem %s22, %s807
      %s809 = smul.u32 2, %s37
      %p810 = scmp.lt.s32.totalorder %s809, 3
      %s811 = scalar_select %p810, %s809, 3
      %s812 = smul.addr %s811, 8
      %s813 = scalar_lea.vmem %s23, %s812
      %s814 = smul.u32 2, %s37
      %s815 = smul.u32 2, %s37
      %p816 = scmp.lt.s32.totalorder %s815, 3
      %s817 = scalar_select %p816, %s815, 3
      %s818 = smul.addr %s817, 8
      %s819 = scalar_lea.vmem %s24, %s818
      %s820 = smul.u32 2, %s37
      %s821 = smul.u32 2, %s37
      %p822 = scmp.lt.s32.totalorder %s821, 3
      %s823 = scalar_select %p822, %s821, 3
      %s824 = smul.addr %s823, 8
      %s825 = scalar_lea.vmem %s25, %s824
      %s826 = smul.u32 2, %s37
      %v828 = vld [vmem:[%s797] sm:$0xff]
      %v829 = vld [vmem:[%s797 + $0x8] sm:$0xff]
      %v830 = vld [vmem:[%s803] sm:$0xff]
      %v831 = vld [vmem:[%s803 + $0x8] sm:$0xff]
      %v832 = vld [vmem:[%s3] sm:$0x1]
      %v833 = vpack.c.bf16 %v829, %v828
      %v834 = vld [vmem:[%s2] sm:$0xf]
      %v835 = vld [vmem:[%s2 + $0x4] sm:$0xf]
      %v836 = vld [vmem:[%s2 + $0x8] sm:$0xf]
      %v837 = vld [vmem:[%s2 + $0xc] sm:$0xf]
      %v838 = vld [vmem:[%s2 + $0x10] sm:$0xf]
      %v839 = vld [vmem:[%s2 + $0x14] sm:$0xf]
      %v840 = vld [vmem:[%s2 + $0x18] sm:$0xf]
      %v841 = vld [vmem:[%s2 + $0x1c] sm:$0xf]
      %v842 = vld [vmem:[%s2 + $0x20] sm:$0xf]
      %v843 = vld [vmem:[%s2 + $0x24] sm:$0xf]
      %v844 = vld [vmem:[%s2 + $0x28] sm:$0xf]
      %v845 = vld [vmem:[%s2 + $0x2c] sm:$0xf]
      %v846 = vld [vmem:[%s2 + $0x30] sm:$0xf]
      %v847 = vld [vmem:[%s2 + $0x34] sm:$0xf]
      %v848 = vld [vmem:[%s2 + $0x38] sm:$0xf]
      %v849 = vld [vmem:[%s2 + $0x3c] sm:$0xf]
      %v851 = vlaneseq
      %v852 = vshrl.u32 %v851, 7
      %v853 = vsub.s32 0, %v852
      %v854 = vrot.slane %v832, %v853
      %v872 = vunpack.c.l.b16 %v834
      %v873 = vunpack.c.l.b16 %v835
      %v874 = vunpack.c.l.b16 %v836
      %v875 = vunpack.c.l.b16 %v837
      %v876 = vunpack.c.l.b16 %v838
      %v877 = vunpack.c.l.b16 %v839
      %v878 = vunpack.c.l.b16 %v840
      %v879 = vunpack.c.l.b16 %v841
      %v880 = vunpack.c.l.b16 %v842
      %v881 = vunpack.c.l.b16 %v843
      %v882 = vunpack.c.l.b16 %v844
      %v883 = vunpack.c.l.b16 %v845
      %v884 = vunpack.c.l.b16 %v846
      %v885 = vunpack.c.l.b16 %v847
      %v886 = vunpack.c.l.b16 %v848
      %v887 = vunpack.c.l.b16 %v849
      %v888 = vpack.c.b16 %v873, %v872
      %v889 = vpack.c.b16 %v875, %v874
      %v890 = vpack.c.b16 %v877, %v876
      %v891 = vpack.c.b16 %v879, %v878
      %v892 = vpack.c.b16 %v881, %v880
      %v893 = vpack.c.b16 %v883, %v882
      %v894 = vpack.c.b16 %v885, %v884
      %v895 = vpack.c.b16 %v887, %v886
      %904 = vmatprep.subr.bf16.mxu0 0
      %905 = vmatpush1.bf16.msra.mxu0 %v895
      %906 = vmatprep.subr.bf16.mxu0 0
      %907 = vmatpush1.bf16.msra.mxu0 %v894
      %908 = vmatprep.subr.bf16.mxu0 0
      %909 = vmatpush1.bf16.msra.mxu0 %v893
      %910 = vmatprep.subr.bf16.mxu0 0
      %911 = vmatpush1.bf16.msra.mxu0 %v892
      %912 = vmatprep.subr.bf16.mxu0 0
      %913 = vmatpush1.bf16.msra.mxu0 %v891
      %914 = vmatprep.subr.bf16.mxu0 0
      %915 = vmatpush1.bf16.msra.mxu0 %v890
      %916 = vmatprep.subr.bf16.mxu0 0
      %917 = vmatpush1.bf16.msra.mxu0 %v889
      %918 = vmatprep.subr.bf16.mxu0 0
      %919 = vmatpush1.bf16.msra.mxu0 %v888
      %920 = vmatprep.subr.bf16.mxu0 0
      %921 = vmatpush2.bf16.msra.mxu0 0
      %922 = vmatprep.subr.bf16.mxu0 0
      %923 = vmatpush2.bf16.msra.mxu0 0
      %924 = vmatprep.subr.bf16.mxu0 0
      %925 = vmatpush2.bf16.msra.mxu0 0
      %926 = vmatprep.subr.bf16.mxu0 0
      %927 = vmatpush2.bf16.msra.mxu0 0
      %928 = vmatprep.subr.bf16.mxu0 0
      %929 = vmatpush2.bf16.msra.mxu0 0
      %930 = vmatprep.subr.bf16.mxu0 0
      %931 = vmatpush2.bf16.msra.mxu0 0
      %932 = vmatprep.subr.bf16.mxu0 0
      %933 = vmatpush2.bf16.msra.mxu0 0
      %934 = vmatprep.subr.bf16.mxu0 0
      %935 = vmatpush2.bf16.msra.mxu0 0
      %936 = vmatprep.mubr.bf16.mxu0 0
      %937 = vmatmul.mubr.bf16.gmra.mxu0 %v833
      %v938 = vpop.f32.mrf.mxu0
      %v939 = vadd.f32 %v854, %v938
      %v940 = vpop.f32.mrf.mxu0
      %v941 = vpop.f32.mrf.mxu0
      %v942 = vadd.f32 %v854, %v941
      %v943 = vpop.f32.mrf.mxu0
      %944 = vdwg.mxu0
      %v945 = vmax.f32 %v939, 0.0
      %v946 = vmax.f32 %v942, 0.0
      %v947 = vld [vmem:[%s5] sm:$0x1]
      %v948 = vpack.c.bf16 %v946, %v945
      %v949 = vld [vmem:[%s4] sm:$0xf]
      %v950 = vld [vmem:[%s4 + $0x4] sm:$0xf]
      %v951 = vld [vmem:[%s4 + $0x8] sm:$0xf]
      %v952 = vld [vmem:[%s4 + $0xc] sm:$0xf]
      %v953 = vld [vmem:[%s4 + $0x10] sm:$0xf]
      %v954 = vld [vmem:[%s4 + $0x14] sm:$0xf]
      %v955 = vld [vmem:[%s4 + $0x18] sm:$0xf]
      %v956 = vld [vmem:[%s4 + $0x1c] sm:$0xf]
      %v957 = vld [vmem:[%s4 + $0x20] sm:$0xf]
      %v958 = vld [vmem:[%s4 + $0x24] sm:$0xf]
      %v959 = vld [vmem:[%s4 + $0x28] sm:$0xf]
      %v960 = vld [vmem:[%s4 + $0x2c] sm:$0xf]
      %v961 = vld [vmem:[%s4 + $0x30] sm:$0xf]
      %v962 = vld [vmem:[%s4 + $0x34] sm:$0xf]
      %v963 = vld [vmem:[%s4 + $0x38] sm:$0xf]
      %v964 = vld [vmem:[%s4 + $0x3c] sm:$0xf]
      %v966 = vlaneseq
      %v967 = vshrl.u32 %v966, 7
      %v968 = vsub.s32 0, %v967
      %v969 = vrot.slane %v947, %v968
      %v987 = vunpack.c.l.b16 %v949
      %v988 = vunpack.c.l.b16 %v950
      %v989 = vunpack.c.l.b16 %v951
      %v990 = vunpack.c.l.b16 %v952
      %v991 = vunpack.c.l.b16 %v953
      %v992 = vunpack.c.l.b16 %v954
      %v993 = vunpack.c.l.b16 %v955
      %v994 = vunpack.c.l.b16 %v956
      %v995 = vunpack.c.l.b16 %v957
      %v996 = vunpack.c.l.b16 %v958
      %v997 = vunpack.c.l.b16 %v959
      %v998 = vunpack.c.l.b16 %v960
      %v999 = vunpack.c.l.b16 %v961
      %v1000 = vunpack.c.l.b16 %v962
      %v1001 = vunpack.c.l.b16 %v963
      %v1002 = vunpack.c.l.b16 %v964
      %v1003 = vpack.c.b16 %v988, %v987
      %v1004 = vpack.c.b16 %v990, %v989
      %v1005 = vpack.c.b16 %v992, %v991
      %v1006 = vpack.c.b16 %v994, %v993
      %v1007 = vpack.c.b16 %v996, %v995
      %v1008 = vpack.c.b16 %v998, %v997
      %v1009 = vpack.c.b16 %v1000, %v999
      %v1010 = vpack.c.b16 %v1002, %v1001
      %1019 = vmatprep.subr.bf16.mxu0 0
      %1020 = vmatpush1.bf16.msra.mxu0 %v1010
      %1021 = vmatprep.subr.bf16.mxu0 0
      %1022 = vmatpush1.bf16.msra.mxu0 %v1009
      %1023 = vmatprep.subr.bf16.mxu0 0
      %1024 = vmatpush1.bf16.msra.mxu0 %v1008
      %1025 = vmatprep.subr.bf16.mxu0 0
      %1026 = vmatpush1.bf16.msra.mxu0 %v1007
      %1027 = vmatprep.subr.bf16.mxu0 0
      %1028 = vmatpush1.bf16.msra.mxu0 %v1006
      %1029 = vmatprep.subr.bf16.mxu0 0
      %1030 = vmatpush1.bf16.msra.mxu0 %v1005
      %1031 = vmatprep.subr.bf16.mxu0 0
      %1032 = vmatpush1.bf16.msra.mxu0 %v1004
      %1033 = vmatprep.subr.bf16.mxu0 0
      %1034 = vmatpush1.bf16.msra.mxu0 %v1003
      %1035 = vmatprep.subr.bf16.mxu0 0
      %1036 = vmatpush2.bf16.msra.mxu0 0
      %1037 = vmatprep.subr.bf16.mxu0 0
      %1038 = vmatpush2.bf16.msra.mxu0 0
      %1039 = vmatprep.subr.bf16.mxu0 0
      %1040 = vmatpush2.bf16.msra.mxu0 0
      %1041 = vmatprep.subr.bf16.mxu0 0
      %1042 = vmatpush2.bf16.msra.mxu0 0
      %1043 = vmatprep.subr.bf16.mxu0 0
      %1044 = vmatpush2.bf16.msra.mxu0 0
      %1045 = vmatprep.subr.bf16.mxu0 0
      %1046 = vmatpush2.bf16.msra.mxu0 0
      %1047 = vmatprep.subr.bf16.mxu0 0
      %1048 = vmatpush2.bf16.msra.mxu0 0
      %1049 = vmatprep.subr.bf16.mxu0 0
      %1050 = vmatpush2.bf16.msra.mxu0 0
      %1051 = vmatprep.mubr.bf16.mxu0 0
      %1052 = vmatmul.mubr.bf16.gmra.mxu0 %v948
      %v1053 = vpop.f32.mrf.mxu0
      %v1054 = vadd.f32 %v969, %v1053
      %v1055 = vpop.f32.mrf.mxu0
      %v1056 = vpop.f32.mrf.mxu0
      %v1057 = vadd.f32 %v969, %v1056
      %v1058 = vpop.f32.mrf.mxu0
      %1059 = vdwg.mxu0
      %v1060 = vmax.f32 %v1054, 0.0
      %v1061 = vmax.f32 %v1057, 0.0
      %v1062 = vld [vmem:[%s7] sm:$0x1]
      %v1063 = vpack.c.bf16 %v1061, %v1060
      %v1064 = vld [vmem:[%s6] sm:$0xf]
      %v1065 = vld [vmem:[%s6 + $0x4] sm:$0xf]
      %v1066 = vld [vmem:[%s6 + $0x8] sm:$0xf]
      %v1067 = vld [vmem:[%s6 + $0xc] sm:$0xf]
      %v1068 = vld [vmem:[%s6 + $0x10] sm:$0xf]
      %v1069 = vld [vmem:[%s6 + $0x14] sm:$0xf]
      %v1070 = vld [vmem:[%s6 + $0x18] sm:$0xf]
      %v1071 = vld [vmem:[%s6 + $0x1c] sm:$0xf]
      %v1072 = vld [vmem:[%s6 + $0x20] sm:$0xf]
      %v1073 = vld [vmem:[%s6 + $0x24] sm:$0xf]
      %v1074 = vld [vmem:[%s6 + $0x28] sm:$0xf]
      %v1075 = vld [vmem:[%s6 + $0x2c] sm:$0xf]
      %v1076 = vld [vmem:[%s6 + $0x30] sm:$0xf]
      %v1077 = vld [vmem:[%s6 + $0x34] sm:$0xf]
      %v1078 = vld [vmem:[%s6 + $0x38] sm:$0xf]
      %v1079 = vld [vmem:[%s6 + $0x3c] sm:$0xf]
      %v1081 = vlaneseq
      %v1082 = vshrl.u32 %v1081, 7
      %v1083 = vsub.s32 0, %v1082
      %v1084 = vrot.slane %v1062, %v1083
      %v1102 = vunpack.c.l.b16 %v1064
      %v1103 = vunpack.c.l.b16 %v1065
      %v1104 = vunpack.c.l.b16 %v1066
      %v1105 = vunpack.c.l.b16 %v1067
      %v1106 = vunpack.c.l.b16 %v1068
      %v1107 = vunpack.c.l.b16 %v1069
      %v1108 = vunpack.c.l.b16 %v1070
      %v1109 = vunpack.c.l.b16 %v1071
      %v1110 = vunpack.c.l.b16 %v1072
      %v1111 = vunpack.c.l.b16 %v1073
      %v1112 = vunpack.c.l.b16 %v1074
      %v1113 = vunpack.c.l.b16 %v1075
      %v1114 = vunpack.c.l.b16 %v1076
      %v1115 = vunpack.c.l.b16 %v1077
      %v1116 = vunpack.c.l.b16 %v1078
      %v1117 = vunpack.c.l.b16 %v1079
      %v1118 = vpack.c.b16 %v1103, %v1102
      %v1119 = vpack.c.b16 %v1105, %v1104
      %v1120 = vpack.c.b16 %v1107, %v1106
      %v1121 = vpack.c.b16 %v1109, %v1108
      %v1122 = vpack.c.b16 %v1111, %v1110
      %v1123 = vpack.c.b16 %v1113, %v1112
      %v1124 = vpack.c.b16 %v1115, %v1114
      %v1125 = vpack.c.b16 %v1117, %v1116
      %1134 = vmatprep.subr.bf16.mxu0 0
      %1135 = vmatpush1.bf16.msra.mxu0 %v1125
      %1136 = vmatprep.subr.bf16.mxu0 0
      %1137 = vmatpush1.bf16.msra.mxu0 %v1124
      %1138 = vmatprep.subr.bf16.mxu0 0
      %1139 = vmatpush1.bf16.msra.mxu0 %v1123
      %1140 = vmatprep.subr.bf16.mxu0 0
      %1141 = vmatpush1.bf16.msra.mxu0 %v1122
      %1142 = vmatprep.subr.bf16.mxu0 0
      %1143 = vmatpush1.bf16.msra.mxu0 %v1121
      %1144 = vmatprep.subr.bf16.mxu0 0
      %1145 = vmatpush1.bf16.msra.mxu0 %v1120
      %1146 = vmatprep.subr.bf16.mxu0 0
      %1147 = vmatpush1.bf16.msra.mxu0 %v1119
      %1148 = vmatprep.subr.bf16.mxu0 0
      %1149 = vmatpush1.bf16.msra.mxu0 %v1118
      %1150 = vmatprep.subr.bf16.mxu0 0
      %1151 = vmatpush2.bf16.msra.mxu0 0
      %1152 = vmatprep.subr.bf16.mxu0 0
      %1153 = vmatpush2.bf16.msra.mxu0 0
      %1154 = vmatprep.subr.bf16.mxu0 0
      %1155 = vmatpush2.bf16.msra.mxu0 0
      %1156 = vmatprep.subr.bf16.mxu0 0
      %1157 = vmatpush2.bf16.msra.mxu0 0
      %1158 = vmatprep.subr.bf16.mxu0 0
      %1159 = vmatpush2.bf16.msra.mxu0 0
      %1160 = vmatprep.subr.bf16.mxu0 0
      %1161 = vmatpush2.bf16.msra.mxu0 0
      %1162 = vmatprep.subr.bf16.mxu0 0
      %1163 = vmatpush2.bf16.msra.mxu0 0
      %1164 = vmatprep.subr.bf16.mxu0 0
      %1165 = vmatpush2.bf16.msra.mxu0 0
      %1166 = vmatprep.mubr.bf16.mxu0 0
      %1167 = vmatmul.mubr.bf16.gmra.mxu0 %v1063
      %v1168 = vpop.f32.mrf.mxu0
      %v1169 = vadd.f32 %v1084, %v1168
      %v1170 = vpop.f32.mrf.mxu0
      %v1171 = vpop.f32.mrf.mxu0
      %v1172 = vadd.f32 %v1084, %v1171
      %v1173 = vpop.f32.mrf.mxu0
      %1174 = vdwg.mxu0
      %v1175 = vmax.f32 %v1169, 0.0
      %v1176 = vmax.f32 %v1172, 0.0
      %v1177 = vld [vmem:[%s9] sm:$0x1]
      %v1178 = vpack.c.bf16 %v1176, %v1175
      %v1179 = vld [vmem:[%s8] sm:$0xf]
      %v1180 = vld [vmem:[%s8 + $0x4] sm:$0xf]
      %v1181 = vld [vmem:[%s8 + $0x8] sm:$0xf]
      %v1182 = vld [vmem:[%s8 + $0xc] sm:$0xf]
      %v1183 = vld [vmem:[%s8 + $0x10] sm:$0xf]
      %v1184 = vld [vmem:[%s8 + $0x14] sm:$0xf]
      %v1185 = vld [vmem:[%s8 + $0x18] sm:$0xf]
      %v1186 = vld [vmem:[%s8 + $0x1c] sm:$0xf]
      %v1187 = vld [vmem:[%s8 + $0x20] sm:$0xf]
      %v1188 = vld [vmem:[%s8 + $0x24] sm:$0xf]
      %v1189 = vld [vmem:[%s8 + $0x28] sm:$0xf]
      %v1190 = vld [vmem:[%s8 + $0x2c] sm:$0xf]
      %v1191 = vld [vmem:[%s8 + $0x30] sm:$0xf]
      %v1192 = vld [vmem:[%s8 + $0x34] sm:$0xf]
      %v1193 = vld [vmem:[%s8 + $0x38] sm:$0xf]
      %v1194 = vld [vmem:[%s8 + $0x3c] sm:$0xf]
      %v1196 = vlaneseq
      %v1197 = vshrl.u32 %v1196, 7
      %v1198 = vsub.s32 0, %v1197
      %v1199 = vrot.slane %v1177, %v1198
      %v1217 = vunpack.c.l.b16 %v1179
      %v1218 = vunpack.c.l.b16 %v1180
      %v1219 = vunpack.c.l.b16 %v1181
      %v1220 = vunpack.c.l.b16 %v1182
      %v1221 = vunpack.c.l.b16 %v1183
      %v1222 = vunpack.c.l.b16 %v1184
      %v1223 = vunpack.c.l.b16 %v1185
      %v1224 = vunpack.c.l.b16 %v1186
      %v1225 = vunpack.c.l.b16 %v1187
      %v1226 = vunpack.c.l.b16 %v1188
      %v1227 = vunpack.c.l.b16 %v1189
      %v1228 = vunpack.c.l.b16 %v1190
      %v1229 = vunpack.c.l.b16 %v1191
      %v1230 = vunpack.c.l.b16 %v1192
      %v1231 = vunpack.c.l.b16 %v1193
      %v1232 = vunpack.c.l.b16 %v1194
      %v1233 = vpack.c.b16 %v1218, %v1217
      %v1234 = vpack.c.b16 %v1220, %v1219
      %v1235 = vpack.c.b16 %v1222, %v1221
      %v1236 = vpack.c.b16 %v1224, %v1223
      %v1237 = vpack.c.b16 %v1226, %v1225
      %v1238 = vpack.c.b16 %v1228, %v1227
      %v1239 = vpack.c.b16 %v1230, %v1229
      %v1240 = vpack.c.b16 %v1232, %v1231
      %1249 = vmatprep.subr.bf16.mxu0 0
      %1250 = vmatpush1.bf16.msra.mxu0 %v1240
      %1251 = vmatprep.subr.bf16.mxu0 0
      %1252 = vmatpush1.bf16.msra.mxu0 %v1239
      %1253 = vmatprep.subr.bf16.mxu0 0
      %1254 = vmatpush1.bf16.msra.mxu0 %v1238
      %1255 = vmatprep.subr.bf16.mxu0 0
      %1256 = vmatpush1.bf16.msra.mxu0 %v1237
      %1257 = vmatprep.subr.bf16.mxu0 0
      %1258 = vmatpush1.bf16.msra.mxu0 %v1236
      %1259 = vmatprep.subr.bf16.mxu0 0
      %1260 = vmatpush1.bf16.msra.mxu0 %v1235
      %1261 = vmatprep.subr.bf16.mxu0 0
      %1262 = vmatpush1.bf16.msra.mxu0 %v1234
      %1263 = vmatprep.subr.bf16.mxu0 0
      %1264 = vmatpush1.bf16.msra.mxu0 %v1233
      %1265 = vmatprep.subr.bf16.mxu0 0
      %1266 = vmatpush2.bf16.msra.mxu0 0
      %1267 = vmatprep.subr.bf16.mxu0 0
      %1268 = vmatpush2.bf16.msra.mxu0 0
      %1269 = vmatprep.subr.bf16.mxu0 0
      %1270 = vmatpush2.bf16.msra.mxu0 0
      %1271 = vmatprep.subr.bf16.mxu0 0
      %1272 = vmatpush2.bf16.msra.mxu0 0
      %1273 = vmatprep.subr.bf16.mxu0 0
      %1274 = vmatpush2.bf16.msra.mxu0 0
      %1275 = vmatprep.subr.bf16.mxu0 0
      %1276 = vmatpush2.bf16.msra.mxu0 0
      %1277 = vmatprep.subr.bf16.mxu0 0
      %1278 = vmatpush2.bf16.msra.mxu0 0
      %1279 = vmatprep.subr.bf16.mxu0 0
      %1280 = vmatpush2.bf16.msra.mxu0 0
      %1281 = vmatprep.mubr.bf16.mxu0 0
      %1282 = vmatmul.mubr.bf16.gmra.mxu0 %v1178
      %v1283 = vpop.f32.mrf.mxu0
      %v1284 = vadd.f32 %v1199, %v1283
      %v1285 = vpop.f32.mrf.mxu0
      %v1286 = vpop.f32.mrf.mxu0
      %v1287 = vadd.f32 %v1199, %v1286
      %v1288 = vpop.f32.mrf.mxu0
      %1289 = vdwg.mxu0
      %v1290 = vmax.f32 %v1284, 0.0
      %v1291 = vmax.f32 %v1287, 0.0
      %v1292 = vld [vmem:[%s11] sm:$0x3]
      %v1293 = vpack.c.bf16 %v1291, %v1290
      %v1294 = vld [vmem:[%s10] sm:$0xff]
      %v1295 = vld [vmem:[%s10 + $0x8] sm:$0xff]
      %v1296 = vld [vmem:[%s10 + $0x10] sm:$0xff]
      %v1297 = vld [vmem:[%s10 + $0x18] sm:$0xff]
      %v1298 = vld [vmem:[%s10 + $0x20] sm:$0xff]
      %v1299 = vld [vmem:[%s10 + $0x28] sm:$0xff]
      %v1300 = vld [vmem:[%s10 + $0x30] sm:$0xff]
      %v1301 = vld [vmem:[%s10 + $0x38] sm:$0xff]
      %v1302 = vld [vmem:[%s10 + $0x40] sm:$0xff]
      %v1303 = vld [vmem:[%s10 + $0x48] sm:$0xff]
      %v1304 = vld [vmem:[%s10 + $0x50] sm:$0xff]
      %v1305 = vld [vmem:[%s10 + $0x58] sm:$0xff]
      %v1306 = vld [vmem:[%s10 + $0x60] sm:$0xff]
      %v1307 = vld [vmem:[%s10 + $0x68] sm:$0xff]
      %v1308 = vld [vmem:[%s10 + $0x70] sm:$0xff]
      %v1309 = vld [vmem:[%s10 + $0x78] sm:$0xff]
      %v1311 = vlaneseq
      %v1312 = vshrl.u32 %v1311, 7
      %v1313 = vsub.s32 0, %v1312
      %v1314 = vrot.slane %v1292, %v1313
      %v1315 = vlaneseq
      %v1316 = vshrl.u32 %v1315, 7
      %v1317 = vsub.s32 1, %v1316
      %v1318 = vrot.slane %v1292, %v1317
      %v1337 = vunpack.c.l.b16 %v1294
      %v1338 = vunpack.c.h.b16 %v1294
      %v1339 = vunpack.c.l.b16 %v1295
      %v1340 = vunpack.c.h.b16 %v1295
      %v1341 = vunpack.c.l.b16 %v1296
      %v1342 = vunpack.c.h.b16 %v1296
      %v1343 = vunpack.c.l.b16 %v1297
      %v1344 = vunpack.c.h.b16 %v1297
      %v1345 = vunpack.c.l.b16 %v1298
      %v1346 = vunpack.c.h.b16 %v1298
      %v1347 = vunpack.c.l.b16 %v1299
      %v1348 = vunpack.c.h.b16 %v1299
      %v1349 = vunpack.c.l.b16 %v1300
      %v1350 = vunpack.c.h.b16 %v1300
      %v1351 = vunpack.c.l.b16 %v1301
      %v1352 = vunpack.c.h.b16 %v1301
      %v1353 = vunpack.c.l.b16 %v1302
      %v1354 = vunpack.c.h.b16 %v1302
      %v1355 = vunpack.c.l.b16 %v1303
      %v1356 = vunpack.c.h.b16 %v1303
      %v1357 = vunpack.c.l.b16 %v1304
      %v1358 = vunpack.c.h.b16 %v1304
      %v1359 = vunpack.c.l.b16 %v1305
      %v1360 = vunpack.c.h.b16 %v1305
      %v1361 = vunpack.c.l.b16 %v1306
      %v1362 = vunpack.c.h.b16 %v1306
      %v1363 = vunpack.c.l.b16 %v1307
      %v1364 = vunpack.c.h.b16 %v1307
      %v1365 = vunpack.c.l.b16 %v1308
      %v1366 = vunpack.c.h.b16 %v1308
      %v1367 = vunpack.c.l.b16 %v1309
      %v1368 = vunpack.c.h.b16 %v1309
      %v1369 = vpack.c.b16 %v1339, %v1337
      %v1370 = vpack.c.b16 %v1340, %v1338
      %v1371 = vpack.c.b16 %v1343, %v1341
      %v1372 = vpack.c.b16 %v1344, %v1342
      %v1373 = vpack.c.b16 %v1347, %v1345
      %v1374 = vpack.c.b16 %v1348, %v1346
      %v1375 = vpack.c.b16 %v1351, %v1349
      %v1376 = vpack.c.b16 %v1352, %v1350
      %v1377 = vpack.c.b16 %v1355, %v1353
      %v1378 = vpack.c.b16 %v1356, %v1354
      %v1379 = vpack.c.b16 %v1359, %v1357
      %v1380 = vpack.c.b16 %v1360, %v1358
      %v1381 = vpack.c.b16 %v1363, %v1361
      %v1382 = vpack.c.b16 %v1364, %v1362
      %v1383 = vpack.c.b16 %v1367, %v1365
      %v1384 = vpack.c.b16 %v1368, %v1366
      %1401 = vmatprep.subr.bf16.mxu0 %v1384
      %1402 = vmatpush1.bf16.msra.mxu0 %v1383
      %1403 = vmatprep.subr.bf16.mxu0 %v1382
      %1404 = vmatpush1.bf16.msra.mxu0 %v1381
      %1405 = vmatprep.subr.bf16.mxu0 %v1380
      %1406 = vmatpush1.bf16.msra.mxu0 %v1379
      %1407 = vmatprep.subr.bf16.mxu0 %v1378
      %1408 = vmatpush1.bf16.msra.mxu0 %v1377
      %1409 = vmatprep.subr.bf16.mxu0 %v1376
      %1410 = vmatpush1.bf16.msra.mxu0 %v1375
      %1411 = vmatprep.subr.bf16.mxu0 %v1374
      %1412 = vmatpush1.bf16.msra.mxu0 %v1373
      %1413 = vmatprep.subr.bf16.mxu0 %v1372
      %1414 = vmatpush1.bf16.msra.mxu0 %v1371
      %1415 = vmatprep.subr.bf16.mxu0 %v1370
      %1416 = vmatpush1.bf16.msra.mxu0 %v1369
      %1417 = vmatprep.subr.bf16.mxu0 0
      %1418 = vmatpush2.bf16.msra.mxu0 0
      %1419 = vmatprep.subr.bf16.mxu0 0
      %1420 = vmatpush2.bf16.msra.mxu0 0
      %1421 = vmatprep.subr.bf16.mxu0 0
      %1422 = vmatpush2.bf16.msra.mxu0 0
      %1423 = vmatprep.subr.bf16.mxu0 0
      %1424 = vmatpush2.bf16.msra.mxu0 0
      %1425 = vmatprep.subr.bf16.mxu0 0
      %1426 = vmatpush2.bf16.msra.mxu0 0
      %1427 = vmatprep.subr.bf16.mxu0 0
      %1428 = vmatpush2.bf16.msra.mxu0 0
      %1429 = vmatprep.subr.bf16.mxu0 0
      %1430 = vmatpush2.bf16.msra.mxu0 0
      %1431 = vmatprep.subr.bf16.mxu0 0
      %1432 = vmatpush2.bf16.msra.mxu0 0
      %1433 = vmatprep.mubr.bf16.mxu0 0
      %1434 = vmatmul.mubr.bf16.gmra.mxu0 %v1293
      %v1435 = vpop.f32.mrf.mxu0
      %v1436 = vadd.f32 %v1314, %v1435
      %v1437 = vpop.f32.mrf.mxu0
      %v1438 = vadd.f32 %v1318, %v1437
      %v1439 = vpop.f32.mrf.mxu0
      %v1440 = vadd.f32 %v1314, %v1439
      %v1441 = vpop.f32.mrf.mxu0
      %v1442 = vadd.f32 %v1318, %v1441
      %1443 = vdwg.mxu0
      %v1444 = vmul.f32 %v1438, 0.5
      %v1445 = vmul.f32 %v1442, 0.5
      %v1446 = vmul.f32 %v1444, 1.442695
      %v1447 = vpow.pop %v1446
      %v1448 = vmul.f32 %v1445, 1.442695
      %v1449 = vpow.pop %v1448
      %v1450 = vmul.f32 %v830, %v1447
      %v1451 = vmul.f32 %v831, %v1449
      %v1452 = vadd.f32 %v1436, %v1450
      %v1453 = vadd.f32 %v1440, %v1451
      %v1454 = vld [vmem:[%s13] sm:$0x1]
      %v1455 = vpack.c.bf16 %v1453, %v1452
      %v1456 = vld [vmem:[%s12] sm:$0xf]
      %v1457 = vld [vmem:[%s12 + $0x4] sm:$0xf]
      %v1458 = vld [vmem:[%s12 + $0x8] sm:$0xf]
      %v1459 = vld [vmem:[%s12 + $0xc] sm:$0xf]
      %v1460 = vld [vmem:[%s12 + $0x10] sm:$0xf]
      %v1461 = vld [vmem:[%s12 + $0x14] sm:$0xf]
      %v1462 = vld [vmem:[%s12 + $0x18] sm:$0xf]
      %v1463 = vld [vmem:[%s12 + $0x1c] sm:$0xf]
      %v1464 = vld [vmem:[%s12 + $0x20] sm:$0xf]
      %v1465 = vld [vmem:[%s12 + $0x24] sm:$0xf]
      %v1466 = vld [vmem:[%s12 + $0x28] sm:$0xf]
      %v1467 = vld [vmem:[%s12 + $0x2c] sm:$0xf]
      %v1468 = vld [vmem:[%s12 + $0x30] sm:$0xf]
      %v1469 = vld [vmem:[%s12 + $0x34] sm:$0xf]
      %v1470 = vld [vmem:[%s12 + $0x38] sm:$0xf]
      %v1471 = vld [vmem:[%s12 + $0x3c] sm:$0xf]
      %v1473 = vlaneseq
      %v1474 = vshrl.u32 %v1473, 7
      %v1475 = vsub.s32 0, %v1474
      %v1476 = vrot.slane %v1454, %v1475
      %v1494 = vunpack.c.l.b16 %v1456
      %v1495 = vunpack.c.l.b16 %v1457
      %v1496 = vunpack.c.l.b16 %v1458
      %v1497 = vunpack.c.l.b16 %v1459
      %v1498 = vunpack.c.l.b16 %v1460
      %v1499 = vunpack.c.l.b16 %v1461
      %v1500 = vunpack.c.l.b16 %v1462
      %v1501 = vunpack.c.l.b16 %v1463
      %v1502 = vunpack.c.l.b16 %v1464
      %v1503 = vunpack.c.l.b16 %v1465
      %v1504 = vunpack.c.l.b16 %v1466
      %v1505 = vunpack.c.l.b16 %v1467
      %v1506 = vunpack.c.l.b16 %v1468
      %v1507 = vunpack.c.l.b16 %v1469
      %v1508 = vunpack.c.l.b16 %v1470
      %v1509 = vunpack.c.l.b16 %v1471
      %v1510 = vpack.c.b16 %v1495, %v1494
      %v1511 = vpack.c.b16 %v1497, %v1496
      %v1512 = vpack.c.b16 %v1499, %v1498
      %v1513 = vpack.c.b16 %v1501, %v1500
      %v1514 = vpack.c.b16 %v1503, %v1502
      %v1515 = vpack.c.b16 %v1505, %v1504
      %v1516 = vpack.c.b16 %v1507, %v1506
      %v1517 = vpack.c.b16 %v1509, %v1508
      %1526 = vmatprep.subr.bf16.mxu0 0
      %1527 = vmatpush1.bf16.msra.mxu0 %v1517
      %1528 = vmatprep.subr.bf16.mxu0 0
      %1529 = vmatpush1.bf16.msra.mxu0 %v1516
      %1530 = vmatprep.subr.bf16.mxu0 0
      %1531 = vmatpush1.bf16.msra.mxu0 %v1515
      %1532 = vmatprep.subr.bf16.mxu0 0
      %1533 = vmatpush1.bf16.msra.mxu0 %v1514
      %1534 = vmatprep.subr.bf16.mxu0 0
      %1535 = vmatpush1.bf16.msra.mxu0 %v1513
      %1536 = vmatprep.subr.bf16.mxu0 0
      %1537 = vmatpush1.bf16.msra.mxu0 %v1512
      %1538 = vmatprep.subr.bf16.mxu0 0
      %1539 = vmatpush1.bf16.msra.mxu0 %v1511
      %1540 = vmatprep.subr.bf16.mxu0 0
      %1541 = vmatpush1.bf16.msra.mxu0 %v1510
      %1542 = vmatprep.subr.bf16.mxu0 0
      %1543 = vmatpush2.bf16.msra.mxu0 0
      %1544 = vmatprep.subr.bf16.mxu0 0
      %1545 = vmatpush2.bf16.msra.mxu0 0
      %1546 = vmatprep.subr.bf16.mxu0 0
      %1547 = vmatpush2.bf16.msra.mxu0 0
      %1548 = vmatprep.subr.bf16.mxu0 0
      %1549 = vmatpush2.bf16.msra.mxu0 0
      %1550 = vmatprep.subr.bf16.mxu0 0
      %1551 = vmatpush2.bf16.msra.mxu0 0
      %1552 = vmatprep.subr.bf16.mxu0 0
      %1553 = vmatpush2.bf16.msra.mxu0 0
      %1554 = vmatprep.subr.bf16.mxu0 0
      %1555 = vmatpush2.bf16.msra.mxu0 0
      %1556 = vmatprep.subr.bf16.mxu0 0
      %1557 = vmatpush2.bf16.msra.mxu0 0
      %1558 = vmatprep.mubr.bf16.mxu0 0
      %1559 = vmatmul.mubr.bf16.gmra.mxu0 %v1455
      %v1560 = vpop.f32.mrf.mxu0
      %v1561 = vadd.f32 %v1476, %v1560
      %v1562 = vpop.f32.mrf.mxu0
      %v1563 = vpop.f32.mrf.mxu0
      %v1564 = vadd.f32 %v1476, %v1563
      %v1565 = vpop.f32.mrf.mxu0
      %1566 = vdwg.mxu0
      %v1567 = vmax.f32 %v1561, 0.0
      %v1568 = vmax.f32 %v1564, 0.0
      %v1569 = vld [vmem:[%s15] sm:$0x1]
      %v1570 = vpack.c.bf16 %v1568, %v1567
      %v1571 = vld [vmem:[%s14] sm:$0xf]
      %v1572 = vld [vmem:[%s14 + $0x4] sm:$0xf]
      %v1573 = vld [vmem:[%s14 + $0x8] sm:$0xf]
      %v1574 = vld [vmem:[%s14 + $0xc] sm:$0xf]
      %v1575 = vld [vmem:[%s14 + $0x10] sm:$0xf]
      %v1576 = vld [vmem:[%s14 + $0x14] sm:$0xf]
      %v1577 = vld [vmem:[%s14 + $0x18] sm:$0xf]
      %v1578 = vld [vmem:[%s14 + $0x1c] sm:$0xf]
      %v1579 = vld [vmem:[%s14 + $0x20] sm:$0xf]
      %v1580 = vld [vmem:[%s14 + $0x24] sm:$0xf]
      %v1581 = vld [vmem:[%s14 + $0x28] sm:$0xf]
      %v1582 = vld [vmem:[%s14 + $0x2c] sm:$0xf]
      %v1583 = vld [vmem:[%s14 + $0x30] sm:$0xf]
      %v1584 = vld [vmem:[%s14 + $0x34] sm:$0xf]
      %v1585 = vld [vmem:[%s14 + $0x38] sm:$0xf]
      %v1586 = vld [vmem:[%s14 + $0x3c] sm:$0xf]
      %v1588 = vlaneseq
      %v1589 = vshrl.u32 %v1588, 7
      %v1590 = vsub.s32 0, %v1589
      %v1591 = vrot.slane %v1569, %v1590
      %v1609 = vunpack.c.l.b16 %v1571
      %v1610 = vunpack.c.l.b16 %v1572
      %v1611 = vunpack.c.l.b16 %v1573
      %v1612 = vunpack.c.l.b16 %v1574
      %v1613 = vunpack.c.l.b16 %v1575
      %v1614 = vunpack.c.l.b16 %v1576
      %v1615 = vunpack.c.l.b16 %v1577
      %v1616 = vunpack.c.l.b16 %v1578
      %v1617 = vunpack.c.l.b16 %v1579
      %v1618 = vunpack.c.l.b16 %v1580
      %v1619 = vunpack.c.l.b16 %v1581
      %v1620 = vunpack.c.l.b16 %v1582
      %v1621 = vunpack.c.l.b16 %v1583
      %v1622 = vunpack.c.l.b16 %v1584
      %v1623 = vunpack.c.l.b16 %v1585
      %v1624 = vunpack.c.l.b16 %v1586
      %v1625 = vpack.c.b16 %v1610, %v1609
      %v1626 = vpack.c.b16 %v1612, %v1611
      %v1627 = vpack.c.b16 %v1614, %v1613
      %v1628 = vpack.c.b16 %v1616, %v1615
      %v1629 = vpack.c.b16 %v1618, %v1617
      %v1630 = vpack.c.b16 %v1620, %v1619
      %v1631 = vpack.c.b16 %v1622, %v1621
      %v1632 = vpack.c.b16 %v1624, %v1623
      %1641 = vmatprep.subr.bf16.mxu0 0
      %1642 = vmatpush1.bf16.msra.mxu0 %v1632
      %1643 = vmatprep.subr.bf16.mxu0 0
      %1644 = vmatpush1.bf16.msra.mxu0 %v1631
      %1645 = vmatprep.subr.bf16.mxu0 0
      %1646 = vmatpush1.bf16.msra.mxu0 %v1630
      %1647 = vmatprep.subr.bf16.mxu0 0
      %1648 = vmatpush1.bf16.msra.mxu0 %v1629
      %1649 = vmatprep.subr.bf16.mxu0 0
      %1650 = vmatpush1.bf16.msra.mxu0 %v1628
      %1651 = vmatprep.subr.bf16.mxu0 0
      %1652 = vmatpush1.bf16.msra.mxu0 %v1627
      %1653 = vmatprep.subr.bf16.mxu0 0
      %1654 = vmatpush1.bf16.msra.mxu0 %v1626
      %1655 = vmatprep.subr.bf16.mxu0 0
      %1656 = vmatpush1.bf16.msra.mxu0 %v1625
      %1657 = vmatprep.subr.bf16.mxu0 0
      %1658 = vmatpush2.bf16.msra.mxu0 0
      %1659 = vmatprep.subr.bf16.mxu0 0
      %1660 = vmatpush2.bf16.msra.mxu0 0
      %1661 = vmatprep.subr.bf16.mxu0 0
      %1662 = vmatpush2.bf16.msra.mxu0 0
      %1663 = vmatprep.subr.bf16.mxu0 0
      %1664 = vmatpush2.bf16.msra.mxu0 0
      %1665 = vmatprep.subr.bf16.mxu0 0
      %1666 = vmatpush2.bf16.msra.mxu0 0
      %1667 = vmatprep.subr.bf16.mxu0 0
      %1668 = vmatpush2.bf16.msra.mxu0 0
      %1669 = vmatprep.subr.bf16.mxu0 0
      %1670 = vmatpush2.bf16.msra.mxu0 0
      %1671 = vmatprep.subr.bf16.mxu0 0
      %1672 = vmatpush2.bf16.msra.mxu0 0
      %1673 = vmatprep.mubr.bf16.mxu0 0
      %1674 = vmatmul.mubr.bf16.gmra.mxu0 %v1570
      %v1675 = vpop.f32.mrf.mxu0
      %v1676 = vadd.f32 %v1591, %v1675
      %v1677 = vpop.f32.mrf.mxu0
      %v1678 = vpop.f32.mrf.mxu0
      %v1679 = vadd.f32 %v1591, %v1678
      %v1680 = vpop.f32.mrf.mxu0
      %1681 = vdwg.mxu0
      %v1682 = vmax.f32 %v1676, 0.0
      %v1683 = vmax.f32 %v1679, 0.0
      %v1684 = vld [vmem:[%s17] sm:$0x1]
      %v1685 = vpack.c.bf16 %v1683, %v1682
      %v1686 = vld [vmem:[%s16] sm:$0xf]
      %v1687 = vld [vmem:[%s16 + $0x4] sm:$0xf]
      %v1688 = vld [vmem:[%s16 + $0x8] sm:$0xf]
      %v1689 = vld [vmem:[%s16 + $0xc] sm:$0xf]
      %v1690 = vld [vmem:[%s16 + $0x10] sm:$0xf]
      %v1691 = vld [vmem:[%s16 + $0x14] sm:$0xf]
      %v1692 = vld [vmem:[%s16 + $0x18] sm:$0xf]
      %v1693 = vld [vmem:[%s16 + $0x1c] sm:$0xf]
      %v1694 = vld [vmem:[%s16 + $0x20] sm:$0xf]
      %v1695 = vld [vmem:[%s16 + $0x24] sm:$0xf]
      %v1696 = vld [vmem:[%s16 + $0x28] sm:$0xf]
      %v1697 = vld [vmem:[%s16 + $0x2c] sm:$0xf]
      %v1698 = vld [vmem:[%s16 + $0x30] sm:$0xf]
      %v1699 = vld [vmem:[%s16 + $0x34] sm:$0xf]
      %v1700 = vld [vmem:[%s16 + $0x38] sm:$0xf]
      %v1701 = vld [vmem:[%s16 + $0x3c] sm:$0xf]
      %v1703 = vlaneseq
      %v1704 = vshrl.u32 %v1703, 7
      %v1705 = vsub.s32 0, %v1704
      %v1706 = vrot.slane %v1684, %v1705
      %v1724 = vunpack.c.l.b16 %v1686
      %v1725 = vunpack.c.l.b16 %v1687
      %v1726 = vunpack.c.l.b16 %v1688
      %v1727 = vunpack.c.l.b16 %v1689
      %v1728 = vunpack.c.l.b16 %v1690
      %v1729 = vunpack.c.l.b16 %v1691
      %v1730 = vunpack.c.l.b16 %v1692
      %v1731 = vunpack.c.l.b16 %v1693
      %v1732 = vunpack.c.l.b16 %v1694
      %v1733 = vunpack.c.l.b16 %v1695
      %v1734 = vunpack.c.l.b16 %v1696
      %v1735 = vunpack.c.l.b16 %v1697
      %v1736 = vunpack.c.l.b16 %v1698
      %v1737 = vunpack.c.l.b16 %v1699
      %v1738 = vunpack.c.l.b16 %v1700
      %v1739 = vunpack.c.l.b16 %v1701
      %v1740 = vpack.c.b16 %v1725, %v1724
      %v1741 = vpack.c.b16 %v1727, %v1726
      %v1742 = vpack.c.b16 %v1729, %v1728
      %v1743 = vpack.c.b16 %v1731, %v1730
      %v1744 = vpack.c.b16 %v1733, %v1732
      %v1745 = vpack.c.b16 %v1735, %v1734
      %v1746 = vpack.c.b16 %v1737, %v1736
      %v1747 = vpack.c.b16 %v1739, %v1738
      %1756 = vmatprep.subr.bf16.mxu0 0
      %1757 = vmatpush1.bf16.msra.mxu0 %v1747
      %1758 = vmatprep.subr.bf16.mxu0 0
      %1759 = vmatpush1.bf16.msra.mxu0 %v1746
      %1760 = vmatprep.subr.bf16.mxu0 0
      %1761 = vmatpush1.bf16.msra.mxu0 %v1745
      %1762 = vmatprep.subr.bf16.mxu0 0
      %1763 = vmatpush1.bf16.msra.mxu0 %v1744
      %1764 = vmatprep.subr.bf16.mxu0 0
      %1765 = vmatpush1.bf16.msra.mxu0 %v1743
      %1766 = vmatprep.subr.bf16.mxu0 0
      %1767 = vmatpush1.bf16.msra.mxu0 %v1742
      %1768 = vmatprep.subr.bf16.mxu0 0
      %1769 = vmatpush1.bf16.msra.mxu0 %v1741
      %1770 = vmatprep.subr.bf16.mxu0 0
      %1771 = vmatpush1.bf16.msra.mxu0 %v1740
      %1772 = vmatprep.subr.bf16.mxu0 0
      %1773 = vmatpush2.bf16.msra.mxu0 0
      %1774 = vmatprep.subr.bf16.mxu0 0
      %1775 = vmatpush2.bf16.msra.mxu0 0
      %1776 = vmatprep.subr.bf16.mxu0 0
      %1777 = vmatpush2.bf16.msra.mxu0 0
      %1778 = vmatprep.subr.bf16.mxu0 0
      %1779 = vmatpush2.bf16.msra.mxu0 0
      %1780 = vmatprep.subr.bf16.mxu0 0
      %1781 = vmatpush2.bf16.msra.mxu0 0
      %1782 = vmatprep.subr.bf16.mxu0 0
      %1783 = vmatpush2.bf16.msra.mxu0 0
      %1784 = vmatprep.subr.bf16.mxu0 0
      %1785 = vmatpush2.bf16.msra.mxu0 0
      %1786 = vmatprep.subr.bf16.mxu0 0
      %1787 = vmatpush2.bf16.msra.mxu0 0
      %1788 = vmatprep.mubr.bf16.mxu0 0
      %1789 = vmatmul.mubr.bf16.gmra.mxu0 %v1685
      %v1790 = vpop.f32.mrf.mxu0
      %v1791 = vadd.f32 %v1706, %v1790
      %v1792 = vpop.f32.mrf.mxu0
      %v1793 = vpop.f32.mrf.mxu0
      %v1794 = vadd.f32 %v1706, %v1793
      %v1795 = vpop.f32.mrf.mxu0
      %1796 = vdwg.mxu0
      %v1797 = vmax.f32 %v1791, 0.0
      %v1798 = vmax.f32 %v1794, 0.0
      %v1799 = vld [vmem:[%s19] sm:$0x1]
      %v1800 = vpack.c.bf16 %v1798, %v1797
      %v1801 = vld [vmem:[%s18] sm:$0xf]
      %v1802 = vld [vmem:[%s18 + $0x4] sm:$0xf]
      %v1803 = vld [vmem:[%s18 + $0x8] sm:$0xf]
      %v1804 = vld [vmem:[%s18 + $0xc] sm:$0xf]
      %v1805 = vld [vmem:[%s18 + $0x10] sm:$0xf]
      %v1806 = vld [vmem:[%s18 + $0x14] sm:$0xf]
      %v1807 = vld [vmem:[%s18 + $0x18] sm:$0xf]
      %v1808 = vld [vmem:[%s18 + $0x1c] sm:$0xf]
      %v1809 = vld [vmem:[%s18 + $0x20] sm:$0xf]
      %v1810 = vld [vmem:[%s18 + $0x24] sm:$0xf]
      %v1811 = vld [vmem:[%s18 + $0x28] sm:$0xf]
      %v1812 = vld [vmem:[%s18 + $0x2c] sm:$0xf]
      %v1813 = vld [vmem:[%s18 + $0x30] sm:$0xf]
      %v1814 = vld [vmem:[%s18 + $0x34] sm:$0xf]
      %v1815 = vld [vmem:[%s18 + $0x38] sm:$0xf]
      %v1816 = vld [vmem:[%s18 + $0x3c] sm:$0xf]
      %v1818 = vlaneseq
      %v1819 = vshrl.u32 %v1818, 7
      %v1820 = vsub.s32 0, %v1819
      %v1821 = vrot.slane %v1799, %v1820
      %v1839 = vunpack.c.l.b16 %v1801
      %v1840 = vunpack.c.l.b16 %v1802
      %v1841 = vunpack.c.l.b16 %v1803
      %v1842 = vunpack.c.l.b16 %v1804
      %v1843 = vunpack.c.l.b16 %v1805
      %v1844 = vunpack.c.l.b16 %v1806
      %v1845 = vunpack.c.l.b16 %v1807
      %v1846 = vunpack.c.l.b16 %v1808
      %v1847 = vunpack.c.l.b16 %v1809
      %v1848 = vunpack.c.l.b16 %v1810
      %v1849 = vunpack.c.l.b16 %v1811
      %v1850 = vunpack.c.l.b16 %v1812
      %v1851 = vunpack.c.l.b16 %v1813
      %v1852 = vunpack.c.l.b16 %v1814
      %v1853 = vunpack.c.l.b16 %v1815
      %v1854 = vunpack.c.l.b16 %v1816
      %v1855 = vpack.c.b16 %v1840, %v1839
      %v1856 = vpack.c.b16 %v1842, %v1841
      %v1857 = vpack.c.b16 %v1844, %v1843
      %v1858 = vpack.c.b16 %v1846, %v1845
      %v1859 = vpack.c.b16 %v1848, %v1847
      %v1860 = vpack.c.b16 %v1850, %v1849
      %v1861 = vpack.c.b16 %v1852, %v1851
      %v1862 = vpack.c.b16 %v1854, %v1853
      %1871 = vmatprep.subr.bf16.mxu0 0
      %1872 = vmatpush1.bf16.msra.mxu0 %v1862
      %1873 = vmatprep.subr.bf16.mxu0 0
      %1874 = vmatpush1.bf16.msra.mxu0 %v1861
      %1875 = vmatprep.subr.bf16.mxu0 0
      %1876 = vmatpush1.bf16.msra.mxu0 %v1860
      %1877 = vmatprep.subr.bf16.mxu0 0
      %1878 = vmatpush1.bf16.msra.mxu0 %v1859
      %1879 = vmatprep.subr.bf16.mxu0 0
      %1880 = vmatpush1.bf16.msra.mxu0 %v1858
      %1881 = vmatprep.subr.bf16.mxu0 0
      %1882 = vmatpush1.bf16.msra.mxu0 %v1857
      %1883 = vmatprep.subr.bf16.mxu0 0
      %1884 = vmatpush1.bf16.msra.mxu0 %v1856
      %1885 = vmatprep.subr.bf16.mxu0 0
      %1886 = vmatpush1.bf16.msra.mxu0 %v1855
      %1887 = vmatprep.subr.bf16.mxu0 0
      %1888 = vmatpush2.bf16.msra.mxu0 0
      %1889 = vmatprep.subr.bf16.mxu0 0
      %1890 = vmatpush2.bf16.msra.mxu0 0
      %1891 = vmatprep.subr.bf16.mxu0 0
      %1892 = vmatpush2.bf16.msra.mxu0 0
      %1893 = vmatprep.subr.bf16.mxu0 0
      %1894 = vmatpush2.bf16.msra.mxu0 0
      %1895 = vmatprep.subr.bf16.mxu0 0
      %1896 = vmatpush2.bf16.msra.mxu0 0
      %1897 = vmatprep.subr.bf16.mxu0 0
      %1898 = vmatpush2.bf16.msra.mxu0 0
      %1899 = vmatprep.subr.bf16.mxu0 0
      %1900 = vmatpush2.bf16.msra.mxu0 0
      %1901 = vmatprep.subr.bf16.mxu0 0
      %1902 = vmatpush2.bf16.msra.mxu0 0
      %1903 = vmatprep.mubr.bf16.mxu0 0
      %1904 = vmatmul.mubr.bf16.gmra.mxu0 %v1800
      %v1905 = vpop.f32.mrf.mxu0
      %v1906 = vadd.f32 %v1821, %v1905
      %v1907 = vpop.f32.mrf.mxu0
      %v1908 = vpop.f32.mrf.mxu0
      %v1909 = vadd.f32 %v1821, %v1908
      %v1910 = vpop.f32.mrf.mxu0
      %1911 = vdwg.mxu0
      %v1912 = vmax.f32 %v1906, 0.0
      %v1913 = vmax.f32 %v1909, 0.0
      %v1914 = vld [vmem:[%s21] sm:$0x1]
      %v1915 = vpack.c.bf16 %v1913, %v1912
      %v1916 = vld [vmem:[%s20] sm:$0xf]
      %v1917 = vld [vmem:[%s20 + $0x4] sm:$0xf]
      %v1918 = vld [vmem:[%s20 + $0x8] sm:$0xf]
      %v1919 = vld [vmem:[%s20 + $0xc] sm:$0xf]
      %v1920 = vld [vmem:[%s20 + $0x10] sm:$0xf]
      %v1921 = vld [vmem:[%s20 + $0x14] sm:$0xf]
      %v1922 = vld [vmem:[%s20 + $0x18] sm:$0xf]
      %v1923 = vld [vmem:[%s20 + $0x1c] sm:$0xf]
      %v1924 = vld [vmem:[%s20 + $0x20] sm:$0xf]
      %v1925 = vld [vmem:[%s20 + $0x24] sm:$0xf]
      %v1926 = vld [vmem:[%s20 + $0x28] sm:$0xf]
      %v1927 = vld [vmem:[%s20 + $0x2c] sm:$0xf]
      %v1928 = vld [vmem:[%s20 + $0x30] sm:$0xf]
      %v1929 = vld [vmem:[%s20 + $0x34] sm:$0xf]
      %v1930 = vld [vmem:[%s20 + $0x38] sm:$0xf]
      %v1931 = vld [vmem:[%s20 + $0x3c] sm:$0xf]
      %v1933 = vlaneseq
      %v1934 = vshrl.u32 %v1933, 7
      %v1935 = vsub.s32 0, %v1934
      %v1936 = vrot.slane %v1914, %v1935
      %v1954 = vunpack.c.l.b16 %v1916
      %v1955 = vunpack.c.l.b16 %v1917
      %v1956 = vunpack.c.l.b16 %v1918
      %v1957 = vunpack.c.l.b16 %v1919
      %v1958 = vunpack.c.l.b16 %v1920
      %v1959 = vunpack.c.l.b16 %v1921
      %v1960 = vunpack.c.l.b16 %v1922
      %v1961 = vunpack.c.l.b16 %v1923
      %v1962 = vunpack.c.l.b16 %v1924
      %v1963 = vunpack.c.l.b16 %v1925
      %v1964 = vunpack.c.l.b16 %v1926
      %v1965 = vunpack.c.l.b16 %v1927
      %v1966 = vunpack.c.l.b16 %v1928
      %v1967 = vunpack.c.l.b16 %v1929
      %v1968 = vunpack.c.l.b16 %v1930
      %v1969 = vunpack.c.l.b16 %v1931
      %v1970 = vpack.c.b16 %v1955, %v1954
      %v1971 = vpack.c.b16 %v1957, %v1956
      %v1972 = vpack.c.b16 %v1959, %v1958
      %v1973 = vpack.c.b16 %v1961, %v1960
      %v1974 = vpack.c.b16 %v1963, %v1962
      %v1975 = vpack.c.b16 %v1965, %v1964
      %v1976 = vpack.c.b16 %v1967, %v1966
      %v1977 = vpack.c.b16 %v1969, %v1968
      %1986 = vmatprep.subr.bf16.mxu0 0
      %1987 = vmatpush1.bf16.msra.mxu0 %v1977
      %1988 = vmatprep.subr.bf16.mxu0 0
      %1989 = vmatpush1.bf16.msra.mxu0 %v1976
      %1990 = vmatprep.subr.bf16.mxu0 0
      %1991 = vmatpush1.bf16.msra.mxu0 %v1975
      %1992 = vmatprep.subr.bf16.mxu0 0
      %1993 = vmatpush1.bf16.msra.mxu0 %v1974
      %1994 = vmatprep.subr.bf16.mxu0 0
      %1995 = vmatpush1.bf16.msra.mxu0 %v1973
      %1996 = vmatprep.subr.bf16.mxu0 0
      %1997 = vmatpush1.bf16.msra.mxu0 %v1972
      %1998 = vmatprep.subr.bf16.mxu0 0
      %1999 = vmatpush1.bf16.msra.mxu0 %v1971
      %2000 = vmatprep.subr.bf16.mxu0 0
      %2001 = vmatpush1.bf16.msra.mxu0 %v1970
      %2002 = vmatprep.subr.bf16.mxu0 0
      %2003 = vmatpush2.bf16.msra.mxu0 0
      %2004 = vmatprep.subr.bf16.mxu0 0
      %2005 = vmatpush2.bf16.msra.mxu0 0
      %2006 = vmatprep.subr.bf16.mxu0 0
      %2007 = vmatpush2.bf16.msra.mxu0 0
      %2008 = vmatprep.subr.bf16.mxu0 0
      %2009 = vmatpush2.bf16.msra.mxu0 0
      %2010 = vmatprep.subr.bf16.mxu0 0
      %2011 = vmatpush2.bf16.msra.mxu0 0
      %2012 = vmatprep.subr.bf16.mxu0 0
      %2013 = vmatpush2.bf16.msra.mxu0 0
      %2014 = vmatprep.subr.bf16.mxu0 0
      %2015 = vmatpush2.bf16.msra.mxu0 0
      %2016 = vmatprep.subr.bf16.mxu0 0
      %2017 = vmatpush2.bf16.msra.mxu0 0
      %2018 = vmatprep.mubr.bf16.mxu0 0
      %2019 = vmatmul.mubr.bf16.gmra.mxu0 %v1915
      %v2020 = vpop.f32.mrf.mxu0
      %v2021 = vadd.f32 %v1936, %v2020
      %v2022 = vpop.f32.mrf.mxu0
      %v2023 = vpop.f32.mrf.mxu0
      %v2024 = vadd.f32 %v1936, %v2023
      %v2025 = vpop.f32.mrf.mxu0
      %2026 = vdwg.mxu0
      %v2027 = vsub.f32 %v2021, %v828
      %v2028 = vsub.f32 %v2024, %v829
      %v2029 = vmul.f32 %v2027, %v2027
      %v2030 = vmul.f32 %v2028, %v2028
      %2031 = vadd.xlane.f32.xlu0 %v2029
      %v2032 = vpop.xlane.xlu0 %2031
      %2033 = vadd.xlane.f32.xlu0 %v2030
      %v2034 = vpop.xlane.xlu0 %2033
      %v2035 = vmul.f32 %v1447, %v1447
      %v2036 = vmul.f32 %v1449, %v1449
      %v2037 = vadd.f32 %v1438, 1.0
      %v2038 = vadd.f32 %v1442, 1.0
      %v2039 = vmul.f32 %v1436, %v1436
      %v2040 = vmul.f32 %v1440, %v1440
      %v2041 = vsub.f32 %v2037, %v2039
      %v2042 = vsub.f32 %v2038, %v2040
      %v2043 = vsub.f32 %v2041, %v2035
      %v2044 = vsub.f32 %v2042, %v2036
      %2045 = vadd.xlane.f32.xlu0 %v2043
      %v2046 = vpop.xlane.xlu0 %2045
      %2047 = vadd.xlane.f32.xlu0 %v2044
      %v2048 = vpop.xlane.xlu0 %2047
      %v2049 = vmul.f32 %v2046, -0.5
      %v2050 = vmul.f32 %v2048, -0.5
      %v2051 = vadd.f32 %v2032, %v2049
      %v2052 = vadd.f32 %v2034, %v2050
      %v2053 = vadd.f32 %v2051, %v2052
      %v2054 = vrot.slane %v2053, 4
      %v2055 = vadd.f32 %v2053, %v2054
      %v2056 = vrot.slane %v2055, 2
      %v2057 = vadd.f32 %v2055, %v2056
      %v2058 = vrot.slane %v2057, 1
      %v2059 = vadd.f32 %v2057, %v2058
      %2060 = vst [vmem:[%s808] sm:$0xff] %v2059
      %2061 = vst [vmem:[%s813] sm:$0xff] %v2021
      %2062 = vst [vmem:[%s813 + $0x8] sm:$0xff] %v2024
      %2063 = vst [vmem:[%s819] sm:$0xff] %v1436
      %2064 = vst [vmem:[%s819 + $0x8] sm:$0xff] %v1440
      %2065 = vst [vmem:[%s825] sm:$0xff] %v1438
      %2066 = vst [vmem:[%s825 + $0x8] sm:$0xff] %v1442
      %p2067 = scmp.lt.s32.totalorder %s37, 1
      %s2068 = scalar_select %p2067, %s37, 1
      %s2069 = smul.addr %s2068, 8
      %s2070 = scalar_lea.vmem %s22, %s2069
      %s2071 = smul.u32 2, %s37
      %p2072 = scmp.lt.s32.totalorder %s2071, 3
      %s2073 = scalar_select %p2072, %s2071, 3
      %s2074 = smul.addr %s2073, 8
      %s2075 = scalar_lea.vmem %s23, %s2074
      %s2076 = smul.u32 2, %s37
      %p2077 = scmp.lt.s32.totalorder %s2076, 3
      %s2078 = scalar_select %p2077, %s2076, 3
      %s2079 = smul.addr %s2078, 8
      %s2080 = scalar_lea.vmem %s24, %s2079
      %s2081 = smul.u32 2, %s37
      %p2082 = scmp.lt.s32.totalorder %s2081, 3
      %s2083 = scalar_select %p2082, %s2081, 3
      %s2084 = smul.addr %s2083, 8
      %s2085 = scalar_lea.vmem %s25, %s2084
      // Predicated region
      $region109: #{vae_forward.1} parent=107 // pred_check
        %p2086 = pneg %p527
      $region110: #{vae_forward.1} parent=107 // pred_check_branch
        %2088 = sbr.rel (%p2086) target = $region112
      $region111: #{vae_forward.1} parent=107 // pred_region
        _
      $region112: #{vae_forward.1} parent=107 // pred_fallthru
        _
      // Predicated region
      $region113: #{vae_forward.1} parent=107 // pred_check
        %p2089 = pneg %p553
      $region114: #{vae_forward.1} parent=107 // pred_check_branch
        %2091 = sbr.rel (%p2089) target = $region116
      $region115: #{vae_forward.1} parent=107 // pred_region
        %s2092 = smul.u32 2, %s37
      $region116: #{vae_forward.1} parent=107 // pred_fallthru
        _
      // Predicated region
      $region117: #{vae_forward.1} parent=107 // pred_check
        %p2093 = pneg %p579
      $region118: #{vae_forward.1} parent=107 // pred_check_branch
        %2095 = sbr.rel (%p2093) target = $region120
      $region119: #{vae_forward.1} parent=107 // pred_region
        %s2096 = smul.u32 2, %s37
      $region120: #{vae_forward.1} parent=107 // pred_fallthru
        _
      // Predicated region
      $region121: #{vae_forward.1} parent=107 // pred_check
        %p2097 = pneg %p605
      $region122: #{vae_forward.1} parent=107 // pred_check_branch
        %2099 = sbr.rel (%p2097) target = $region124
      $region123: #{vae_forward.1} parent=107 // pred_region
        %s2100 = smul.u32 2, %s37
      $region124: #{vae_forward.1} parent=107 // pred_fallthru
        _
    $region108: #{vae_forward.1} parent=5 // pred_fallthru
      _
    %p2101 = scmp.le.s32.totalorder 2, %s32
    // Predicated region
    $region125: #{vae_forward.1} parent=5 // pred_check
      %p2102 = pneg %p2101
    $region126: #{vae_forward.1} parent=5 // pred_check_branch
      %2104 = sbr.rel (%p2102) target = $region128
    $region127: #{vae_forward.1} parent=5 // pred_region
      %s2105 = ssub.s32 %s32, 2
      // Predicated region
      $region129: #{vae_forward.1} parent=127 // pred_check
        %p2106 = pneg %p533
      $region130: #{vae_forward.1} parent=127 // pred_check_branch
        %2108 = sbr.rel (%p2106) target = $region132
      $region131: #{vae_forward.1} parent=127 // pred_region
        %p2109 = scmp.lt.s32.totalorder %s38, 1
        %s2110 = scalar_select %p2109, %s38, 1
        %s2111 = smul.addr %s2110, 8
        %s2112 = scalar_lea.vmem %s22, %s2111
      $region132: #{vae_forward.1} parent=127 // pred_fallthru
        _
      // Predicated region
      $region133: #{vae_forward.1} parent=127 // pred_check
        %p2113 = pneg %p559
      $region134: #{vae_forward.1} parent=127 // pred_check_branch
        %2115 = sbr.rel (%p2113) target = $region136
      $region135: #{vae_forward.1} parent=127 // pred_region
        %s2116 = smul.u32 2, %s38
        %p2117 = scmp.lt.s32.totalorder %s2116, 3
        %s2118 = scalar_select %p2117, %s2116, 3
        %s2119 = smul.addr %s2118, 8
        %s2120 = scalar_lea.vmem %s23, %s2119
      $region136: #{vae_forward.1} parent=127 // pred_fallthru
        _
      // Predicated region
      $region137: #{vae_forward.1} parent=127 // pred_check
        %p2121 = pneg %p585
      $region138: #{vae_forward.1} parent=127 // pred_check_branch
        %2123 = sbr.rel (%p2121) target = $region140
      $region139: #{vae_forward.1} parent=127 // pred_region
        %s2124 = smul.u32 2, %s38
        %p2125 = scmp.lt.s32.totalorder %s2124, 3
        %s2126 = scalar_select %p2125, %s2124, 3
        %s2127 = smul.addr %s2126, 8
        %s2128 = scalar_lea.vmem %s24, %s2127
      $region140: #{vae_forward.1} parent=127 // pred_fallthru
        _
      // Predicated region
      $region141: #{vae_forward.1} parent=127 // pred_check
        %p2129 = pneg %p611
      $region142: #{vae_forward.1} parent=127 // pred_check_branch
        %2131 = sbr.rel (%p2129) target = $region144
      $region143: #{vae_forward.1} parent=127 // pred_region
        %s2132 = smul.u32 2, %s38
        %p2133 = scmp.lt.s32.totalorder %s2132, 3
        %s2134 = scalar_select %p2133, %s2132, 3
        %s2135 = smul.addr %s2134, 8
        %s2136 = scalar_lea.vmem %s25, %s2135
      $region144: #{vae_forward.1} parent=127 // pred_fallthru
        _
    $region128: #{vae_forward.1} parent=5 // pred_fallthru
      _
  $region6: #{vae_forward.1} parent=0 // loop_footer
    %s36 = sadd.s32 1, %s32
  $region7: #{vae_forward.1} parent=0 // loop_footer_branch
    %31 = sbr.rel target = $region3
  $region8: #{vae_forward.1} parent=0 // loop_exit
    _

</llo_original>
